<compile_context>
chip_gen: v7x
topology: tpu7x:2x2x1
jax: 0.10.0
libtpu: 0.0.40
codegen_flags: <defaults>
</compile_context>

<pallas_src>
import functools
from typing import NamedTuple

import jax
import jax.numpy as jnp
from jax.experimental import pallas as pl
from jax.experimental.pallas import tpu as pltpu


# ----------------------------- configuration --------------------------------

class Config(NamedTuple):
    input_dim: int = 4      # per-step feature dim of input_seqs
    embed_dim: int = 32     # BERT hidden size
    num_layers: int = 2
    num_heads: int = 2
    ffn_dim: int = 64
    max_len: int = 16
    ln_eps: float = 1e-12   # BERT LayerNorm eps


# ------------------------------- kernel --------------------------------------

def _layer_norm(x, gamma, beta, eps):
    mean = jnp.mean(x, axis=-1, keepdims=True)
    var = jnp.mean(jnp.square(x - mean), axis=-1, keepdims=True)
    inv = jax.lax.rsqrt(var + eps)
    return (x - mean) * inv * gamma + beta


def _bert4cl_fused_kernel(x_ref, w_in_ref, b_in_ref, pos_ref,
                          wqkv_ref, bqkv_ref, wo_ref, bo_ref,
                          g1_ref, be1_ref, w1_ref, b1_ref,
                          w2_ref, b2_ref, g2_ref, be2_ref,
                          o_ref, *,
                          num_layers, num_heads, head_dim, eps, mm_dtype):
    """Embedding + all encoder layers for one batch block, fully on-chip.

    x_ref : (Bb, S, Fin)            o_ref : (Bb, S, D)
    per-layer weights are stacked on a leading L axis and indexed statically.
    """
    Bb, S, Fin = x_ref.shape
    D = w_in_ref.shape[1]
    M = Bb * S

    def dot(a, b):
        # MXU matmul; optionally bf16 operands, always f32 accumulation.
        return jnp.dot(a.astype(mm_dtype), b.astype(mm_dtype),
                       preferred_element_type=jnp.float32)

    # ---- embedding: Linear(Fin -> D) + positional embedding -----------------
    x = x_ref[...].reshape(M, Fin)                        # merge leading dims
    h = dot(x, w_in_ref[...]) + b_in_ref[...]             # (M, D)
    h = (h.reshape(Bb, S, D) + pos_ref[...][None]).reshape(M, D)

    scale = 1.0 / float(head_dim) ** 0.5

    # ---- encoder layers (static unroll) --------------------------------------
    for l in range(num_layers):
        # fused QKV: one (M, D) x (D, 3D) matmul
        qkv = dot(h, wqkv_ref[l]) + bqkv_ref[l]           # (M, 3D)
        q = qkv[:, 0:D].reshape(Bb, S, D)
        k = qkv[:, D:2 * D].reshape(Bb, S, D)
        v = qkv[:, 2 * D:3 * D].reshape(Bb, S, D)

        # per-head attention, batched over the Bb sequences of this block
        ctx_heads = []
        for hd in range(num_heads):
            lo = hd * head_dim
            qh = q[:, :, lo:lo + head_dim]                # (Bb, S, Dh)
            kh = k[:, :, lo:lo + head_dim]
            vh = v[:, :, lo:lo + head_dim]
            s = jnp.einsum('bqd,bkd->bqk', qh, kh,
                           preferred_element_type=jnp.float32) * scale
            s = s - jnp.max(s, axis=-1, keepdims=True)
            p = jnp.exp(s)
            p = p * pl.reciprocal(jnp.sum(p, axis=-1, keepdims=True),
                                  approx=True)
            ctx_heads.append(jnp.einsum('bqk,bkd->bqd', p, vh,
                                        preferred_element_type=jnp.float32))
        ctx = jnp.concatenate(ctx_heads, axis=-1).reshape(M, D)

        # single output projection for all heads
        attn = dot(ctx, wo_ref[l]) + bo_ref[l]            # (M, D)

        # post-LN residual blocks (f32 elementwise math everywhere)
        h1 = _layer_norm(h + attn, g1_ref[l], be1_ref[l], eps)

        ff = dot(h1, w1_ref[l]) + b1_ref[l]               # (M, F)
        ff = jax.nn.gelu(ff, approximate=True)            # tanh-approx GELU
        ff = dot(ff, w2_ref[l]) + b2_ref[l]               # (M, D)

        h = _layer_norm(h1 + ff, g2_ref[l], be2_ref[l], eps)

    o_ref[...] = h.reshape(Bb, S, D)


# ------------------------------- wrapper --------------------------------------

def bert4cl_predict(input_seqs, params, cfg: Config, *, mm_dtype=jnp.float32):
    """BERT4CL.predict with output_layer=None -> returns BERT embeddings."""
    B, S, Fin = input_seqs.shape
    D = cfg.embed_dim

    # Whole batch per grid step; split into 2 "parallel" blocks only when the
    # batch is big enough to feed both v7x TensorCores without shrinking M too
    # much (no-op on v5e/v6e which have a single TC).
    nb = 2 if (B % 2 == 0 and B >= 4) else 1
    bb = B // nb

    kernel = functools.partial(
        _bert4cl_fused_kernel,
        num_layers=cfg.num_layers, num_heads=cfg.num_heads,
        head_dim=D // cfg.num_heads, eps=cfg.ln_eps, mm_dtype=mm_dtype)

    weight_args = (params["w_in"], params["b_in"], params["pos"][:S],
                   params["wqkv"], params["bqkv"], params["wo"], params["bo"],
                   params["ln1_g"], params["ln1_b"],
                   params["w1"], params["b1"], params["w2"], params["b2"],
                   params["ln2_g"], params["ln2_b"])

    def full(a):  # un-gridded whole-array BlockSpec (block == full array)
        return pl.BlockSpec(a.shape, lambda b: (0,) * a.ndim)

    return pl.pallas_call(
        kernel,
        out_shape=jax.ShapeDtypeStruct((B, S, D), jnp.float32),
        grid=(nb,),
        in_specs=[pl.BlockSpec((bb, S, Fin), lambda b: (b, 0, 0))]
                 + [full(a) for a in weight_args],
        out_specs=pl.BlockSpec((bb, S, D), lambda b: (b, 0, 0)),
        compiler_params=pltpu.CompilerParams(
            dimension_semantics=("parallel",)),
    )(input_seqs, *weight_args)


# -------------------------- deterministic parameters --------------------------

def init_params(key, cfg: Config):
    D, Fin, F, L = cfg.embed_dim, cfg.input_dim, cfg.ffn_dim, cfg.num_layers
    keys = iter(jax.random.split(key, 2 + 4 * L))
    nrm = lambda k, s: (0.02 * jax.random.normal(k, s)).astype(jnp.float32)
    zeros = lambda s: jnp.zeros(s, jnp.float32)
    ones = lambda s: jnp.ones(s, jnp.float32)
    params = {
        "w_in": nrm(next(keys), (Fin, D)),
        "b_in": zeros((1, D)),
        "pos":  nrm(next(keys), (cfg.max_len, D)),
        # per-layer weights stacked along a leading L axis (single fused call)
        "wqkv": nrm(next(keys), (L, D, 3 * D)), "bqkv": zeros((L, 1, 3 * D)),
        "wo":   nrm(next(keys), (L, D, D)),     "bo":   zeros((L, 1, D)),
        "ln1_g": ones((L, 1, D)), "ln1_b": zeros((L, 1, D)),
        "w1":   nrm(next(keys), (L, D, F)),     "b1":   zeros((L, 1, F)),
        "w2":   nrm(next(keys), (L, F, D)),     "b2":   zeros((L, 1, D)),
        "ln2_g": ones((L, 1, D)), "ln2_b": zeros((L, 1, D)),
    }
    # consume remaining keys deterministically (keeps key count stable if L changes)
    for _ in keys:
        pass
    return params


# ------------------------------ pure-JAX reference ----------------------------

def _ref_forward(x, params, cfg: Config):
    B, S, _ = x.shape
    D = cfg.embed_dim
    Dh = D // cfg.num_heads
    h = x @ params["w_in"] + params["b_in"] + params["pos"][:S]

    def ln(z, g, b):
        m = jnp.mean(z, -1, keepdims=True)
        va = jnp.mean((z - m) ** 2, -1, keepdims=True)
        return (z - m) * jax.lax.rsqrt(va + cfg.ln_eps) * g + b

    for l in range(cfg.num_layers):
        qkv = h @ params["wqkv"][l] + params["bqkv"][l]
        q, k, v = qkv[..., :D], qkv[..., D:2 * D], qkv[..., 2 * D:]
        ctxs = []
        for hd in range(cfg.num_heads):
            sl = slice(hd * Dh, (hd + 1) * Dh)
            s = jnp.einsum("bqd,bkd->bqk", q[..., sl], k[..., sl]) / (Dh ** 0.5)
            a = jax.nn.softmax(s, axis=-1)
            ctxs.append(jnp.einsum("bqk,bkd->bqd", a, v[..., sl]))
        attn = jnp.concatenate(ctxs, -1) @ params["wo"][l] + params["bo"][l]
        h1 = ln(h + attn, params["ln1_g"][l], params["ln1_b"][l])
        ff = jax.nn.gelu(h1 @ params["w1"][l] + params["b1"][l],
                         approximate=True) @ params["w2"][l] + params["b2"][l]
        h = ln(h1 + ff, params["ln2_g"][l], params["ln2_b"][l])
    return h


# ----------------------------------- main --------------------------------------

if __name__ == "__main__":
    cfg = Config()
    key = jax.random.PRNGKey(0)
    k_param, k_x = jax.random.split(key)

    params = init_params(k_param, cfg)

    B, S = 2, 8
    x = jax.random.normal(k_x, (B, S, cfg.input_dim), dtype=jnp.float32)

    out = bert4cl_predict(x, params, cfg)
    out = jax.block_until_ready(out)

    ref = _ref_forward(x, params, cfg)
    assert out.shape == (B, S, cfg.embed_dim)
    # tolerance accounts for pl.reciprocal(approx=True) in the softmax denom
    assert jnp.allclose(out, ref, atol=2e-3, rtol=2e-3), "mismatch vs JAX reference"

    print("KERNEL_OK")
</pallas_src>

<mosaic_0001>
module attributes {stable_mosaic.version = 11 : i64} {
  func.func @_bert4cl_fused_kernel(%arg0: i32, %arg1: memref<2x8x4xf32, #tpu.memory_space<vmem>>, %arg2: memref<4x32xf32, #tpu.memory_space<vmem>>, %arg3: memref<1x32xf32, #tpu.memory_space<vmem>>, %arg4: memref<8x32xf32, #tpu.memory_space<vmem>>, %arg5: memref<2x32x96xf32, #tpu.memory_space<vmem>>, %arg6: memref<2x1x96xf32, #tpu.memory_space<vmem>>, %arg7: memref<2x32x32xf32, #tpu.memory_space<vmem>>, %arg8: memref<2x1x32xf32, #tpu.memory_space<vmem>>, %arg9: memref<2x1x32xf32, #tpu.memory_space<vmem>>, %arg10: memref<2x1x32xf32, #tpu.memory_space<vmem>>, %arg11: memref<2x32x64xf32, #tpu.memory_space<vmem>>, %arg12: memref<2x1x64xf32, #tpu.memory_space<vmem>>, %arg13: memref<2x64x32xf32, #tpu.memory_space<vmem>>, %arg14: memref<2x1x32xf32, #tpu.memory_space<vmem>>, %arg15: memref<2x1x32xf32, #tpu.memory_space<vmem>>, %arg16: memref<2x1x32xf32, #tpu.memory_space<vmem>>, %arg17: memref<2x8x32xf32, #tpu.memory_space<vmem>>) attributes {dimension_semantics = [#tpu.dimension_semantics<parallel>], iteration_bounds = array<i64: 1>, scalar_prefetch = 0 : i64, scratch_operands = 0 : i64, tpu.core_type = #tpu.core_type<tc>, window_params = [{transform_indices = @transform_0, window_bounds = array<i64: 2, 8, 4>}, {pipeline_mode = #tpu.pipeline_mode<synchronous>, transform_indices = @transform_1, window_bounds = array<i64: 4, 32>}, {pipeline_mode = #tpu.pipeline_mode<synchronous>, transform_indices = @transform_2, window_bounds = array<i64: 1, 32>}, {pipeline_mode = #tpu.pipeline_mode<synchronous>, transform_indices = @transform_3, window_bounds = array<i64: 8, 32>}, {pipeline_mode = #tpu.pipeline_mode<synchronous>, transform_indices = @transform_4, window_bounds = array<i64: 2, 32, 96>}, {pipeline_mode = #tpu.pipeline_mode<synchronous>, transform_indices = @transform_5, window_bounds = array<i64: 2, 1, 96>}, {pipeline_mode = #tpu.pipeline_mode<synchronous>, transform_indices = @transform_6, window_bounds = array<i64: 2, 32, 32>}, {pipeline_mode = #tpu.pipeline_mode<synchronous>, transform_indices = @transform_7, window_bounds = array<i64: 2, 1, 32>}, {pipeline_mode = #tpu.pipeline_mode<synchronous>, transform_indices = @transform_8, window_bounds = array<i64: 2, 1, 32>}, {pipeline_mode = #tpu.pipeline_mode<synchronous>, transform_indices = @transform_9, window_bounds = array<i64: 2, 1, 32>}, {pipeline_mode = #tpu.pipeline_mode<synchronous>, transform_indices = @transform_10, window_bounds = array<i64: 2, 32, 64>}, {pipeline_mode = #tpu.pipeline_mode<synchronous>, transform_indices = @transform_11, window_bounds = array<i64: 2, 1, 64>}, {pipeline_mode = #tpu.pipeline_mode<synchronous>, transform_indices = @transform_12, window_bounds = array<i64: 2, 64, 32>}, {pipeline_mode = #tpu.pipeline_mode<synchronous>, transform_indices = @transform_13, window_bounds = array<i64: 2, 1, 32>}, {pipeline_mode = #tpu.pipeline_mode<synchronous>, transform_indices = @transform_14, window_bounds = array<i64: 2, 1, 32>}, {pipeline_mode = #tpu.pipeline_mode<synchronous>, transform_indices = @transform_15, window_bounds = array<i64: 2, 1, 32>}, {transform_indices = @transform_16, window_bounds = array<i64: 2, 8, 32>}]} {
    %c0 = arith.constant 0 : index
    %c0_0 = arith.constant 0 : index
    %c0_1 = arith.constant 0 : index
    %0 = vector.load %arg1[%c0, %c0_0, %c0_1] : memref<2x8x4xf32, #tpu.memory_space<vmem>>, vector<2x8x4xf32>
    %1 = vector.shape_cast %0 : vector<2x8x4xf32> to vector<16x4xf32>
    %c0_2 = arith.constant 0 : index
    %c0_3 = arith.constant 0 : index
    %2 = vector.load %arg2[%c0_2, %c0_3] : memref<4x32xf32, #tpu.memory_space<vmem>>, vector<4x32xf32>
    %cst = arith.constant dense<0.000000e+00> : vector<16x32xf32>
    %3 = tpu.matmul %1, %2, %cst {dimension_numbers = #tpu.dot_dimension_numbers<[1], [0], [0], [1], [0, 0, 1, 1], [], []>} : vector<16x4xf32>, vector<4x32xf32>, vector<16x32xf32> -> vector<16x32xf32>
    %c0_4 = arith.constant 0 : index
    %c0_5 = arith.constant 0 : index
    %4 = vector.load %arg3[%c0_4, %c0_5] : memref<1x32xf32, #tpu.memory_space<vmem>>, vector<1x32xf32>
    %5 = vector.broadcast %4 : vector<1x32xf32> to vector<16x32xf32>
    %6 = arith.addf %3, %5 : vector<16x32xf32>
    %7 = vector.shape_cast %6 : vector<16x32xf32> to vector<2x8x32xf32>
    %c0_6 = arith.constant 0 : index
    %c0_7 = arith.constant 0 : index
    %8 = vector.load %arg4[%c0_6, %c0_7] : memref<8x32xf32, #tpu.memory_space<vmem>>, vector<8x32xf32>
    %9 = vector.shape_cast %8 : vector<8x32xf32> to vector<1x8x32xf32>
    %10 = vector.broadcast %9 : vector<1x8x32xf32> to vector<2x8x32xf32>
    %11 = arith.addf %7, %10 : vector<2x8x32xf32>
    %12 = vector.shape_cast %11 : vector<2x8x32xf32> to vector<16x32xf32>
    %c0_8 = arith.constant 0 : index
    %c0_9 = arith.constant 0 : index
    %c0_10 = arith.constant 0 : index
    %13 = vector.load %arg5[%c0_8, %c0_9, %c0_10] : memref<2x32x96xf32, #tpu.memory_space<vmem>>, vector<1x32x96xf32>
    %14 = vector.shape_cast %13 : vector<1x32x96xf32> to vector<32x96xf32>
    %cst_11 = arith.constant dense<0.000000e+00> : vector<16x96xf32>
    %15 = tpu.matmul %12, %14, %cst_11 {dimension_numbers = #tpu.dot_dimension_numbers<[1], [0], [0], [1], [0, 0, 1, 1], [], []>} : vector<16x32xf32>, vector<32x96xf32>, vector<16x96xf32> -> vector<16x96xf32>
    %c0_12 = arith.constant 0 : index
    %c0_13 = arith.constant 0 : index
    %c0_14 = arith.constant 0 : index
    %16 = vector.load %arg6[%c0_12, %c0_13, %c0_14] : memref<2x1x96xf32, #tpu.memory_space<vmem>>, vector<1x1x96xf32>
    %17 = vector.shape_cast %16 : vector<1x1x96xf32> to vector<1x96xf32>
    %18 = vector.broadcast %17 : vector<1x96xf32> to vector<16x96xf32>
    %19 = arith.addf %15, %18 : vector<16x96xf32>
    %20 = vector.extract_strided_slice %19 {offsets = [0, 0], sizes = [16, 32], strides = [1, 1]} : vector<16x96xf32> to vector<16x32xf32>
    %21 = vector.shape_cast %20 : vector<16x32xf32> to vector<2x8x32xf32>
    %22 = vector.extract_strided_slice %19 {offsets = [0, 32], sizes = [16, 32], strides = [1, 1]} : vector<16x96xf32> to vector<16x32xf32>
    %23 = vector.shape_cast %22 : vector<16x32xf32> to vector<2x8x32xf32>
    %24 = vector.extract_strided_slice %19 {offsets = [0, 64], sizes = [16, 32], strides = [1, 1]} : vector<16x96xf32> to vector<16x32xf32>
    %25 = vector.shape_cast %24 : vector<16x32xf32> to vector<2x8x32xf32>
    %26 = vector.extract_strided_slice %21 {offsets = [0, 0, 0], sizes = [2, 8, 16], strides = [1, 1, 1]} : vector<2x8x32xf32> to vector<2x8x16xf32>
    %27 = vector.extract_strided_slice %23 {offsets = [0, 0, 0], sizes = [2, 8, 16], strides = [1, 1, 1]} : vector<2x8x32xf32> to vector<2x8x16xf32>
    %28 = vector.extract_strided_slice %25 {offsets = [0, 0, 0], sizes = [2, 8, 16], strides = [1, 1, 1]} : vector<2x8x32xf32> to vector<2x8x16xf32>
    "tpu.trace_start"() <{level = 10 : i32, message = "bqd,bkd->bqk"}> : () -> ()
    %cst_15 = arith.constant dense<0.000000e+00> : vector<2x8x8xf32>
    %29 = tpu.matmul %26, %27, %cst_15 {dimension_numbers = #tpu.dot_dimension_numbers<[2], [2], [1], [1], [0, 0, 0, 1, 1, 1], [0], [0]>} : vector<2x8x16xf32>, vector<2x8x16xf32>, vector<2x8x8xf32> -> vector<2x8x8xf32>
    "tpu.trace_stop"() : () -> ()
    %cst_16 = arith.constant 2.500000e-01 : f32
    %30 = vector.broadcast %cst_16 : f32 to vector<2x8x8xf32>
    %31 = arith.mulf %29, %30 : vector<2x8x8xf32>
    %cst_17 = arith.constant dense<0xFF800000> : vector<2x8xf32>
    %32 = vector.multi_reduction <maximumf>, %31, %cst_17 [2] : vector<2x8x8xf32> to vector<2x8xf32>
    %33 = vector.shape_cast %32 : vector<2x8xf32> to vector<2x8x1xf32>
    %34 = vector.broadcast %33 : vector<2x8x1xf32> to vector<2x8x8xf32>
    %35 = arith.subf %31, %34 : vector<2x8x8xf32>
    %36 = math.exp %35 : vector<2x8x8xf32>
    %cst_18 = arith.constant dense<0.000000e+00> : vector<2x8xf32>
    %37 = vector.multi_reduction <add>, %36, %cst_18 [2] : vector<2x8x8xf32> to vector<2x8xf32>
    %38 = vector.shape_cast %37 : vector<2x8xf32> to vector<2x8x1xf32>
    %39 = tpu.reciprocal %38 {approx = true} : vector<2x8x1xf32> -> vector<2x8x1xf32>
    %40 = vector.broadcast %39 : vector<2x8x1xf32> to vector<2x8x8xf32>
    %41 = arith.mulf %36, %40 : vector<2x8x8xf32>
    "tpu.trace_start"() <{level = 10 : i32, message = "bqk,bkd->bqd"}> : () -> ()
    %cst_19 = arith.constant dense<0.000000e+00> : vector<2x8x16xf32>
    %42 = tpu.matmul %41, %28, %cst_19 {dimension_numbers = #tpu.dot_dimension_numbers<[2], [1], [1], [2], [0, 0, 0, 1, 1, 2], [0], [0]>} : vector<2x8x8xf32>, vector<2x8x16xf32>, vector<2x8x16xf32> -> vector<2x8x16xf32>
    "tpu.trace_stop"() : () -> ()
    %43 = vector.extract_strided_slice %21 {offsets = [0, 0, 16], sizes = [2, 8, 16], strides = [1, 1, 1]} : vector<2x8x32xf32> to vector<2x8x16xf32>
    %44 = vector.extract_strided_slice %23 {offsets = [0, 0, 16], sizes = [2, 8, 16], strides = [1, 1, 1]} : vector<2x8x32xf32> to vector<2x8x16xf32>
    %45 = vector.extract_strided_slice %25 {offsets = [0, 0, 16], sizes = [2, 8, 16], strides = [1, 1, 1]} : vector<2x8x32xf32> to vector<2x8x16xf32>
    "tpu.trace_start"() <{level = 10 : i32, message = "bqd,bkd->bqk"}> : () -> ()
    %cst_20 = arith.constant dense<0.000000e+00> : vector<2x8x8xf32>
    %46 = tpu.matmul %43, %44, %cst_20 {dimension_numbers = #tpu.dot_dimension_numbers<[2], [2], [1], [1], [0, 0, 0, 1, 1, 1], [0], [0]>} : vector<2x8x16xf32>, vector<2x8x16xf32>, vector<2x8x8xf32> -> vector<2x8x8xf32>
    "tpu.trace_stop"() : () -> ()
    %cst_21 = arith.constant 2.500000e-01 : f32
    %47 = vector.broadcast %cst_21 : f32 to vector<2x8x8xf32>
    %48 = arith.mulf %46, %47 : vector<2x8x8xf32>
    %cst_22 = arith.constant dense<0xFF800000> : vector<2x8xf32>
    %49 = vector.multi_reduction <maximumf>, %48, %cst_22 [2] : vector<2x8x8xf32> to vector<2x8xf32>
    %50 = vector.shape_cast %49 : vector<2x8xf32> to vector<2x8x1xf32>
    %51 = vector.broadcast %50 : vector<2x8x1xf32> to vector<2x8x8xf32>
    %52 = arith.subf %48, %51 : vector<2x8x8xf32>
    %53 = math.exp %52 : vector<2x8x8xf32>
    %cst_23 = arith.constant dense<0.000000e+00> : vector<2x8xf32>
    %54 = vector.multi_reduction <add>, %53, %cst_23 [2] : vector<2x8x8xf32> to vector<2x8xf32>
    %55 = vector.shape_cast %54 : vector<2x8xf32> to vector<2x8x1xf32>
    %56 = tpu.reciprocal %55 {approx = true} : vector<2x8x1xf32> -> vector<2x8x1xf32>
    %57 = vector.broadcast %56 : vector<2x8x1xf32> to vector<2x8x8xf32>
    %58 = arith.mulf %53, %57 : vector<2x8x8xf32>
    "tpu.trace_start"() <{level = 10 : i32, message = "bqk,bkd->bqd"}> : () -> ()
    %cst_24 = arith.constant dense<0.000000e+00> : vector<2x8x16xf32>
    %59 = tpu.matmul %58, %45, %cst_24 {dimension_numbers = #tpu.dot_dimension_numbers<[2], [1], [1], [2], [0, 0, 0, 1, 1, 2], [0], [0]>} : vector<2x8x8xf32>, vector<2x8x16xf32>, vector<2x8x16xf32> -> vector<2x8x16xf32>
    "tpu.trace_stop"() : () -> ()
    %60 = tpu.concatenate %42, %59 in 2 : vector<2x8x16xf32>, vector<2x8x16xf32> -> vector<2x8x32xf32>
    %61 = vector.shape_cast %60 : vector<2x8x32xf32> to vector<16x32xf32>
    %c0_25 = arith.constant 0 : index
    %c0_26 = arith.constant 0 : index
    %c0_27 = arith.constant 0 : index
    %62 = vector.load %arg7[%c0_25, %c0_26, %c0_27] : memref<2x32x32xf32, #tpu.memory_space<vmem>>, vector<1x32x32xf32>
    %63 = vector.shape_cast %62 : vector<1x32x32xf32> to vector<32x32xf32>
    %cst_28 = arith.constant dense<0.000000e+00> : vector<16x32xf32>
    %64 = tpu.matmul %61, %63, %cst_28 {dimension_numbers = #tpu.dot_dimension_numbers<[1], [0], [0], [1], [0, 0, 1, 1], [], []>} : vector<16x32xf32>, vector<32x32xf32>, vector<16x32xf32> -> vector<16x32xf32>
    %c0_29 = arith.constant 0 : index
    %c0_30 = arith.constant 0 : index
    %c0_31 = arith.constant 0 : index
    %65 = vector.load %arg8[%c0_29, %c0_30, %c0_31] : memref<2x1x32xf32, #tpu.memory_space<vmem>>, vector<1x1x32xf32>
    %66 = vector.shape_cast %65 : vector<1x1x32xf32> to vector<1x32xf32>
    %67 = vector.broadcast %66 : vector<1x32xf32> to vector<16x32xf32>
    %68 = arith.addf %64, %67 : vector<16x32xf32>
    %69 = arith.addf %12, %68 : vector<16x32xf32>
    %c0_32 = arith.constant 0 : index
    %c0_33 = arith.constant 0 : index
    %c0_34 = arith.constant 0 : index
    %70 = vector.load %arg9[%c0_32, %c0_33, %c0_34] : memref<2x1x32xf32, #tpu.memory_space<vmem>>, vector<1x1x32xf32>
    %71 = vector.shape_cast %70 : vector<1x1x32xf32> to vector<1x32xf32>
    %c0_35 = arith.constant 0 : index
    %c0_36 = arith.constant 0 : index
    %c0_37 = arith.constant 0 : index
    %72 = vector.load %arg10[%c0_35, %c0_36, %c0_37] : memref<2x1x32xf32, #tpu.memory_space<vmem>>, vector<1x1x32xf32>
    %73 = vector.shape_cast %72 : vector<1x1x32xf32> to vector<1x32xf32>
    %cst_38 = arith.constant dense<0.000000e+00> : vector<16xf32>
    %74 = vector.multi_reduction <add>, %69, %cst_38 [1] : vector<16x32xf32> to vector<16xf32>
    %75 = vector.shape_cast %74 : vector<16xf32> to vector<16x1xf32>
    %cst_39 = arith.constant 3.200000e+01 : f32
    %76 = vector.broadcast %cst_39 : f32 to vector<16x1xf32>
    %77 = arith.divf %75, %76 : vector<16x1xf32>
    %78 = vector.broadcast %77 : vector<16x1xf32> to vector<16x32xf32>
    %79 = arith.subf %69, %78 : vector<16x32xf32>
    %80 = arith.mulf %79, %79 : vector<16x32xf32>
    %cst_40 = arith.constant dense<0.000000e+00> : vector<16xf32>
    %81 = vector.multi_reduction <add>, %80, %cst_40 [1] : vector<16x32xf32> to vector<16xf32>
    %82 = vector.shape_cast %81 : vector<16xf32> to vector<16x1xf32>
    %cst_41 = arith.constant 3.200000e+01 : f32
    %83 = vector.broadcast %cst_41 : f32 to vector<16x1xf32>
    %84 = arith.divf %82, %83 : vector<16x1xf32>
    %cst_42 = arith.constant 9.99999996E-13 : f32
    %85 = vector.broadcast %cst_42 : f32 to vector<16x1xf32>
    %86 = arith.addf %84, %85 : vector<16x1xf32>
    %87 = math.rsqrt %86 : vector<16x1xf32>
    %88 = vector.broadcast %77 : vector<16x1xf32> to vector<16x32xf32>
    %89 = arith.subf %69, %88 : vector<16x32xf32>
    %90 = vector.broadcast %87 : vector<16x1xf32> to vector<16x32xf32>
    %91 = arith.mulf %89, %90 : vector<16x32xf32>
    %92 = vector.broadcast %71 : vector<1x32xf32> to vector<16x32xf32>
    %93 = arith.mulf %91, %92 : vector<16x32xf32>
    %94 = vector.broadcast %73 : vector<1x32xf32> to vector<16x32xf32>
    %95 = arith.addf %93, %94 : vector<16x32xf32>
    %c0_43 = arith.constant 0 : index
    %c0_44 = arith.constant 0 : index
    %c0_45 = arith.constant 0 : index
    %96 = vector.load %arg11[%c0_43, %c0_44, %c0_45] : memref<2x32x64xf32, #tpu.memory_space<vmem>>, vector<1x32x64xf32>
    %97 = vector.shape_cast %96 : vector<1x32x64xf32> to vector<32x64xf32>
    %cst_46 = arith.constant dense<0.000000e+00> : vector<16x64xf32>
    %98 = tpu.matmul %95, %97, %cst_46 {dimension_numbers = #tpu.dot_dimension_numbers<[1], [0], [0], [1], [0, 0, 1, 1], [], []>} : vector<16x32xf32>, vector<32x64xf32>, vector<16x64xf32> -> vector<16x64xf32>
    %c0_47 = arith.constant 0 : index
    %c0_48 = arith.constant 0 : index
    %c0_49 = arith.constant 0 : index
    %99 = vector.load %arg12[%c0_47, %c0_48, %c0_49] : memref<2x1x64xf32, #tpu.memory_space<vmem>>, vector<1x1x64xf32>
    %100 = vector.shape_cast %99 : vector<1x1x64xf32> to vector<1x64xf32>
    %101 = vector.broadcast %100 : vector<1x64xf32> to vector<16x64xf32>
    %102 = arith.addf %98, %101 : vector<16x64xf32>
    %103 = arith.mulf %102, %102 : vector<16x64xf32>
    %104 = arith.mulf %102, %103 : vector<16x64xf32>
    %cst_50 = arith.constant 4.471500e-02 : f32
    %105 = vector.broadcast %cst_50 : f32 to vector<16x64xf32>
    %106 = arith.mulf %105, %104 : vector<16x64xf32>
    %107 = arith.addf %102, %106 : vector<16x64xf32>
    %cst_51 = arith.constant 0.797884583 : f32
    %108 = vector.broadcast %cst_51 : f32 to vector<16x64xf32>
    %109 = arith.mulf %108, %107 : vector<16x64xf32>
    %110 = math.tanh %109 : vector<16x64xf32>
    %cst_52 = arith.constant 1.000000e+00 : f32
    %111 = vector.broadcast %cst_52 : f32 to vector<16x64xf32>
    %112 = arith.addf %111, %110 : vector<16x64xf32>
    %cst_53 = arith.constant 5.000000e-01 : f32
    %113 = vector.broadcast %cst_53 : f32 to vector<16x64xf32>
    %114 = arith.mulf %113, %112 : vector<16x64xf32>
    %115 = arith.mulf %102, %114 : vector<16x64xf32>
    %c0_54 = arith.constant 0 : index
    %c0_55 = arith.constant 0 : index
    %c0_56 = arith.constant 0 : index
    %116 = vector.load %arg13[%c0_54, %c0_55, %c0_56] : memref<2x64x32xf32, #tpu.memory_space<vmem>>, vector<1x64x32xf32>
    %117 = vector.shape_cast %116 : vector<1x64x32xf32> to vector<64x32xf32>
    %cst_57 = arith.constant dense<0.000000e+00> : vector<16x32xf32>
    %118 = tpu.matmul %115, %117, %cst_57 {dimension_numbers = #tpu.dot_dimension_numbers<[1], [0], [0], [1], [0, 0, 1, 1], [], []>} : vector<16x64xf32>, vector<64x32xf32>, vector<16x32xf32> -> vector<16x32xf32>
    %c0_58 = arith.constant 0 : index
    %c0_59 = arith.constant 0 : index
    %c0_60 = arith.constant 0 : index
    %119 = vector.load %arg14[%c0_58, %c0_59, %c0_60] : memref<2x1x32xf32, #tpu.memory_space<vmem>>, vector<1x1x32xf32>
    %120 = vector.shape_cast %119 : vector<1x1x32xf32> to vector<1x32xf32>
    %121 = vector.broadcast %120 : vector<1x32xf32> to vector<16x32xf32>
    %122 = arith.addf %118, %121 : vector<16x32xf32>
    %123 = arith.addf %95, %122 : vector<16x32xf32>
    %c0_61 = arith.constant 0 : index
    %c0_62 = arith.constant 0 : index
    %c0_63 = arith.constant 0 : index
    %124 = vector.load %arg15[%c0_61, %c0_62, %c0_63] : memref<2x1x32xf32, #tpu.memory_space<vmem>>, vector<1x1x32xf32>
    %125 = vector.shape_cast %124 : vector<1x1x32xf32> to vector<1x32xf32>
    %c0_64 = arith.constant 0 : index
    %c0_65 = arith.constant 0 : index
    %c0_66 = arith.constant 0 : index
    %126 = vector.load %arg16[%c0_64, %c0_65, %c0_66] : memref<2x1x32xf32, #tpu.memory_space<vmem>>, vector<1x1x32xf32>
    %127 = vector.shape_cast %126 : vector<1x1x32xf32> to vector<1x32xf32>
    %cst_67 = arith.constant dense<0.000000e+00> : vector<16xf32>
    %128 = vector.multi_reduction <add>, %123, %cst_67 [1] : vector<16x32xf32> to vector<16xf32>
    %129 = vector.shape_cast %128 : vector<16xf32> to vector<16x1xf32>
    %cst_68 = arith.constant 3.200000e+01 : f32
    %130 = vector.broadcast %cst_68 : f32 to vector<16x1xf32>
    %131 = arith.divf %129, %130 : vector<16x1xf32>
    %132 = vector.broadcast %131 : vector<16x1xf32> to vector<16x32xf32>
    %133 = arith.subf %123, %132 : vector<16x32xf32>
    %134 = arith.mulf %133, %133 : vector<16x32xf32>
    %cst_69 = arith.constant dense<0.000000e+00> : vector<16xf32>
    %135 = vector.multi_reduction <add>, %134, %cst_69 [1] : vector<16x32xf32> to vector<16xf32>
    %136 = vector.shape_cast %135 : vector<16xf32> to vector<16x1xf32>
    %cst_70 = arith.constant 3.200000e+01 : f32
    %137 = vector.broadcast %cst_70 : f32 to vector<16x1xf32>
    %138 = arith.divf %136, %137 : vector<16x1xf32>
    %cst_71 = arith.constant 9.99999996E-13 : f32
    %139 = vector.broadcast %cst_71 : f32 to vector<16x1xf32>
    %140 = arith.addf %138, %139 : vector<16x1xf32>
    %141 = math.rsqrt %140 : vector<16x1xf32>
    %142 = vector.broadcast %131 : vector<16x1xf32> to vector<16x32xf32>
    %143 = arith.subf %123, %142 : vector<16x32xf32>
    %144 = vector.broadcast %141 : vector<16x1xf32> to vector<16x32xf32>
    %145 = arith.mulf %143, %144 : vector<16x32xf32>
    %146 = vector.broadcast %125 : vector<1x32xf32> to vector<16x32xf32>
    %147 = arith.mulf %145, %146 : vector<16x32xf32>
    %148 = vector.broadcast %127 : vector<1x32xf32> to vector<16x32xf32>
    %149 = arith.addf %147, %148 : vector<16x32xf32>
    %c1 = arith.constant 1 : index
    %c0_72 = arith.constant 0 : index
    %c0_73 = arith.constant 0 : index
    %150 = vector.load %arg5[%c1, %c0_72, %c0_73] : memref<2x32x96xf32, #tpu.memory_space<vmem>>, vector<1x32x96xf32>
    %151 = vector.shape_cast %150 : vector<1x32x96xf32> to vector<32x96xf32>
    %cst_74 = arith.constant dense<0.000000e+00> : vector<16x96xf32>
    %152 = tpu.matmul %149, %151, %cst_74 {dimension_numbers = #tpu.dot_dimension_numbers<[1], [0], [0], [1], [0, 0, 1, 1], [], []>} : vector<16x32xf32>, vector<32x96xf32>, vector<16x96xf32> -> vector<16x96xf32>
    %c1_75 = arith.constant 1 : index
    %c0_76 = arith.constant 0 : index
    %c0_77 = arith.constant 0 : index
    %153 = vector.load %arg6[%c1_75, %c0_76, %c0_77] : memref<2x1x96xf32, #tpu.memory_space<vmem>>, vector<1x1x96xf32>
    %154 = vector.shape_cast %153 : vector<1x1x96xf32> to vector<1x96xf32>
    %155 = vector.broadcast %154 : vector<1x96xf32> to vector<16x96xf32>
    %156 = arith.addf %152, %155 : vector<16x96xf32>
    %157 = vector.extract_strided_slice %156 {offsets = [0, 0], sizes = [16, 32], strides = [1, 1]} : vector<16x96xf32> to vector<16x32xf32>
    %158 = vector.shape_cast %157 : vector<16x32xf32> to vector<2x8x32xf32>
    %159 = vector.extract_strided_slice %156 {offsets = [0, 32], sizes = [16, 32], strides = [1, 1]} : vector<16x96xf32> to vector<16x32xf32>
    %160 = vector.shape_cast %159 : vector<16x32xf32> to vector<2x8x32xf32>
    %161 = vector.extract_strided_slice %156 {offsets = [0, 64], sizes = [16, 32], strides = [1, 1]} : vector<16x96xf32> to vector<16x32xf32>
    %162 = vector.shape_cast %161 : vector<16x32xf32> to vector<2x8x32xf32>
    %163 = vector.extract_strided_slice %158 {offsets = [0, 0, 0], sizes = [2, 8, 16], strides = [1, 1, 1]} : vector<2x8x32xf32> to vector<2x8x16xf32>
    %164 = vector.extract_strided_slice %160 {offsets = [0, 0, 0], sizes = [2, 8, 16], strides = [1, 1, 1]} : vector<2x8x32xf32> to vector<2x8x16xf32>
    %165 = vector.extract_strided_slice %162 {offsets = [0, 0, 0], sizes = [2, 8, 16], strides = [1, 1, 1]} : vector<2x8x32xf32> to vector<2x8x16xf32>
    "tpu.trace_start"() <{level = 10 : i32, message = "bqd,bkd->bqk"}> : () -> ()
    %cst_78 = arith.constant dense<0.000000e+00> : vector<2x8x8xf32>
    %166 = tpu.matmul %163, %164, %cst_78 {dimension_numbers = #tpu.dot_dimension_numbers<[2], [2], [1], [1], [0, 0, 0, 1, 1, 1], [0], [0]>} : vector<2x8x16xf32>, vector<2x8x16xf32>, vector<2x8x8xf32> -> vector<2x8x8xf32>
    "tpu.trace_stop"() : () -> ()
    %cst_79 = arith.constant 2.500000e-01 : f32
    %167 = vector.broadcast %cst_79 : f32 to vector<2x8x8xf32>
    %168 = arith.mulf %166, %167 : vector<2x8x8xf32>
    %cst_80 = arith.constant dense<0xFF800000> : vector<2x8xf32>
    %169 = vector.multi_reduction <maximumf>, %168, %cst_80 [2] : vector<2x8x8xf32> to vector<2x8xf32>
    %170 = vector.shape_cast %169 : vector<2x8xf32> to vector<2x8x1xf32>
    %171 = vector.broadcast %170 : vector<2x8x1xf32> to vector<2x8x8xf32>
    %172 = arith.subf %168, %171 : vector<2x8x8xf32>
    %173 = math.exp %172 : vector<2x8x8xf32>
    %cst_81 = arith.constant dense<0.000000e+00> : vector<2x8xf32>
    %174 = vector.multi_reduction <add>, %173, %cst_81 [2] : vector<2x8x8xf32> to vector<2x8xf32>
    %175 = vector.shape_cast %174 : vector<2x8xf32> to vector<2x8x1xf32>
    %176 = tpu.reciprocal %175 {approx = true} : vector<2x8x1xf32> -> vector<2x8x1xf32>
    %177 = vector.broadcast %176 : vector<2x8x1xf32> to vector<2x8x8xf32>
    %178 = arith.mulf %173, %177 : vector<2x8x8xf32>
    "tpu.trace_start"() <{level = 10 : i32, message = "bqk,bkd->bqd"}> : () -> ()
    %cst_82 = arith.constant dense<0.000000e+00> : vector<2x8x16xf32>
    %179 = tpu.matmul %178, %165, %cst_82 {dimension_numbers = #tpu.dot_dimension_numbers<[2], [1], [1], [2], [0, 0, 0, 1, 1, 2], [0], [0]>} : vector<2x8x8xf32>, vector<2x8x16xf32>, vector<2x8x16xf32> -> vector<2x8x16xf32>
    "tpu.trace_stop"() : () -> ()
    %180 = vector.extract_strided_slice %158 {offsets = [0, 0, 16], sizes = [2, 8, 16], strides = [1, 1, 1]} : vector<2x8x32xf32> to vector<2x8x16xf32>
    %181 = vector.extract_strided_slice %160 {offsets = [0, 0, 16], sizes = [2, 8, 16], strides = [1, 1, 1]} : vector<2x8x32xf32> to vector<2x8x16xf32>
    %182 = vector.extract_strided_slice %162 {offsets = [0, 0, 16], sizes = [2, 8, 16], strides = [1, 1, 1]} : vector<2x8x32xf32> to vector<2x8x16xf32>
    "tpu.trace_start"() <{level = 10 : i32, message = "bqd,bkd->bqk"}> : () -> ()
    %cst_83 = arith.constant dense<0.000000e+00> : vector<2x8x8xf32>
    %183 = tpu.matmul %180, %181, %cst_83 {dimension_numbers = #tpu.dot_dimension_numbers<[2], [2], [1], [1], [0, 0, 0, 1, 1, 1], [0], [0]>} : vector<2x8x16xf32>, vector<2x8x16xf32>, vector<2x8x8xf32> -> vector<2x8x8xf32>
    "tpu.trace_stop"() : () -> ()
    %cst_84 = arith.constant 2.500000e-01 : f32
    %184 = vector.broadcast %cst_84 : f32 to vector<2x8x8xf32>
    %185 = arith.mulf %183, %184 : vector<2x8x8xf32>
    %cst_85 = arith.constant dense<0xFF800000> : vector<2x8xf32>
    %186 = vector.multi_reduction <maximumf>, %185, %cst_85 [2] : vector<2x8x8xf32> to vector<2x8xf32>
    %187 = vector.shape_cast %186 : vector<2x8xf32> to vector<2x8x1xf32>
    %188 = vector.broadcast %187 : vector<2x8x1xf32> to vector<2x8x8xf32>
    %189 = arith.subf %185, %188 : vector<2x8x8xf32>
    %190 = math.exp %189 : vector<2x8x8xf32>
    %cst_86 = arith.constant dense<0.000000e+00> : vector<2x8xf32>
    %191 = vector.multi_reduction <add>, %190, %cst_86 [2] : vector<2x8x8xf32> to vector<2x8xf32>
    %192 = vector.shape_cast %191 : vector<2x8xf32> to vector<2x8x1xf32>
    %193 = tpu.reciprocal %192 {approx = true} : vector<2x8x1xf32> -> vector<2x8x1xf32>
    %194 = vector.broadcast %193 : vector<2x8x1xf32> to vector<2x8x8xf32>
    %195 = arith.mulf %190, %194 : vector<2x8x8xf32>
    "tpu.trace_start"() <{level = 10 : i32, message = "bqk,bkd->bqd"}> : () -> ()
    %cst_87 = arith.constant dense<0.000000e+00> : vector<2x8x16xf32>
    %196 = tpu.matmul %195, %182, %cst_87 {dimension_numbers = #tpu.dot_dimension_numbers<[2], [1], [1], [2], [0, 0, 0, 1, 1, 2], [0], [0]>} : vector<2x8x8xf32>, vector<2x8x16xf32>, vector<2x8x16xf32> -> vector<2x8x16xf32>
    "tpu.trace_stop"() : () -> ()
    %197 = tpu.concatenate %179, %196 in 2 : vector<2x8x16xf32>, vector<2x8x16xf32> -> vector<2x8x32xf32>
    %198 = vector.shape_cast %197 : vector<2x8x32xf32> to vector<16x32xf32>
    %c1_88 = arith.constant 1 : index
    %c0_89 = arith.constant 0 : index
    %c0_90 = arith.constant 0 : index
    %199 = vector.load %arg7[%c1_88, %c0_89, %c0_90] : memref<2x32x32xf32, #tpu.memory_space<vmem>>, vector<1x32x32xf32>
    %200 = vector.shape_cast %199 : vector<1x32x32xf32> to vector<32x32xf32>
    %cst_91 = arith.constant dense<0.000000e+00> : vector<16x32xf32>
    %201 = tpu.matmul %198, %200, %cst_91 {dimension_numbers = #tpu.dot_dimension_numbers<[1], [0], [0], [1], [0, 0, 1, 1], [], []>} : vector<16x32xf32>, vector<32x32xf32>, vector<16x32xf32> -> vector<16x32xf32>
    %c1_92 = arith.constant 1 : index
    %c0_93 = arith.constant 0 : index
    %c0_94 = arith.constant 0 : index
    %202 = vector.load %arg8[%c1_92, %c0_93, %c0_94] : memref<2x1x32xf32, #tpu.memory_space<vmem>>, vector<1x1x32xf32>
    %203 = vector.shape_cast %202 : vector<1x1x32xf32> to vector<1x32xf32>
    %204 = vector.broadcast %203 : vector<1x32xf32> to vector<16x32xf32>
    %205 = arith.addf %201, %204 : vector<16x32xf32>
    %206 = arith.addf %149, %205 : vector<16x32xf32>
    %c1_95 = arith.constant 1 : index
    %c0_96 = arith.constant 0 : index
    %c0_97 = arith.constant 0 : index
    %207 = vector.load %arg9[%c1_95, %c0_96, %c0_97] : memref<2x1x32xf32, #tpu.memory_space<vmem>>, vector<1x1x32xf32>
    %208 = vector.shape_cast %207 : vector<1x1x32xf32> to vector<1x32xf32>
    %c1_98 = arith.constant 1 : index
    %c0_99 = arith.constant 0 : index
    %c0_100 = arith.constant 0 : index
    %209 = vector.load %arg10[%c1_98, %c0_99, %c0_100] : memref<2x1x32xf32, #tpu.memory_space<vmem>>, vector<1x1x32xf32>
    %210 = vector.shape_cast %209 : vector<1x1x32xf32> to vector<1x32xf32>
    %cst_101 = arith.constant dense<0.000000e+00> : vector<16xf32>
    %211 = vector.multi_reduction <add>, %206, %cst_101 [1] : vector<16x32xf32> to vector<16xf32>
    %212 = vector.shape_cast %211 : vector<16xf32> to vector<16x1xf32>
    %cst_102 = arith.constant 3.200000e+01 : f32
    %213 = vector.broadcast %cst_102 : f32 to vector<16x1xf32>
    %214 = arith.divf %212, %213 : vector<16x1xf32>
    %215 = vector.broadcast %214 : vector<16x1xf32> to vector<16x32xf32>
    %216 = arith.subf %206, %215 : vector<16x32xf32>
    %217 = arith.mulf %216, %216 : vector<16x32xf32>
    %cst_103 = arith.constant dense<0.000000e+00> : vector<16xf32>
    %218 = vector.multi_reduction <add>, %217, %cst_103 [1] : vector<16x32xf32> to vector<16xf32>
    %219 = vector.shape_cast %218 : vector<16xf32> to vector<16x1xf32>
    %cst_104 = arith.constant 3.200000e+01 : f32
    %220 = vector.broadcast %cst_104 : f32 to vector<16x1xf32>
    %221 = arith.divf %219, %220 : vector<16x1xf32>
    %cst_105 = arith.constant 9.99999996E-13 : f32
    %222 = vector.broadcast %cst_105 : f32 to vector<16x1xf32>
    %223 = arith.addf %221, %222 : vector<16x1xf32>
    %224 = math.rsqrt %223 : vector<16x1xf32>
    %225 = vector.broadcast %214 : vector<16x1xf32> to vector<16x32xf32>
    %226 = arith.subf %206, %225 : vector<16x32xf32>
    %227 = vector.broadcast %224 : vector<16x1xf32> to vector<16x32xf32>
    %228 = arith.mulf %226, %227 : vector<16x32xf32>
    %229 = vector.broadcast %208 : vector<1x32xf32> to vector<16x32xf32>
    %230 = arith.mulf %228, %229 : vector<16x32xf32>
    %231 = vector.broadcast %210 : vector<1x32xf32> to vector<16x32xf32>
    %232 = arith.addf %230, %231 : vector<16x32xf32>
    %c1_106 = arith.constant 1 : index
    %c0_107 = arith.constant 0 : index
    %c0_108 = arith.constant 0 : index
    %233 = vector.load %arg11[%c1_106, %c0_107, %c0_108] : memref<2x32x64xf32, #tpu.memory_space<vmem>>, vector<1x32x64xf32>
    %234 = vector.shape_cast %233 : vector<1x32x64xf32> to vector<32x64xf32>
    %cst_109 = arith.constant dense<0.000000e+00> : vector<16x64xf32>
    %235 = tpu.matmul %232, %234, %cst_109 {dimension_numbers = #tpu.dot_dimension_numbers<[1], [0], [0], [1], [0, 0, 1, 1], [], []>} : vector<16x32xf32>, vector<32x64xf32>, vector<16x64xf32> -> vector<16x64xf32>
    %c1_110 = arith.constant 1 : index
    %c0_111 = arith.constant 0 : index
    %c0_112 = arith.constant 0 : index
    %236 = vector.load %arg12[%c1_110, %c0_111, %c0_112] : memref<2x1x64xf32, #tpu.memory_space<vmem>>, vector<1x1x64xf32>
    %237 = vector.shape_cast %236 : vector<1x1x64xf32> to vector<1x64xf32>
    %238 = vector.broadcast %237 : vector<1x64xf32> to vector<16x64xf32>
    %239 = arith.addf %235, %238 : vector<16x64xf32>
    %240 = arith.mulf %239, %239 : vector<16x64xf32>
    %241 = arith.mulf %239, %240 : vector<16x64xf32>
    %cst_113 = arith.constant 4.471500e-02 : f32
    %242 = vector.broadcast %cst_113 : f32 to vector<16x64xf32>
    %243 = arith.mulf %242, %241 : vector<16x64xf32>
    %244 = arith.addf %239, %243 : vector<16x64xf32>
    %cst_114 = arith.constant 0.797884583 : f32
    %245 = vector.broadcast %cst_114 : f32 to vector<16x64xf32>
    %246 = arith.mulf %245, %244 : vector<16x64xf32>
    %247 = math.tanh %246 : vector<16x64xf32>
    %cst_115 = arith.constant 1.000000e+00 : f32
    %248 = vector.broadcast %cst_115 : f32 to vector<16x64xf32>
    %249 = arith.addf %248, %247 : vector<16x64xf32>
    %cst_116 = arith.constant 5.000000e-01 : f32
    %250 = vector.broadcast %cst_116 : f32 to vector<16x64xf32>
    %251 = arith.mulf %250, %249 : vector<16x64xf32>
    %252 = arith.mulf %239, %251 : vector<16x64xf32>
    %c1_117 = arith.constant 1 : index
    %c0_118 = arith.constant 0 : index
    %c0_119 = arith.constant 0 : index
    %253 = vector.load %arg13[%c1_117, %c0_118, %c0_119] : memref<2x64x32xf32, #tpu.memory_space<vmem>>, vector<1x64x32xf32>
    %254 = vector.shape_cast %253 : vector<1x64x32xf32> to vector<64x32xf32>
    %cst_120 = arith.constant dense<0.000000e+00> : vector<16x32xf32>
    %255 = tpu.matmul %252, %254, %cst_120 {dimension_numbers = #tpu.dot_dimension_numbers<[1], [0], [0], [1], [0, 0, 1, 1], [], []>} : vector<16x64xf32>, vector<64x32xf32>, vector<16x32xf32> -> vector<16x32xf32>
    %c1_121 = arith.constant 1 : index
    %c0_122 = arith.constant 0 : index
    %c0_123 = arith.constant 0 : index
    %256 = vector.load %arg14[%c1_121, %c0_122, %c0_123] : memref<2x1x32xf32, #tpu.memory_space<vmem>>, vector<1x1x32xf32>
    %257 = vector.shape_cast %256 : vector<1x1x32xf32> to vector<1x32xf32>
    %258 = vector.broadcast %257 : vector<1x32xf32> to vector<16x32xf32>
    %259 = arith.addf %255, %258 : vector<16x32xf32>
    %260 = arith.addf %232, %259 : vector<16x32xf32>
    %c1_124 = arith.constant 1 : index
    %c0_125 = arith.constant 0 : index
    %c0_126 = arith.constant 0 : index
    %261 = vector.load %arg15[%c1_124, %c0_125, %c0_126] : memref<2x1x32xf32, #tpu.memory_space<vmem>>, vector<1x1x32xf32>
    %262 = vector.shape_cast %261 : vector<1x1x32xf32> to vector<1x32xf32>
    %c1_127 = arith.constant 1 : index
    %c0_128 = arith.constant 0 : index
    %c0_129 = arith.constant 0 : index
    %263 = vector.load %arg16[%c1_127, %c0_128, %c0_129] : memref<2x1x32xf32, #tpu.memory_space<vmem>>, vector<1x1x32xf32>
    %264 = vector.shape_cast %263 : vector<1x1x32xf32> to vector<1x32xf32>
    %cst_130 = arith.constant dense<0.000000e+00> : vector<16xf32>
    %265 = vector.multi_reduction <add>, %260, %cst_130 [1] : vector<16x32xf32> to vector<16xf32>
    %266 = vector.shape_cast %265 : vector<16xf32> to vector<16x1xf32>
    %cst_131 = arith.constant 3.200000e+01 : f32
    %267 = vector.broadcast %cst_131 : f32 to vector<16x1xf32>
    %268 = arith.divf %266, %267 : vector<16x1xf32>
    %269 = vector.broadcast %268 : vector<16x1xf32> to vector<16x32xf32>
    %270 = arith.subf %260, %269 : vector<16x32xf32>
    %271 = arith.mulf %270, %270 : vector<16x32xf32>
    %cst_132 = arith.constant dense<0.000000e+00> : vector<16xf32>
    %272 = vector.multi_reduction <add>, %271, %cst_132 [1] : vector<16x32xf32> to vector<16xf32>
    %273 = vector.shape_cast %272 : vector<16xf32> to vector<16x1xf32>
    %cst_133 = arith.constant 3.200000e+01 : f32
    %274 = vector.broadcast %cst_133 : f32 to vector<16x1xf32>
    %275 = arith.divf %273, %274 : vector<16x1xf32>
    %cst_134 = arith.constant 9.99999996E-13 : f32
    %276 = vector.broadcast %cst_134 : f32 to vector<16x1xf32>
    %277 = arith.addf %275, %276 : vector<16x1xf32>
    %278 = math.rsqrt %277 : vector<16x1xf32>
    %279 = vector.broadcast %268 : vector<16x1xf32> to vector<16x32xf32>
    %280 = arith.subf %260, %279 : vector<16x32xf32>
    %281 = vector.broadcast %278 : vector<16x1xf32> to vector<16x32xf32>
    %282 = arith.mulf %280, %281 : vector<16x32xf32>
    %283 = vector.broadcast %262 : vector<1x32xf32> to vector<16x32xf32>
    %284 = arith.mulf %282, %283 : vector<16x32xf32>
    %285 = vector.broadcast %264 : vector<1x32xf32> to vector<16x32xf32>
    %286 = arith.addf %284, %285 : vector<16x32xf32>
    %287 = vector.shape_cast %286 : vector<16x32xf32> to vector<2x8x32xf32>
    %c0_135 = arith.constant 0 : index
    %c0_136 = arith.constant 0 : index
    %c0_137 = arith.constant 0 : index
    %288 = vector.load %arg17[%c0_135, %c0_136, %c0_137] : memref<2x8x32xf32, #tpu.memory_space<vmem>>, vector<2x8x32xf32>
    tpu.vector_store %arg17[%c0_135, %c0_136, %c0_137], %287 {strides = array<i32>} : memref<2x8x32xf32, #tpu.memory_space<vmem>>, vector<2x8x32xf32>,
    return
  }
  func.func @transform_0(%arg0: i32) -> (i32, i32, i32) {
    %c0_i32 = arith.constant 0 : i32
    %c0_i32_0 = arith.constant 0 : i32
    %c0_i32_1 = arith.constant 0 : i32
    return %arg0, %c0_i32, %c0_i32_0 : i32, i32, i32
  }
  func.func @transform_1(%arg0: i32) -> (i32, i32) {
    %c0_i32 = arith.constant 0 : i32
    %c0_i32_0 = arith.constant 0 : i32
    %c0_i32_1 = arith.constant 0 : i32
    return %c0_i32, %c0_i32_0 : i32, i32
  }
  func.func @transform_2(%arg0: i32) -> (i32, i32) {
    %c0_i32 = arith.constant 0 : i32
    %c0_i32_0 = arith.constant 0 : i32
    %c0_i32_1 = arith.constant 0 : i32
    return %c0_i32, %c0_i32_0 : i32, i32
  }
  func.func @transform_3(%arg0: i32) -> (i32, i32) {
    %c0_i32 = arith.constant 0 : i32
    %c0_i32_0 = arith.constant 0 : i32
    %c0_i32_1 = arith.constant 0 : i32
    return %c0_i32, %c0_i32_0 : i32, i32
  }
  func.func @transform_4(%arg0: i32) -> (i32, i32, i32) {
    %c0_i32 = arith.constant 0 : i32
    %c0_i32_0 = arith.constant 0 : i32
    %c0_i32_1 = arith.constant 0 : i32
    %c0_i32_2 = arith.constant 0 : i32
    return %c0_i32, %c0_i32_0, %c0_i32_1 : i32, i32, i32
  }
  func.func @transform_5(%arg0: i32) -> (i32, i32, i32) {
    %c0_i32 = arith.constant 0 : i32
    %c0_i32_0 = arith.constant 0 : i32
    %c0_i32_1 = arith.constant 0 : i32
    %c0_i32_2 = arith.constant 0 : i32
    return %c0_i32, %c0_i32_0, %c0_i32_1 : i32, i32, i32
  }
  func.func @transform_6(%arg0: i32) -> (i32, i32, i32) {
    %c0_i32 = arith.constant 0 : i32
    %c0_i32_0 = arith.constant 0 : i32
    %c0_i32_1 = arith.constant 0 : i32
    %c0_i32_2 = arith.constant 0 : i32
    return %c0_i32, %c0_i32_0, %c0_i32_1 : i32, i32, i32
  }
  func.func @transform_7(%arg0: i32) -> (i32, i32, i32) {
    %c0_i32 = arith.constant 0 : i32
    %c0_i32_0 = arith.constant 0 : i32
    %c0_i32_1 = arith.constant 0 : i32
    %c0_i32_2 = arith.constant 0 : i32
    return %c0_i32, %c0_i32_0, %c0_i32_1 : i32, i32, i32
  }
  func.func @transform_8(%arg0: i32) -> (i32, i32, i32) {
    %c0_i32 = arith.constant 0 : i32
    %c0_i32_0 = arith.constant 0 : i32
    %c0_i32_1 = arith.constant 0 : i32
    %c0_i32_2 = arith.constant 0 : i32
    return %c0_i32, %c0_i32_0, %c0_i32_1 : i32, i32, i32
  }
  func.func @transform_9(%arg0: i32) -> (i32, i32, i32) {
    %c0_i32 = arith.constant 0 : i32
    %c0_i32_0 = arith.constant 0 : i32
    %c0_i32_1 = arith.constant 0 : i32
    %c0_i32_2 = arith.constant 0 : i32
    return %c0_i32, %c0_i32_0, %c0_i32_1 : i32, i32, i32
  }
  func.func @transform_10(%arg0: i32) -> (i32, i32, i32) {
    %c0_i32 = arith.constant 0 : i32
    %c0_i32_0 = arith.constant 0 : i32
    %c0_i32_1 = arith.constant 0 : i32
    %c0_i32_2 = arith.constant 0 : i32
    return %c0_i32, %c0_i32_0, %c0_i32_1 : i32, i32, i32
  }
  func.func @transform_11(%arg0: i32) -> (i32, i32, i32) {
    %c0_i32 = arith.constant 0 : i32
    %c0_i32_0 = arith.constant 0 : i32
    %c0_i32_1 = arith.constant 0 : i32
    %c0_i32_2 = arith.constant 0 : i32
    return %c0_i32, %c0_i32_0, %c0_i32_1 : i32, i32, i32
  }
  func.func @transform_12(%arg0: i32) -> (i32, i32, i32) {
    %c0_i32 = arith.constant 0 : i32
    %c0_i32_0 = arith.constant 0 : i32
    %c0_i32_1 = arith.constant 0 : i32
    %c0_i32_2 = arith.constant 0 : i32
    return %c0_i32, %c0_i32_0, %c0_i32_1 : i32, i32, i32
  }
  func.func @transform_13(%arg0: i32) -> (i32, i32, i32) {
    %c0_i32 = arith.constant 0 : i32
    %c0_i32_0 = arith.constant 0 : i32
    %c0_i32_1 = arith.constant 0 : i32
    %c0_i32_2 = arith.constant 0 : i32
    return %c0_i32, %c0_i32_0, %c0_i32_1 : i32, i32, i32
  }
  func.func @transform_14(%arg0: i32) -> (i32, i32, i32) {
    %c0_i32 = arith.constant 0 : i32
    %c0_i32_0 = arith.constant 0 : i32
    %c0_i32_1 = arith.constant 0 : i32
    %c0_i32_2 = arith.constant 0 : i32
    return %c0_i32, %c0_i32_0, %c0_i32_1 : i32, i32, i32
  }
  func.func @transform_15(%arg0: i32) -> (i32, i32, i32) {
    %c0_i32 = arith.constant 0 : i32
    %c0_i32_0 = arith.constant 0 : i32
    %c0_i32_1 = arith.constant 0 : i32
    %c0_i32_2 = arith.constant 0 : i32
    return %c0_i32, %c0_i32_0, %c0_i32_1 : i32, i32, i32
  }
  func.func @transform_16(%arg0: i32) -> (i32, i32, i32) {
    %c0_i32 = arith.constant 0 : i32
    %c0_i32_0 = arith.constant 0 : i32
    %c0_i32_1 = arith.constant 0 : i32
    return %arg0, %c0_i32, %c0_i32_0 : i32, i32, i32
  }
}

</mosaic_0001>

<llo_original>
// kernel: tpu_custom_call.1
$region0: #{tpu_custom_call.1}
  #allocation0 [shape = 'u32[]', space=smem, size = 0x4, offset = 0x4, fixed_abs, tag = 'smem constant byte address 0x4 - core index']
  #allocation1 [shape = 'u32[144,128]{1,0:T(1,128)}', space=vmem, size = 0x12000, scoped, tag = 'internal scratch']
  %s0 = inlined_call_operand.vmem [shape: f32[2,8,4], index: 0, kind: input, shape index: {}]
  %s1 = inlined_call_operand.vmem [shape: f32[4,32], index: 1, kind: input, shape index: {}]
  %s2 = inlined_call_operand.vmem [shape: f32[1,32], index: 2, kind: input, shape index: {}]
  %s3 = inlined_call_operand.hbm [shape: f32[8,32], index: 3, kind: input, shape index: {}]
  %s4 = inlined_call_operand.vmem [shape: f32[2,32,96], index: 4, kind: input, shape index: {}]
  %s5 = inlined_call_operand.hbm [shape: f32[2,1,96], index: 5, kind: input, shape index: {}]
  %s6 = inlined_call_operand.vmem [shape: f32[2,32,32], index: 6, kind: input, shape index: {}]
  %s7 = inlined_call_operand.hbm [shape: f32[2,1,32], index: 7, kind: input, shape index: {}]
  %s8 = inlined_call_operand.hbm [shape: f32[2,1,32], index: 8, kind: input, shape index: {}]
  %s9 = inlined_call_operand.hbm [shape: f32[2,1,32], index: 9, kind: input, shape index: {}]
  %s10 = inlined_call_operand.vmem [shape: f32[2,32,64], index: 10, kind: input, shape index: {}]
  %s11 = inlined_call_operand.hbm [shape: f32[2,1,64], index: 11, kind: input, shape index: {}]
  %s12 = inlined_call_operand.vmem [shape: f32[2,64,32], index: 12, kind: input, shape index: {}]
  %s13 = inlined_call_operand.vmem [shape: f32[2,1,32], index: 13, kind: input, shape index: {}]
  %s14 = inlined_call_operand.vmem [shape: f32[2,1,32], index: 14, kind: input, shape index: {}]
  %s15 = inlined_call_operand.vmem [shape: f32[2,1,32], index: 15, kind: input, shape index: {}]
  %s16 = inlined_call_operand.hbm [shape: f32[2,8,32], index: 16, kind: output, shape index: {}]
  %s17 = sld [smem:[#allocation0]]
  $region98: #{tpu_custom_call.1} parent=0
    _
  %s19 = ssub.s32 1, %s17
  %s20 = scalar_select 0, %s19, %s17
  $region1: #{tpu_custom_call.1} parent=0
    #allocation2 [shape = 'u8[4096]{0}', space=vmem, size = 0x1000, scoped, tag = 'input window, operand 3, single buffered']
    #allocation3 [shape = 's32[1]{0}', space=sflag, size = 0x4, scoped, tag = 'scoped memory for tpu_custom_call.1']
    #allocation4 [shape = 's32[1]{0}', space=sflag, size = 0x4, scoped, tag = 'scoped memory for tpu_custom_call.1']
    #allocation5 [shape = 'u8[1024]{0}', space=vmem, size = 0x400, scoped, tag = 'input window, operand 5, single buffered']
    #allocation6 [shape = 's32[1]{0}', space=sflag, size = 0x4, scoped, tag = 'scoped memory for tpu_custom_call.1']
    #allocation7 [shape = 'u8[1024]{0}', space=vmem, size = 0x400, scoped, tag = 'input window, operand 7, single buffered']
    #allocation8 [shape = 'u8[1024]{0}', space=vmem, size = 0x400, scoped, tag = 'input window, operand 8, single buffered']
    #allocation9 [shape = 's32[1]{0}', space=sflag, size = 0x4, scoped, tag = 'scoped memory for tpu_custom_call.1']
    #allocation10 [shape = 'u8[1024]{0}', space=vmem, size = 0x400, scoped, tag = 'input window, operand 9, single buffered']
    #allocation11 [shape = 'u8[1024]{0}', space=vmem, size = 0x400, scoped, tag = 'input window, operand 11, single buffered']
    #allocation12 [shape = 's32[1]{0}', space=sflag, size = 0x4, scoped, tag = 'scoped memory for tpu_custom_call.1']
    #allocation13 [shape = 'u8[8192]{0}', space=vmem, size = 0x2000, scoped, tag = 'output window, operand 0, single buffered']
    %21 = vsyncpa [#allocation3], 0
    %22 = vsyncpa [#allocation6], 0
    %23 = vsyncpa [#allocation9], 0
    %24 = vsyncpa [#allocation12], 0
    %25 = vsyncpa [#allocation4], 0
    // Predicated region
    $region2: #{tpu_custom_call.1} parent=1 // pred_check
      _
    $region3: #{tpu_custom_call.1} parent=1 // pred_check_branch
      %27 = sbr.rel (0) target = $region5
    $region4: #{tpu_custom_call.1} parent=1 // pred_region
      _
    $region5: #{tpu_custom_call.1} parent=1 // pred_fallthru
      _
    // Predicated region
    $region6: #{tpu_custom_call.1} parent=1 // pred_check
      _
    $region7: #{tpu_custom_call.1} parent=1 // pred_check_branch
      %29 = sbr.rel (0) target = $region9
    $region8: #{tpu_custom_call.1} parent=1 // pred_region
      _
    $region9: #{tpu_custom_call.1} parent=1 // pred_fallthru
      _
    // Predicated region
    $region10: #{tpu_custom_call.1} parent=1 // pred_check
      _
    $region11: #{tpu_custom_call.1} parent=1 // pred_check_branch
      %31 = sbr.rel (0) target = $region13
    $region12: #{tpu_custom_call.1} parent=1 // pred_region
      _
    $region13: #{tpu_custom_call.1} parent=1 // pred_fallthru
      _
    // Predicated region
    $region14: #{tpu_custom_call.1} parent=1 // pred_check
      _
    $region15: #{tpu_custom_call.1} parent=1 // pred_check_branch
      %33 = sbr.rel (0) target = $region17
    $region16: #{tpu_custom_call.1} parent=1 // pred_region
      %s35 = ssub.s32 128, 128
      %36 = vsyncadd [#allocation3], %s35
      %s38 = sshll.u32 [#allocation2], 4
      %s39 = int_to_ptr.vmem [resolvable:$true] %s38
      %41 = dma.hbm_to_vmem [thread:$0]  %s3, 128, %s39, [#allocation3]
    $region17: #{tpu_custom_call.1} parent=1 // pred_fallthru
      _
    // Predicated region
    $region18: #{tpu_custom_call.1} parent=1 // pred_check
      _
    $region19: #{tpu_custom_call.1} parent=1 // pred_check_branch
      %43 = sbr.rel (0) target = $region21
    $region20: #{tpu_custom_call.1} parent=1 // pred_region
      _
    $region21: #{tpu_custom_call.1} parent=1 // pred_fallthru
      _
    // Predicated region
    $region22: #{tpu_custom_call.1} parent=1 // pred_check
      _
    $region23: #{tpu_custom_call.1} parent=1 // pred_check_branch
      %45 = sbr.rel (0) target = $region25
    $region24: #{tpu_custom_call.1} parent=1 // pred_region
      %s47 = ssub.s32 32, 32
      %48 = vsyncadd [#allocation6], %s47
      %s49 = sshll.u32 [#allocation5], 4
      %s50 = int_to_ptr.vmem [resolvable:$true] %s49
      %55 = dma.hbm_to_vmem [thread:$0]  %s5, 32, %s50, [#allocation6], 16, 16, 1
    $region25: #{tpu_custom_call.1} parent=1 // pred_fallthru
      _
    // Predicated region
    $region26: #{tpu_custom_call.1} parent=1 // pred_check
      _
    $region27: #{tpu_custom_call.1} parent=1 // pred_check_branch
      %57 = sbr.rel (0) target = $region29
    $region28: #{tpu_custom_call.1} parent=1 // pred_region
      _
    $region29: #{tpu_custom_call.1} parent=1 // pred_fallthru
      _
    // Predicated region
    $region30: #{tpu_custom_call.1} parent=1 // pred_check
      _
    $region31: #{tpu_custom_call.1} parent=1 // pred_check_branch
      %59 = sbr.rel (0) target = $region33
    $region32: #{tpu_custom_call.1} parent=1 // pred_region
      %s61 = ssub.s32 32, 32
      %62 = vsyncadd [#allocation6], %s61
      %s63 = sshll.u32 [#allocation7], 4
      %s64 = int_to_ptr.vmem [resolvable:$true] %s63
      %69 = dma.hbm_to_vmem [thread:$0]  %s7, 32, %s64, [#allocation6], 16, 16, 1
    $region33: #{tpu_custom_call.1} parent=1 // pred_fallthru
      _
    // Predicated region
    $region34: #{tpu_custom_call.1} parent=1 // pred_check
      _
    $region35: #{tpu_custom_call.1} parent=1 // pred_check_branch
      %71 = sbr.rel (0) target = $region37
    $region36: #{tpu_custom_call.1} parent=1 // pred_region
      %s73 = ssub.s32 32, 32
      %74 = vsyncadd [#allocation9], %s73
      %s75 = sshll.u32 [#allocation8], 4
      %s76 = int_to_ptr.vmem [resolvable:$true] %s75
      %81 = dma.hbm_to_vmem [thread:$0]  %s8, 32, %s76, [#allocation9], 16, 16, 1
    $region37: #{tpu_custom_call.1} parent=1 // pred_fallthru
      _
    // Predicated region
    $region38: #{tpu_custom_call.1} parent=1 // pred_check
      _
    $region39: #{tpu_custom_call.1} parent=1 // pred_check_branch
      %83 = sbr.rel (0) target = $region41
    $region40: #{tpu_custom_call.1} parent=1 // pred_region
      %s85 = ssub.s32 32, 32
      %86 = vsyncadd [#allocation9], %s85
      %s87 = sshll.u32 [#allocation10], 4
      %s88 = int_to_ptr.vmem [resolvable:$true] %s87
      %93 = dma.hbm_to_vmem [thread:$0]  %s9, 32, %s88, [#allocation9], 16, 16, 1
    $region41: #{tpu_custom_call.1} parent=1 // pred_fallthru
      _
    // Predicated region
    $region42: #{tpu_custom_call.1} parent=1 // pred_check
      _
    $region43: #{tpu_custom_call.1} parent=1 // pred_check_branch
      %95 = sbr.rel (0) target = $region45
    $region44: #{tpu_custom_call.1} parent=1 // pred_region
      _
    $region45: #{tpu_custom_call.1} parent=1 // pred_fallthru
      _
    // Predicated region
    $region46: #{tpu_custom_call.1} parent=1 // pred_check
      _
    $region47: #{tpu_custom_call.1} parent=1 // pred_check_branch
      %97 = sbr.rel (0) target = $region49
    $region48: #{tpu_custom_call.1} parent=1 // pred_region
      %s99 = ssub.s32 32, 32
      %100 = vsyncadd [#allocation12], %s99
      %s101 = sshll.u32 [#allocation11], 4
      %s102 = int_to_ptr.vmem [resolvable:$true] %s101
      %107 = dma.hbm_to_vmem [thread:$0]  %s11, 32, %s102, [#allocation12], 16, 16, 1
    $region49: #{tpu_custom_call.1} parent=1 // pred_fallthru
      _
    // Predicated region
    $region50: #{tpu_custom_call.1} parent=1 // pred_check
      _
    $region51: #{tpu_custom_call.1} parent=1 // pred_check_branch
      %109 = sbr.rel (0) target = $region53
    $region52: #{tpu_custom_call.1} parent=1 // pred_region
      _
    $region53: #{tpu_custom_call.1} parent=1 // pred_fallthru
      _
    // Predicated region
    $region54: #{tpu_custom_call.1} parent=1 // pred_check
      _
    $region55: #{tpu_custom_call.1} parent=1 // pred_check_branch
      %111 = sbr.rel (0) target = $region57
    $region56: #{tpu_custom_call.1} parent=1 // pred_region
      _
    $region57: #{tpu_custom_call.1} parent=1 // pred_fallthru
      _
    // Predicated region
    $region58: #{tpu_custom_call.1} parent=1 // pred_check
      _
    $region59: #{tpu_custom_call.1} parent=1 // pred_check_branch
      %113 = sbr.rel (0) target = $region61
    $region60: #{tpu_custom_call.1} parent=1 // pred_region
      _
    $region61: #{tpu_custom_call.1} parent=1 // pred_fallthru
      _
    // Predicated region
    $region62: #{tpu_custom_call.1} parent=1 // pred_check
      _
    $region63: #{tpu_custom_call.1} parent=1 // pred_check_branch
      %115 = sbr.rel (0) target = $region65
    $region64: #{tpu_custom_call.1} parent=1 // pred_region
      _
    $region65: #{tpu_custom_call.1} parent=1 // pred_fallthru
      _
    // Predicated region
    $region66: #{tpu_custom_call.1} parent=1 // pred_check
      _
    $region67: #{tpu_custom_call.1} parent=1 // pred_check_branch
      %117 = sbr.rel (0) target = $region69
    $region68: #{tpu_custom_call.1} parent=1 // pred_region
      %118 = dma.done [#allocation3], 128
    $region69: #{tpu_custom_call.1} parent=1 // pred_fallthru
      _
    // Predicated region
    $region70: #{tpu_custom_call.1} parent=1 // pred_check
      _
    $region71: #{tpu_custom_call.1} parent=1 // pred_check_branch
      %120 = sbr.rel (0) target = $region73
    $region72: #{tpu_custom_call.1} parent=1 // pred_region
      %121 = dma.done [#allocation6], 32
    $region73: #{tpu_custom_call.1} parent=1 // pred_fallthru
      _
    // Predicated region
    $region74: #{tpu_custom_call.1} parent=1 // pred_check
      _
    $region75: #{tpu_custom_call.1} parent=1 // pred_check_branch
      %123 = sbr.rel (0) target = $region77
    $region76: #{tpu_custom_call.1} parent=1 // pred_region
      %124 = dma.done [#allocation6], 32
    $region77: #{tpu_custom_call.1} parent=1 // pred_fallthru
      _
    // Predicated region
    $region78: #{tpu_custom_call.1} parent=1 // pred_check
      _
    $region79: #{tpu_custom_call.1} parent=1 // pred_check_branch
      %126 = sbr.rel (0) target = $region81
    $region80: #{tpu_custom_call.1} parent=1 // pred_region
      %127 = dma.done [#allocation9], 32
    $region81: #{tpu_custom_call.1} parent=1 // pred_fallthru
      _
    // Predicated region
    $region82: #{tpu_custom_call.1} parent=1 // pred_check
      _
    $region83: #{tpu_custom_call.1} parent=1 // pred_check_branch
      %129 = sbr.rel (0) target = $region85
    $region84: #{tpu_custom_call.1} parent=1 // pred_region
      %130 = dma.done [#allocation9], 32
    $region85: #{tpu_custom_call.1} parent=1 // pred_fallthru
      _
    // Predicated region
    $region86: #{tpu_custom_call.1} parent=1 // pred_check
      _
    $region87: #{tpu_custom_call.1} parent=1 // pred_check_branch
      %132 = sbr.rel (0) target = $region89
    $region88: #{tpu_custom_call.1} parent=1 // pred_region
      %133 = dma.done [#allocation12], 32
    $region89: #{tpu_custom_call.1} parent=1 // pred_fallthru
      _
    %v134 = vld [vmem:[%s0] sm:$0xff]
    %v135 = vld [vmem:[%s0 + $0x8] sm:$0xff]
    %v136 = vld [vmem:[%s1] sm:$0xf]
    %v137 = vld [vmem:[%s2] sm:$0x1]
    %v139 = vlaneseq
    %v140 = vshrl.u32 %v139, 7
    %v141 = vsub.s32 0, %v140
    %v142 = vrot.slane %v137, %v141
    %vm144 = vcmask 31744
    %v146 = vsel %vm144, %v134, 0
    %v149 = vsel %vm144, %v135, 0
    %vm151 = vcmask 1043456
    %v153 = vsel %vm151, %v136, 0
    %155 = vmatprep.subr.mxu0 0.0
    %156 = vmatpush1.msra.mxu0 %v153
    %157 = vmatprep.subr.mxu0 0.0
    %158 = vmatpush1.msra.mxu0 0.0
    %159 = vmatprep.subr.mxu0 0.0
    %160 = vmatpush1.msra.mxu0 0.0
    %161 = vmatprep.subr.mxu0 0.0
    %162 = vmatpush1.msra.mxu0 0.0
    %163 = vmatprep.subr.mxu0 0.0
    %164 = vmatpush1.msra.mxu0 0.0
    %165 = vmatprep.subr.mxu0 0.0
    %166 = vmatpush1.msra.mxu0 0.0
    %167 = vmatprep.subr.mxu0 0.0
    %168 = vmatpush1.msra.mxu0 0.0
    %169 = vmatprep.subr.mxu0 0.0
    %170 = vmatpush1.msra.mxu0 0.0
    %171 = vmatprep.subr.mxu0 0.0
    %172 = vmatpush1.msra.mxu0 0.0
    %173 = vmatprep.subr.mxu0 0.0
    %174 = vmatpush1.msra.mxu0 0.0
    %175 = vmatprep.subr.mxu0 0.0
    %176 = vmatpush1.msra.mxu0 0.0
    %177 = vmatprep.subr.mxu0 0.0
    %178 = vmatpush1.msra.mxu0 0.0
    %179 = vmatprep.subr.mxu0 0.0
    %180 = vmatpush1.msra.mxu0 0.0
    %181 = vmatprep.subr.mxu0 0.0
    %182 = vmatpush1.msra.mxu0 0.0
    %183 = vmatprep.subr.mxu0 0.0
    %184 = vmatpush1.msra.mxu0 0.0
    %185 = vmatprep.subr.mxu0 0.0
    %186 = vmatpush1.msra.mxu0 0.0
    %187 = vmatprep.subr.mxu0 0.0
    %188 = vmatpush1.msra.mxu0 0.0
    %189 = vmatprep.subr.mxu0 0.0
    %190 = vmatpush1.msra.mxu0 0.0
    %191 = vmatprep.subr.mxu0 0.0
    %192 = vmatpush1.msra.mxu0 0.0
    %193 = vmatprep.subr.mxu0 0.0
    %194 = vmatpush1.msra.mxu0 0.0
    %195 = vmatprep.subr.mxu0 0.0
    %196 = vmatpush1.msra.mxu0 0.0
    %197 = vmatprep.subr.mxu0 0.0
    %198 = vmatpush1.msra.mxu0 0.0
    %199 = vmatprep.subr.mxu0 0.0
    %200 = vmatpush1.msra.mxu0 0.0
    %201 = vmatprep.subr.mxu0 0.0
    %202 = vmatpush1.msra.mxu0 0.0
    %203 = vmatprep.subr.mxu0 0.0
    %204 = vmatpush1.msra.mxu0 0.0
    %205 = vmatprep.subr.mxu0 0.0
    %206 = vmatpush1.msra.mxu0 0.0
    %207 = vmatprep.subr.mxu0 0.0
    %208 = vmatpush1.msra.mxu0 0.0
    %209 = vmatprep.subr.mxu0 0.0
    %210 = vmatpush1.msra.mxu0 0.0
    %211 = vmatprep.subr.mxu0 0.0
    %212 = vmatpush1.msra.mxu0 0.0
    %213 = vmatprep.subr.mxu0 0.0
    %214 = vmatpush1.msra.mxu0 0.0
    %215 = vmatprep.subr.mxu0 0.0
    %216 = vmatpush1.msra.mxu0 0.0
    %217 = vmatprep.subr.mxu0 0.0
    %218 = vmatpush1.msra.mxu0 0.0
    %219 = vmatprep.mubr.f32.mxu0 0.0
    %220 = vmatmul.mubr.f32.gmra.mrb[0].mxu0 %v146
    %v221 = vpop.f32.mrb[0].mxu0
    %v222 = vadd.f32 %v142, %v221
    %v223 = vpop.f32.mrb[0].mxu0
    %224 = vmatprep.mubr.f32.mxu0 0.0
    %225 = vmatmul.mubr.f32.gmra.mrb[0].mxu0 %v149
    %v226 = vpop.f32.mrb[0].mxu0
    %v227 = vadd.f32 %v142, %v226
    %v228 = vpop.f32.mrb[0].mxu0
    %229 = vdwg.mxu0
    %v230 = vld [vmem:[#allocation2] sm:$0xff]
    %v231 = vadd.f32 %v222, %v230
    %v232 = vadd.f32 %v227, %v230
    %v233 = vld [vmem:[%s4] sm:$0xff]
    %v234 = vld [vmem:[%s4 + $0x8] sm:$0xff]
    %v235 = vld [vmem:[%s4 + $0x10] sm:$0xff]
    %v236 = vld [vmem:[%s4 + $0x18] sm:$0xff]
    %v237 = vld [vmem:[#allocation5] sm:$0x1]
    %v239 = vlaneseq
    %v240 = vshrl.u32 %v239, 7
    %v241 = vsub.s32 0, %v240
    %v242 = vrot.slane %v237, %v241
    %vm244 = vcmask 261120
    %v246 = vsel %vm244, %v231, 0
    %v249 = vsel %vm244, %v232, 0
    %251 = vmatprep.subr.mxu0 0.0
    %252 = vmatpush1.msra.mxu0 %v233
    %253 = vmatprep.subr.mxu0 0.0
    %254 = vmatpush1.msra.mxu0 %v234
    %255 = vmatprep.subr.mxu0 0.0
    %256 = vmatpush1.msra.mxu0 %v235
    %257 = vmatprep.subr.mxu0 0.0
    %258 = vmatpush1.msra.mxu0 %v236
    %259 = vmatprep.subr.mxu0 0.0
    %260 = vmatpush1.msra.mxu0 0.0
    %261 = vmatprep.subr.mxu0 0.0
    %262 = vmatpush1.msra.mxu0 0.0
    %263 = vmatprep.subr.mxu0 0.0
    %264 = vmatpush1.msra.mxu0 0.0
    %265 = vmatprep.subr.mxu0 0.0
    %266 = vmatpush1.msra.mxu0 0.0
    %267 = vmatprep.subr.mxu0 0.0
    %268 = vmatpush1.msra.mxu0 0.0
    %269 = vmatprep.subr.mxu0 0.0
    %270 = vmatpush1.msra.mxu0 0.0
    %271 = vmatprep.subr.mxu0 0.0
    %272 = vmatpush1.msra.mxu0 0.0
    %273 = vmatprep.subr.mxu0 0.0
    %274 = vmatpush1.msra.mxu0 0.0
    %275 = vmatprep.subr.mxu0 0.0
    %276 = vmatpush1.msra.mxu0 0.0
    %277 = vmatprep.subr.mxu0 0.0
    %278 = vmatpush1.msra.mxu0 0.0
    %279 = vmatprep.subr.mxu0 0.0
    %280 = vmatpush1.msra.mxu0 0.0
    %281 = vmatprep.subr.mxu0 0.0
    %282 = vmatpush1.msra.mxu0 0.0
    %283 = vmatprep.subr.mxu0 0.0
    %284 = vmatpush1.msra.mxu0 0.0
    %285 = vmatprep.subr.mxu0 0.0
    %286 = vmatpush1.msra.mxu0 0.0
    %287 = vmatprep.subr.mxu0 0.0
    %288 = vmatpush1.msra.mxu0 0.0
    %289 = vmatprep.subr.mxu0 0.0
    %290 = vmatpush1.msra.mxu0 0.0
    %291 = vmatprep.subr.mxu0 0.0
    %292 = vmatpush1.msra.mxu0 0.0
    %293 = vmatprep.subr.mxu0 0.0
    %294 = vmatpush1.msra.mxu0 0.0
    %295 = vmatprep.subr.mxu0 0.0
    %296 = vmatpush1.msra.mxu0 0.0
    %297 = vmatprep.subr.mxu0 0.0
    %298 = vmatpush1.msra.mxu0 0.0
    %299 = vmatprep.subr.mxu0 0.0
    %300 = vmatpush1.msra.mxu0 0.0
    %301 = vmatprep.subr.mxu0 0.0
    %302 = vmatpush1.msra.mxu0 0.0
    %303 = vmatprep.subr.mxu0 0.0
    %304 = vmatpush1.msra.mxu0 0.0
    %305 = vmatprep.subr.mxu0 0.0
    %306 = vmatpush1.msra.mxu0 0.0
    %307 = vmatprep.subr.mxu0 0.0
    %308 = vmatpush1.msra.mxu0 0.0
    %309 = vmatprep.subr.mxu0 0.0
    %310 = vmatpush1.msra.mxu0 0.0
    %311 = vmatprep.subr.mxu0 0.0
    %312 = vmatpush1.msra.mxu0 0.0
    %313 = vmatprep.subr.mxu0 0.0
    %314 = vmatpush1.msra.mxu0 0.0
    %315 = vmatprep.mubr.f32.mxu0 0.0
    %316 = vmatmul.mubr.f32.gmra.mrb[0].mxu0 %v246
    %v317 = vpop.f32.mrb[0].mxu0
    %v318 = vadd.f32 %v242, %v317
    %v319 = vpop.f32.mrb[0].mxu0
    %320 = vmatprep.mubr.f32.mxu0 0.0
    %321 = vmatmul.mubr.f32.gmra.mrb[0].mxu0 %v249
    %v322 = vpop.f32.mrb[0].mxu0
    %v323 = vadd.f32 %v242, %v322
    %v324 = vpop.f32.mrb[0].mxu0
    %325 = vdwg.mxu0
    %327 = vrot.lane.b32.xlu0 %v318, 96
    %v328 = vpop.permute.xlu0 %327
    %vm329 = vcmask 130048
    %v330 = vsel %vm329, %v318, 0
    %v332 = vsel %vm329, %v328, 0
    %334 = vmatprep.subr.mxu0 0.0
    %335 = vmatpush1.xpose.msra.mxu0 %v332
    %336 = vmatprep.subr.mxu0 0.0
    %337 = vmatpush1.xpose.msra.mxu0 0.0
    %338 = vmatprep.subr.mxu0 0.0
    %339 = vmatpush1.xpose.msra.mxu0 0.0
    %340 = vmatprep.subr.mxu0 0.0
    %341 = vmatpush1.xpose.msra.mxu0 0.0
    %342 = vmatprep.subr.mxu0 0.0
    %343 = vmatpush1.xpose.msra.mxu0 0.0
    %344 = vmatprep.subr.mxu0 0.0
    %345 = vmatpush1.xpose.msra.mxu0 0.0
    %346 = vmatprep.subr.mxu0 0.0
    %347 = vmatpush1.xpose.msra.mxu0 0.0
    %348 = vmatprep.subr.mxu0 0.0
    %349 = vmatpush1.xpose.msra.mxu0 0.0
    %350 = vmatprep.subr.mxu0 0.0
    %351 = vmatpush1.xpose.msra.mxu0 0.0
    %352 = vmatprep.subr.mxu0 0.0
    %353 = vmatpush1.xpose.msra.mxu0 0.0
    %354 = vmatprep.subr.mxu0 0.0
    %355 = vmatpush1.xpose.msra.mxu0 0.0
    %356 = vmatprep.subr.mxu0 0.0
    %357 = vmatpush1.xpose.msra.mxu0 0.0
    %358 = vmatprep.subr.mxu0 0.0
    %359 = vmatpush1.xpose.msra.mxu0 0.0
    %360 = vmatprep.subr.mxu0 0.0
    %361 = vmatpush1.xpose.msra.mxu0 0.0
    %362 = vmatprep.subr.mxu0 0.0
    %363 = vmatpush1.xpose.msra.mxu0 0.0
    %364 = vmatprep.subr.mxu0 0.0
    %365 = vmatpush1.xpose.msra.mxu0 0.0
    %366 = vmatprep.subr.mxu0 0.0
    %367 = vmatpush1.xpose.msra.mxu0 0.0
    %368 = vmatprep.subr.mxu0 0.0
    %369 = vmatpush1.xpose.msra.mxu0 0.0
    %370 = vmatprep.subr.mxu0 0.0
    %371 = vmatpush1.xpose.msra.mxu0 0.0
    %372 = vmatprep.subr.mxu0 0.0
    %373 = vmatpush1.xpose.msra.mxu0 0.0
    %374 = vmatprep.subr.mxu0 0.0
    %375 = vmatpush1.xpose.msra.mxu0 0.0
    %376 = vmatprep.subr.mxu0 0.0
    %377 = vmatpush1.xpose.msra.mxu0 0.0
    %378 = vmatprep.subr.mxu0 0.0
    %379 = vmatpush1.xpose.msra.mxu0 0.0
    %380 = vmatprep.subr.mxu0 0.0
    %381 = vmatpush1.xpose.msra.mxu0 0.0
    %382 = vmatprep.subr.mxu0 0.0
    %383 = vmatpush1.xpose.msra.mxu0 0.0
    %384 = vmatprep.subr.mxu0 0.0
    %385 = vmatpush1.xpose.msra.mxu0 0.0
    %386 = vmatprep.subr.mxu0 0.0
    %387 = vmatpush1.xpose.msra.mxu0 0.0
    %388 = vmatprep.subr.mxu0 0.0
    %389 = vmatpush1.xpose.msra.mxu0 0.0
    %390 = vmatprep.subr.mxu0 0.0
    %391 = vmatpush1.xpose.msra.mxu0 0.0
    %392 = vmatprep.subr.mxu0 0.0
    %393 = vmatpush1.xpose.msra.mxu0 0.0
    %394 = vmatprep.subr.mxu0 0.0
    %395 = vmatpush1.xpose.msra.mxu0 0.0
    %396 = vmatprep.subr.mxu0 0.0
    %397 = vmatpush1.xpose.msra.mxu0 0.0
    %398 = vmatprep.mubr.f32.mxu0 0.0
    %399 = vmatmul.mubr.f32.gmra.mrb[0].mxu0 %v330
    %v400 = vpop.f32.mrb[0].mxu0
    %v401 = vadd.f32 0.0, %v400
    %v402 = vpop.f32.mrb[0].mxu0
    %403 = vdwg.mxu0
    %405 = vrot.lane.b32.xlu0 %v323, 96
    %v406 = vpop.permute.xlu0 %405
    %v407 = vsel %vm329, %v323, 0
    %v409 = vsel %vm329, %v406, 0
    %411 = vmatprep.subr.mxu0 0.0
    %412 = vmatpush1.xpose.msra.mxu0 %v409
    %413 = vmatprep.subr.mxu0 0.0
    %414 = vmatpush1.xpose.msra.mxu0 0.0
    %415 = vmatprep.subr.mxu0 0.0
    %416 = vmatpush1.xpose.msra.mxu0 0.0
    %417 = vmatprep.subr.mxu0 0.0
    %418 = vmatpush1.xpose.msra.mxu0 0.0
    %419 = vmatprep.subr.mxu0 0.0
    %420 = vmatpush1.xpose.msra.mxu0 0.0
    %421 = vmatprep.subr.mxu0 0.0
    %422 = vmatpush1.xpose.msra.mxu0 0.0
    %423 = vmatprep.subr.mxu0 0.0
    %424 = vmatpush1.xpose.msra.mxu0 0.0
    %425 = vmatprep.subr.mxu0 0.0
    %426 = vmatpush1.xpose.msra.mxu0 0.0
    %427 = vmatprep.subr.mxu0 0.0
    %428 = vmatpush1.xpose.msra.mxu0 0.0
    %429 = vmatprep.subr.mxu0 0.0
    %430 = vmatpush1.xpose.msra.mxu0 0.0
    %431 = vmatprep.subr.mxu0 0.0
    %432 = vmatpush1.xpose.msra.mxu0 0.0
    %433 = vmatprep.subr.mxu0 0.0
    %434 = vmatpush1.xpose.msra.mxu0 0.0
    %435 = vmatprep.subr.mxu0 0.0
    %436 = vmatpush1.xpose.msra.mxu0 0.0
    %437 = vmatprep.subr.mxu0 0.0
    %438 = vmatpush1.xpose.msra.mxu0 0.0
    %439 = vmatprep.subr.mxu0 0.0
    %440 = vmatpush1.xpose.msra.mxu0 0.0
    %441 = vmatprep.subr.mxu0 0.0
    %442 = vmatpush1.xpose.msra.mxu0 0.0
    %443 = vmatprep.subr.mxu0 0.0
    %444 = vmatpush1.xpose.msra.mxu0 0.0
    %445 = vmatprep.subr.mxu0 0.0
    %446 = vmatpush1.xpose.msra.mxu0 0.0
    %447 = vmatprep.subr.mxu0 0.0
    %448 = vmatpush1.xpose.msra.mxu0 0.0
    %449 = vmatprep.subr.mxu0 0.0
    %450 = vmatpush1.xpose.msra.mxu0 0.0
    %451 = vmatprep.subr.mxu0 0.0
    %452 = vmatpush1.xpose.msra.mxu0 0.0
    %453 = vmatprep.subr.mxu0 0.0
    %454 = vmatpush1.xpose.msra.mxu0 0.0
    %455 = vmatprep.subr.mxu0 0.0
    %456 = vmatpush1.xpose.msra.mxu0 0.0
    %457 = vmatprep.subr.mxu0 0.0
    %458 = vmatpush1.xpose.msra.mxu0 0.0
    %459 = vmatprep.subr.mxu0 0.0
    %460 = vmatpush1.xpose.msra.mxu0 0.0
    %461 = vmatprep.subr.mxu0 0.0
    %462 = vmatpush1.xpose.msra.mxu0 0.0
    %463 = vmatprep.subr.mxu0 0.0
    %464 = vmatpush1.xpose.msra.mxu0 0.0
    %465 = vmatprep.subr.mxu0 0.0
    %466 = vmatpush1.xpose.msra.mxu0 0.0
    %467 = vmatprep.subr.mxu0 0.0
    %468 = vmatpush1.xpose.msra.mxu0 0.0
    %469 = vmatprep.subr.mxu0 0.0
    %470 = vmatpush1.xpose.msra.mxu0 0.0
    %471 = vmatprep.subr.mxu0 0.0
    %472 = vmatpush1.xpose.msra.mxu0 0.0
    %473 = vmatprep.subr.mxu0 0.0
    %474 = vmatpush1.xpose.msra.mxu0 0.0
    %475 = vmatprep.mubr.f32.mxu0 0.0
    %476 = vmatmul.mubr.f32.gmra.mrb[0].mxu0 %v407
    %v477 = vpop.f32.mrb[0].mxu0
    %v478 = vadd.f32 0.0, %v477
    %v479 = vpop.f32.mrb[0].mxu0
    %480 = vdwg.mxu0
    %v481 = vmul.f32 %v401, 0.25
    %v482 = vmul.f32 %v478, 0.25
    %vm483 = vcmask 64512
    %v484 = vsel %vm483, %v481, -inf
    %485 = vmax.xlane.f32.xlu0 %v484
    %v486 = vpop.xlane.xlu0 %485
    %v487 = vsel %vm483, %v482, -inf
    %488 = vmax.xlane.f32.xlu0 %v487
    %v489 = vpop.xlane.xlu0 %488
    %v490 = vsub.f32 %v481, %v486
    %v491 = vsub.f32 %v482, %v489
    %v492 = vmul.f32 %v490, 1.442695
    %v493 = vpow.pop %v492
    %v494 = vmul.f32 %v491, 1.442695
    %v495 = vpow.pop %v494
    %v496 = vsel %vm483, %v493, 0.0
    %497 = vadd.xlane.f32.xlu0 %v496
    %v498 = vpop.xlane.xlu0 %497
    %v499 = vsel %vm483, %v495, 0.0
    %500 = vadd.xlane.f32.xlu0 %v499
    %v501 = vpop.xlane.xlu0 %500
    %v502 = vrcp.pop %v498
    %v503 = vrcp.pop %v501
    %v504 = vmul.f32 %v493, %v502
    %v505 = vmul.f32 %v495, %v503
    %506 = vrot.lane.b32.xlu0 %v318, 64
    %v507 = vpop.permute.xlu0 %506
    %v510 = vsel %vm483, %v504, 0
    %512 = vmatprep.subr.mxu0 0.0
    %513 = vmatpush1.msra.mxu0 %v507
    %514 = vmatprep.subr.mxu0 0.0
    %515 = vmatpush1.msra.mxu0 0.0
    %516 = vmatprep.subr.mxu0 0.0
    %517 = vmatpush1.msra.mxu0 0.0
    %518 = vmatprep.subr.mxu0 0.0
    %519 = vmatpush1.msra.mxu0 0.0
    %520 = vmatprep.subr.mxu0 0.0
    %521 = vmatpush1.msra.mxu0 0.0
    %522 = vmatprep.subr.mxu0 0.0
    %523 = vmatpush1.msra.mxu0 0.0
    %524 = vmatprep.subr.mxu0 0.0
    %525 = vmatpush1.msra.mxu0 0.0
    %526 = vmatprep.subr.mxu0 0.0
    %527 = vmatpush1.msra.mxu0 0.0
    %528 = vmatprep.subr.mxu0 0.0
    %529 = vmatpush1.msra.mxu0 0.0
    %530 = vmatprep.subr.mxu0 0.0
    %531 = vmatpush1.msra.mxu0 0.0
    %532 = vmatprep.subr.mxu0 0.0
    %533 = vmatpush1.msra.mxu0 0.0
    %534 = vmatprep.subr.mxu0 0.0
    %535 = vmatpush1.msra.mxu0 0.0
    %536 = vmatprep.subr.mxu0 0.0
    %537 = vmatpush1.msra.mxu0 0.0
    %538 = vmatprep.subr.mxu0 0.0
    %539 = vmatpush1.msra.mxu0 0.0
    %540 = vmatprep.subr.mxu0 0.0
    %541 = vmatpush1.msra.mxu0 0.0
    %542 = vmatprep.subr.mxu0 0.0
    %543 = vmatpush1.msra.mxu0 0.0
    %544 = vmatprep.subr.mxu0 0.0
    %545 = vmatpush1.msra.mxu0 0.0
    %546 = vmatprep.subr.mxu0 0.0
    %547 = vmatpush1.msra.mxu0 0.0
    %548 = vmatprep.subr.mxu0 0.0
    %549 = vmatpush1.msra.mxu0 0.0
    %550 = vmatprep.subr.mxu0 0.0
    %551 = vmatpush1.msra.mxu0 0.0
    %552 = vmatprep.subr.mxu0 0.0
    %553 = vmatpush1.msra.mxu0 0.0
    %554 = vmatprep.subr.mxu0 0.0
    %555 = vmatpush1.msra.mxu0 0.0
    %556 = vmatprep.subr.mxu0 0.0
    %557 = vmatpush1.msra.mxu0 0.0
    %558 = vmatprep.subr.mxu0 0.0
    %559 = vmatpush1.msra.mxu0 0.0
    %560 = vmatprep.subr.mxu0 0.0
    %561 = vmatpush1.msra.mxu0 0.0
    %562 = vmatprep.subr.mxu0 0.0
    %563 = vmatpush1.msra.mxu0 0.0
    %564 = vmatprep.subr.mxu0 0.0
    %565 = vmatpush1.msra.mxu0 0.0
    %566 = vmatprep.subr.mxu0 0.0
    %567 = vmatpush1.msra.mxu0 0.0
    %568 = vmatprep.subr.mxu0 0.0
    %569 = vmatpush1.msra.mxu0 0.0
    %570 = vmatprep.subr.mxu0 0.0
    %571 = vmatpush1.msra.mxu0 0.0
    %572 = vmatprep.subr.mxu0 0.0
    %573 = vmatpush1.msra.mxu0 0.0
    %574 = vmatprep.subr.mxu0 0.0
    %575 = vmatpush1.msra.mxu0 0.0
    %576 = vmatprep.mubr.f32.mxu0 0.0
    %577 = vmatmul.mubr.f32.gmra.mrb[0].mxu0 %v510
    %v578 = vpop.f32.mrb[0].mxu0
    %v579 = vadd.f32 0.0, %v578
    %v580 = vpop.f32.mrb[0].mxu0
    %581 = vdwg.mxu0
    %582 = vrot.lane.b32.xlu0 %v323, 64
    %v583 = vpop.permute.xlu0 %582
    %v586 = vsel %vm483, %v505, 0
    %588 = vmatprep.subr.mxu0 0.0
    %589 = vmatpush1.msra.mxu0 %v583
    %590 = vmatprep.subr.mxu0 0.0
    %591 = vmatpush1.msra.mxu0 0.0
    %592 = vmatprep.subr.mxu0 0.0
    %593 = vmatpush1.msra.mxu0 0.0
    %594 = vmatprep.subr.mxu0 0.0
    %595 = vmatpush1.msra.mxu0 0.0
    %596 = vmatprep.subr.mxu0 0.0
    %597 = vmatpush1.msra.mxu0 0.0
    %598 = vmatprep.subr.mxu0 0.0
    %599 = vmatpush1.msra.mxu0 0.0
    %600 = vmatprep.subr.mxu0 0.0
    %601 = vmatpush1.msra.mxu0 0.0
    %602 = vmatprep.subr.mxu0 0.0
    %603 = vmatpush1.msra.mxu0 0.0
    %604 = vmatprep.subr.mxu0 0.0
    %605 = vmatpush1.msra.mxu0 0.0
    %606 = vmatprep.subr.mxu0 0.0
    %607 = vmatpush1.msra.mxu0 0.0
    %608 = vmatprep.subr.mxu0 0.0
    %609 = vmatpush1.msra.mxu0 0.0
    %610 = vmatprep.subr.mxu0 0.0
    %611 = vmatpush1.msra.mxu0 0.0
    %612 = vmatprep.subr.mxu0 0.0
    %613 = vmatpush1.msra.mxu0 0.0
    %614 = vmatprep.subr.mxu0 0.0
    %615 = vmatpush1.msra.mxu0 0.0
    %616 = vmatprep.subr.mxu0 0.0
    %617 = vmatpush1.msra.mxu0 0.0
    %618 = vmatprep.subr.mxu0 0.0
    %619 = vmatpush1.msra.mxu0 0.0
    %620 = vmatprep.subr.mxu0 0.0
    %621 = vmatpush1.msra.mxu0 0.0
    %622 = vmatprep.subr.mxu0 0.0
    %623 = vmatpush1.msra.mxu0 0.0
    %624 = vmatprep.subr.mxu0 0.0
    %625 = vmatpush1.msra.mxu0 0.0
    %626 = vmatprep.subr.mxu0 0.0
    %627 = vmatpush1.msra.mxu0 0.0
    %628 = vmatprep.subr.mxu0 0.0
    %629 = vmatpush1.msra.mxu0 0.0
    %630 = vmatprep.subr.mxu0 0.0
    %631 = vmatpush1.msra.mxu0 0.0
    %632 = vmatprep.subr.mxu0 0.0
    %633 = vmatpush1.msra.mxu0 0.0
    %634 = vmatprep.subr.mxu0 0.0
    %635 = vmatpush1.msra.mxu0 0.0
    %636 = vmatprep.subr.mxu0 0.0
    %637 = vmatpush1.msra.mxu0 0.0
    %638 = vmatprep.subr.mxu0 0.0
    %639 = vmatpush1.msra.mxu0 0.0
    %640 = vmatprep.subr.mxu0 0.0
    %641 = vmatpush1.msra.mxu0 0.0
    %642 = vmatprep.subr.mxu0 0.0
    %643 = vmatpush1.msra.mxu0 0.0
    %644 = vmatprep.subr.mxu0 0.0
    %645 = vmatpush1.msra.mxu0 0.0
    %646 = vmatprep.subr.mxu0 0.0
    %647 = vmatpush1.msra.mxu0 0.0
    %648 = vmatprep.subr.mxu0 0.0
    %649 = vmatpush1.msra.mxu0 0.0
    %650 = vmatprep.subr.mxu0 0.0
    %651 = vmatpush1.msra.mxu0 0.0
    %652 = vmatprep.mubr.f32.mxu0 0.0
    %653 = vmatmul.mubr.f32.gmra.mrb[0].mxu0 %v586
    %v654 = vpop.f32.mrb[0].mxu0
    %v655 = vadd.f32 0.0, %v654
    %v656 = vpop.f32.mrb[0].mxu0
    %657 = vdwg.mxu0
    %658 = vrot.lane.b32.xlu0 %v318, 112
    %v659 = vpop.permute.xlu0 %658
    %660 = vrot.lane.b32.xlu0 %v318, 80
    %v661 = vpop.permute.xlu0 %660
    %v662 = vsel %vm329, %v659, 0
    %v664 = vsel %vm329, %v661, 0
    %666 = vmatprep.subr.mxu0 0.0
    %667 = vmatpush1.xpose.msra.mxu0 %v664
    %668 = vmatprep.subr.mxu0 0.0
    %669 = vmatpush1.xpose.msra.mxu0 0.0
    %670 = vmatprep.subr.mxu0 0.0
    %671 = vmatpush1.xpose.msra.mxu0 0.0
    %672 = vmatprep.subr.mxu0 0.0
    %673 = vmatpush1.xpose.msra.mxu0 0.0
    %674 = vmatprep.subr.mxu0 0.0
    %675 = vmatpush1.xpose.msra.mxu0 0.0
    %676 = vmatprep.subr.mxu0 0.0
    %677 = vmatpush1.xpose.msra.mxu0 0.0
    %678 = vmatprep.subr.mxu0 0.0
    %679 = vmatpush1.xpose.msra.mxu0 0.0
    %680 = vmatprep.subr.mxu0 0.0
    %681 = vmatpush1.xpose.msra.mxu0 0.0
    %682 = vmatprep.subr.mxu0 0.0
    %683 = vmatpush1.xpose.msra.mxu0 0.0
    %684 = vmatprep.subr.mxu0 0.0
    %685 = vmatpush1.xpose.msra.mxu0 0.0
    %686 = vmatprep.subr.mxu0 0.0
    %687 = vmatpush1.xpose.msra.mxu0 0.0
    %688 = vmatprep.subr.mxu0 0.0
    %689 = vmatpush1.xpose.msra.mxu0 0.0
    %690 = vmatprep.subr.mxu0 0.0
    %691 = vmatpush1.xpose.msra.mxu0 0.0
    %692 = vmatprep.subr.mxu0 0.0
    %693 = vmatpush1.xpose.msra.mxu0 0.0
    %694 = vmatprep.subr.mxu0 0.0
    %695 = vmatpush1.xpose.msra.mxu0 0.0
    %696 = vmatprep.subr.mxu0 0.0
    %697 = vmatpush1.xpose.msra.mxu0 0.0
    %698 = vmatprep.subr.mxu0 0.0
    %699 = vmatpush1.xpose.msra.mxu0 0.0
    %700 = vmatprep.subr.mxu0 0.0
    %701 = vmatpush1.xpose.msra.mxu0 0.0
    %702 = vmatprep.subr.mxu0 0.0
    %703 = vmatpush1.xpose.msra.mxu0 0.0
    %704 = vmatprep.subr.mxu0 0.0
    %705 = vmatpush1.xpose.msra.mxu0 0.0
    %706 = vmatprep.subr.mxu0 0.0
    %707 = vmatpush1.xpose.msra.mxu0 0.0
    %708 = vmatprep.subr.mxu0 0.0
    %709 = vmatpush1.xpose.msra.mxu0 0.0
    %710 = vmatprep.subr.mxu0 0.0
    %711 = vmatpush1.xpose.msra.mxu0 0.0
    %712 = vmatprep.subr.mxu0 0.0
    %713 = vmatpush1.xpose.msra.mxu0 0.0
    %714 = vmatprep.subr.mxu0 0.0
    %715 = vmatpush1.xpose.msra.mxu0 0.0
    %716 = vmatprep.subr.mxu0 0.0
    %717 = vmatpush1.xpose.msra.mxu0 0.0
    %718 = vmatprep.subr.mxu0 0.0
    %719 = vmatpush1.xpose.msra.mxu0 0.0
    %720 = vmatprep.subr.mxu0 0.0
    %721 = vmatpush1.xpose.msra.mxu0 0.0
    %722 = vmatprep.subr.mxu0 0.0
    %723 = vmatpush1.xpose.msra.mxu0 0.0
    %724 = vmatprep.subr.mxu0 0.0
    %725 = vmatpush1.xpose.msra.mxu0 0.0
    %726 = vmatprep.subr.mxu0 0.0
    %727 = vmatpush1.xpose.msra.mxu0 0.0
    %728 = vmatprep.subr.mxu0 0.0
    %729 = vmatpush1.xpose.msra.mxu0 0.0
    %730 = vmatprep.mubr.f32.mxu0 0.0
    %731 = vmatmul.mubr.f32.gmra.mrb[0].mxu0 %v662
    %v732 = vpop.f32.mrb[0].mxu0
    %v733 = vadd.f32 0.0, %v732
    %v734 = vpop.f32.mrb[0].mxu0
    %735 = vdwg.mxu0
    %736 = vrot.lane.b32.xlu0 %v323, 112
    %v737 = vpop.permute.xlu0 %736
    %738 = vrot.lane.b32.xlu0 %v323, 80
    %v739 = vpop.permute.xlu0 %738
    %v740 = vsel %vm329, %v737, 0
    %v742 = vsel %vm329, %v739, 0
    %744 = vmatprep.subr.mxu0 0.0
    %745 = vmatpush1.xpose.msra.mxu0 %v742
    %746 = vmatprep.subr.mxu0 0.0
    %747 = vmatpush1.xpose.msra.mxu0 0.0
    %748 = vmatprep.subr.mxu0 0.0
    %749 = vmatpush1.xpose.msra.mxu0 0.0
    %750 = vmatprep.subr.mxu0 0.0
    %751 = vmatpush1.xpose.msra.mxu0 0.0
    %752 = vmatprep.subr.mxu0 0.0
    %753 = vmatpush1.xpose.msra.mxu0 0.0
    %754 = vmatprep.subr.mxu0 0.0
    %755 = vmatpush1.xpose.msra.mxu0 0.0
    %756 = vmatprep.subr.mxu0 0.0
    %757 = vmatpush1.xpose.msra.mxu0 0.0
    %758 = vmatprep.subr.mxu0 0.0
    %759 = vmatpush1.xpose.msra.mxu0 0.0
    %760 = vmatprep.subr.mxu0 0.0
    %761 = vmatpush1.xpose.msra.mxu0 0.0
    %762 = vmatprep.subr.mxu0 0.0
    %763 = vmatpush1.xpose.msra.mxu0 0.0
    %764 = vmatprep.subr.mxu0 0.0
    %765 = vmatpush1.xpose.msra.mxu0 0.0
    %766 = vmatprep.subr.mxu0 0.0
    %767 = vmatpush1.xpose.msra.mxu0 0.0
    %768 = vmatprep.subr.mxu0 0.0
    %769 = vmatpush1.xpose.msra.mxu0 0.0
    %770 = vmatprep.subr.mxu0 0.0
    %771 = vmatpush1.xpose.msra.mxu0 0.0
    %772 = vmatprep.subr.mxu0 0.0
    %773 = vmatpush1.xpose.msra.mxu0 0.0
    %774 = vmatprep.subr.mxu0 0.0
    %775 = vmatpush1.xpose.msra.mxu0 0.0
    %776 = vmatprep.subr.mxu0 0.0
    %777 = vmatpush1.xpose.msra.mxu0 0.0
    %778 = vmatprep.subr.mxu0 0.0
    %779 = vmatpush1.xpose.msra.mxu0 0.0
    %780 = vmatprep.subr.mxu0 0.0
    %781 = vmatpush1.xpose.msra.mxu0 0.0
    %782 = vmatprep.subr.mxu0 0.0
    %783 = vmatpush1.xpose.msra.mxu0 0.0
    %784 = vmatprep.subr.mxu0 0.0
    %785 = vmatpush1.xpose.msra.mxu0 0.0
    %786 = vmatprep.subr.mxu0 0.0
    %787 = vmatpush1.xpose.msra.mxu0 0.0
    %788 = vmatprep.subr.mxu0 0.0
    %789 = vmatpush1.xpose.msra.mxu0 0.0
    %790 = vmatprep.subr.mxu0 0.0
    %791 = vmatpush1.xpose.msra.mxu0 0.0
    %792 = vmatprep.subr.mxu0 0.0
    %793 = vmatpush1.xpose.msra.mxu0 0.0
    %794 = vmatprep.subr.mxu0 0.0
    %795 = vmatpush1.xpose.msra.mxu0 0.0
    %796 = vmatprep.subr.mxu0 0.0
    %797 = vmatpush1.xpose.msra.mxu0 0.0
    %798 = vmatprep.subr.mxu0 0.0
    %799 = vmatpush1.xpose.msra.mxu0 0.0
    %800 = vmatprep.subr.mxu0 0.0
    %801 = vmatpush1.xpose.msra.mxu0 0.0
    %802 = vmatprep.subr.mxu0 0.0
    %803 = vmatpush1.xpose.msra.mxu0 0.0
    %804 = vmatprep.subr.mxu0 0.0
    %805 = vmatpush1.xpose.msra.mxu0 0.0
    %806 = vmatprep.subr.mxu0 0.0
    %807 = vmatpush1.xpose.msra.mxu0 0.0
    %808 = vmatprep.mubr.f32.mxu0 0.0
    %809 = vmatmul.mubr.f32.gmra.mrb[0].mxu0 %v740
    %v810 = vpop.f32.mrb[0].mxu0
    %v811 = vadd.f32 0.0, %v810
    %v812 = vpop.f32.mrb[0].mxu0
    %813 = vdwg.mxu0
    %v814 = vmul.f32 %v733, 0.25
    %v815 = vmul.f32 %v811, 0.25
    %v816 = vsel %vm483, %v814, -inf
    %817 = vmax.xlane.f32.xlu0 %v816
    %v818 = vpop.xlane.xlu0 %817
    %v819 = vsel %vm483, %v815, -inf
    %820 = vmax.xlane.f32.xlu0 %v819
    %v821 = vpop.xlane.xlu0 %820
    %v822 = vsub.f32 %v814, %v818
    %v823 = vsub.f32 %v815, %v821
    %v824 = vmul.f32 %v822, 1.442695
    %v825 = vpow.pop %v824
    %v826 = vmul.f32 %v823, 1.442695
    %v827 = vpow.pop %v826
    %v828 = vsel %vm483, %v825, 0.0
    %829 = vadd.xlane.f32.xlu0 %v828
    %v830 = vpop.xlane.xlu0 %829
    %v831 = vsel %vm483, %v827, 0.0
    %832 = vadd.xlane.f32.xlu0 %v831
    %v833 = vpop.xlane.xlu0 %832
    %v834 = vrcp.pop %v830
    %v835 = vrcp.pop %v833
    %v836 = vmul.f32 %v825, %v834
    %v837 = vmul.f32 %v827, %v835
    %838 = vrot.lane.b32.xlu0 %v318, 48
    %v839 = vpop.permute.xlu0 %838
    %v842 = vsel %vm483, %v836, 0
    %844 = vmatprep.subr.mxu0 0.0
    %845 = vmatpush1.msra.mxu0 %v839
    %846 = vmatprep.subr.mxu0 0.0
    %847 = vmatpush1.msra.mxu0 0.0
    %848 = vmatprep.subr.mxu0 0.0
    %849 = vmatpush1.msra.mxu0 0.0
    %850 = vmatprep.subr.mxu0 0.0
    %851 = vmatpush1.msra.mxu0 0.0
    %852 = vmatprep.subr.mxu0 0.0
    %853 = vmatpush1.msra.mxu0 0.0
    %854 = vmatprep.subr.mxu0 0.0
    %855 = vmatpush1.msra.mxu0 0.0
    %856 = vmatprep.subr.mxu0 0.0
    %857 = vmatpush1.msra.mxu0 0.0
    %858 = vmatprep.subr.mxu0 0.0
    %859 = vmatpush1.msra.mxu0 0.0
    %860 = vmatprep.subr.mxu0 0.0
    %861 = vmatpush1.msra.mxu0 0.0
    %862 = vmatprep.subr.mxu0 0.0
    %863 = vmatpush1.msra.mxu0 0.0
    %864 = vmatprep.subr.mxu0 0.0
    %865 = vmatpush1.msra.mxu0 0.0
    %866 = vmatprep.subr.mxu0 0.0
    %867 = vmatpush1.msra.mxu0 0.0
    %868 = vmatprep.subr.mxu0 0.0
    %869 = vmatpush1.msra.mxu0 0.0
    %870 = vmatprep.subr.mxu0 0.0
    %871 = vmatpush1.msra.mxu0 0.0
    %872 = vmatprep.subr.mxu0 0.0
    %873 = vmatpush1.msra.mxu0 0.0
    %874 = vmatprep.subr.mxu0 0.0
    %875 = vmatpush1.msra.mxu0 0.0
    %876 = vmatprep.subr.mxu0 0.0
    %877 = vmatpush1.msra.mxu0 0.0
    %878 = vmatprep.subr.mxu0 0.0
    %879 = vmatpush1.msra.mxu0 0.0
    %880 = vmatprep.subr.mxu0 0.0
    %881 = vmatpush1.msra.mxu0 0.0
    %882 = vmatprep.subr.mxu0 0.0
    %883 = vmatpush1.msra.mxu0 0.0
    %884 = vmatprep.subr.mxu0 0.0
    %885 = vmatpush1.msra.mxu0 0.0
    %886 = vmatprep.subr.mxu0 0.0
    %887 = vmatpush1.msra.mxu0 0.0
    %888 = vmatprep.subr.mxu0 0.0
    %889 = vmatpush1.msra.mxu0 0.0
    %890 = vmatprep.subr.mxu0 0.0
    %891 = vmatpush1.msra.mxu0 0.0
    %892 = vmatprep.subr.mxu0 0.0
    %893 = vmatpush1.msra.mxu0 0.0
    %894 = vmatprep.subr.mxu0 0.0
    %895 = vmatpush1.msra.mxu0 0.0
    %896 = vmatprep.subr.mxu0 0.0
    %897 = vmatpush1.msra.mxu0 0.0
    %898 = vmatprep.subr.mxu0 0.0
    %899 = vmatpush1.msra.mxu0 0.0
    %900 = vmatprep.subr.mxu0 0.0
    %901 = vmatpush1.msra.mxu0 0.0
    %902 = vmatprep.subr.mxu0 0.0
    %903 = vmatpush1.msra.mxu0 0.0
    %904 = vmatprep.subr.mxu0 0.0
    %905 = vmatpush1.msra.mxu0 0.0
    %906 = vmatprep.subr.mxu0 0.0
    %907 = vmatpush1.msra.mxu0 0.0
    %908 = vmatprep.mubr.f32.mxu0 0.0
    %909 = vmatmul.mubr.f32.gmra.mrb[0].mxu0 %v842
    %v910 = vpop.f32.mrb[0].mxu0
    %v911 = vadd.f32 0.0, %v910
    %v912 = vpop.f32.mrb[0].mxu0
    %913 = vdwg.mxu0
    %914 = vrot.lane.b32.xlu0 %v323, 48
    %v915 = vpop.permute.xlu0 %914
    %v918 = vsel %vm483, %v837, 0
    %920 = vmatprep.subr.mxu0 0.0
    %921 = vmatpush1.msra.mxu0 %v915
    %922 = vmatprep.subr.mxu0 0.0
    %923 = vmatpush1.msra.mxu0 0.0
    %924 = vmatprep.subr.mxu0 0.0
    %925 = vmatpush1.msra.mxu0 0.0
    %926 = vmatprep.subr.mxu0 0.0
    %927 = vmatpush1.msra.mxu0 0.0
    %928 = vmatprep.subr.mxu0 0.0
    %929 = vmatpush1.msra.mxu0 0.0
    %930 = vmatprep.subr.mxu0 0.0
    %931 = vmatpush1.msra.mxu0 0.0
    %932 = vmatprep.subr.mxu0 0.0
    %933 = vmatpush1.msra.mxu0 0.0
    %934 = vmatprep.subr.mxu0 0.0
    %935 = vmatpush1.msra.mxu0 0.0
    %936 = vmatprep.subr.mxu0 0.0
    %937 = vmatpush1.msra.mxu0 0.0
    %938 = vmatprep.subr.mxu0 0.0
    %939 = vmatpush1.msra.mxu0 0.0
    %940 = vmatprep.subr.mxu0 0.0
    %941 = vmatpush1.msra.mxu0 0.0
    %942 = vmatprep.subr.mxu0 0.0
    %943 = vmatpush1.msra.mxu0 0.0
    %944 = vmatprep.subr.mxu0 0.0
    %945 = vmatpush1.msra.mxu0 0.0
    %946 = vmatprep.subr.mxu0 0.0
    %947 = vmatpush1.msra.mxu0 0.0
    %948 = vmatprep.subr.mxu0 0.0
    %949 = vmatpush1.msra.mxu0 0.0
    %950 = vmatprep.subr.mxu0 0.0
    %951 = vmatpush1.msra.mxu0 0.0
    %952 = vmatprep.subr.mxu0 0.0
    %953 = vmatpush1.msra.mxu0 0.0
    %954 = vmatprep.subr.mxu0 0.0
    %955 = vmatpush1.msra.mxu0 0.0
    %956 = vmatprep.subr.mxu0 0.0
    %957 = vmatpush1.msra.mxu0 0.0
    %958 = vmatprep.subr.mxu0 0.0
    %959 = vmatpush1.msra.mxu0 0.0
    %960 = vmatprep.subr.mxu0 0.0
    %961 = vmatpush1.msra.mxu0 0.0
    %962 = vmatprep.subr.mxu0 0.0
    %963 = vmatpush1.msra.mxu0 0.0
    %964 = vmatprep.subr.mxu0 0.0
    %965 = vmatpush1.msra.mxu0 0.0
    %966 = vmatprep.subr.mxu0 0.0
    %967 = vmatpush1.msra.mxu0 0.0
    %968 = vmatprep.subr.mxu0 0.0
    %969 = vmatpush1.msra.mxu0 0.0
    %970 = vmatprep.subr.mxu0 0.0
    %971 = vmatpush1.msra.mxu0 0.0
    %972 = vmatprep.subr.mxu0 0.0
    %973 = vmatpush1.msra.mxu0 0.0
    %974 = vmatprep.subr.mxu0 0.0
    %975 = vmatpush1.msra.mxu0 0.0
    %976 = vmatprep.subr.mxu0 0.0
    %977 = vmatpush1.msra.mxu0 0.0
    %978 = vmatprep.subr.mxu0 0.0
    %979 = vmatpush1.msra.mxu0 0.0
    %980 = vmatprep.subr.mxu0 0.0
    %981 = vmatpush1.msra.mxu0 0.0
    %982 = vmatprep.subr.mxu0 0.0
    %983 = vmatpush1.msra.mxu0 0.0
    %984 = vmatprep.mubr.f32.mxu0 0.0
    %985 = vmatmul.mubr.f32.gmra.mrb[0].mxu0 %v918
    %v986 = vpop.f32.mrb[0].mxu0
    %v987 = vadd.f32 0.0, %v986
    %v988 = vpop.f32.mrb[0].mxu0
    %989 = vdwg.mxu0
    %992 = vrot.lane.b32.xlu0 %v911, 16
    %v993 = vpop.permute.xlu0 %992
    %994 = vrot.lane.b32.xlu0 %v987, 16
    %v995 = vpop.permute.xlu0 %994
    %v998 = vsel %vm329, %v579, %v993
    %v999 = vsel %vm329, %v655, %v995
    %v1000 = vld [vmem:[%s6] sm:$0xff]
    %v1001 = vld [vmem:[%s6 + $0x8] sm:$0xff]
    %v1002 = vld [vmem:[%s6 + $0x10] sm:$0xff]
    %v1003 = vld [vmem:[%s6 + $0x18] sm:$0xff]
    %v1004 = vld [vmem:[#allocation7] sm:$0x1]
    %v1006 = vlaneseq
    %v1007 = vshrl.u32 %v1006, 7
    %v1008 = vsub.s32 0, %v1007
    %v1009 = vrot.slane %v1004, %v1008
    %v1012 = vsel %vm244, %v998, 0
    %v1015 = vsel %vm244, %v999, 0
    %1017 = vmatprep.subr.mxu0 0.0
    %1018 = vmatpush1.msra.mxu0 %v1000
    %1019 = vmatprep.subr.mxu0 0.0
    %1020 = vmatpush1.msra.mxu0 %v1001
    %1021 = vmatprep.subr.mxu0 0.0
    %1022 = vmatpush1.msra.mxu0 %v1002
    %1023 = vmatprep.subr.mxu0 0.0
    %1024 = vmatpush1.msra.mxu0 %v1003
    %1025 = vmatprep.subr.mxu0 0.0
    %1026 = vmatpush1.msra.mxu0 0.0
    %1027 = vmatprep.subr.mxu0 0.0
    %1028 = vmatpush1.msra.mxu0 0.0
    %1029 = vmatprep.subr.mxu0 0.0
    %1030 = vmatpush1.msra.mxu0 0.0
    %1031 = vmatprep.subr.mxu0 0.0
    %1032 = vmatpush1.msra.mxu0 0.0
    %1033 = vmatprep.subr.mxu0 0.0
    %1034 = vmatpush1.msra.mxu0 0.0
    %1035 = vmatprep.subr.mxu0 0.0
    %1036 = vmatpush1.msra.mxu0 0.0
    %1037 = vmatprep.subr.mxu0 0.0
    %1038 = vmatpush1.msra.mxu0 0.0
    %1039 = vmatprep.subr.mxu0 0.0
    %1040 = vmatpush1.msra.mxu0 0.0
    %1041 = vmatprep.subr.mxu0 0.0
    %1042 = vmatpush1.msra.mxu0 0.0
    %1043 = vmatprep.subr.mxu0 0.0
    %1044 = vmatpush1.msra.mxu0 0.0
    %1045 = vmatprep.subr.mxu0 0.0
    %1046 = vmatpush1.msra.mxu0 0.0
    %1047 = vmatprep.subr.mxu0 0.0
    %1048 = vmatpush1.msra.mxu0 0.0
    %1049 = vmatprep.subr.mxu0 0.0
    %1050 = vmatpush1.msra.mxu0 0.0
    %1051 = vmatprep.subr.mxu0 0.0
    %1052 = vmatpush1.msra.mxu0 0.0
    %1053 = vmatprep.subr.mxu0 0.0
    %1054 = vmatpush1.msra.mxu0 0.0
    %1055 = vmatprep.subr.mxu0 0.0
    %1056 = vmatpush1.msra.mxu0 0.0
    %1057 = vmatprep.subr.mxu0 0.0
    %1058 = vmatpush1.msra.mxu0 0.0
    %1059 = vmatprep.subr.mxu0 0.0
    %1060 = vmatpush1.msra.mxu0 0.0
    %1061 = vmatprep.subr.mxu0 0.0
    %1062 = vmatpush1.msra.mxu0 0.0
    %1063 = vmatprep.subr.mxu0 0.0
    %1064 = vmatpush1.msra.mxu0 0.0
    %1065 = vmatprep.subr.mxu0 0.0
    %1066 = vmatpush1.msra.mxu0 0.0
    %1067 = vmatprep.subr.mxu0 0.0
    %1068 = vmatpush1.msra.mxu0 0.0
    %1069 = vmatprep.subr.mxu0 0.0
    %1070 = vmatpush1.msra.mxu0 0.0
    %1071 = vmatprep.subr.mxu0 0.0
    %1072 = vmatpush1.msra.mxu0 0.0
    %1073 = vmatprep.subr.mxu0 0.0
    %1074 = vmatpush1.msra.mxu0 0.0
    %1075 = vmatprep.subr.mxu0 0.0
    %1076 = vmatpush1.msra.mxu0 0.0
    %1077 = vmatprep.subr.mxu0 0.0
    %1078 = vmatpush1.msra.mxu0 0.0
    %1079 = vmatprep.subr.mxu0 0.0
    %1080 = vmatpush1.msra.mxu0 0.0
    %1081 = vmatprep.mubr.f32.mxu0 0.0
    %1082 = vmatmul.mubr.f32.gmra.mrb[0].mxu0 %v1012
    %v1083 = vpop.f32.mrb[0].mxu0
    %v1084 = vadd.f32 %v1009, %v1083
    %v1085 = vpop.f32.mrb[0].mxu0
    %1086 = vmatprep.mubr.f32.mxu0 0.0
    %1087 = vmatmul.mubr.f32.gmra.mrb[0].mxu0 %v1015
    %v1088 = vpop.f32.mrb[0].mxu0
    %v1089 = vadd.f32 %v1009, %v1088
    %v1090 = vpop.f32.mrb[0].mxu0
    %1091 = vdwg.mxu0
    %v1092 = vadd.f32 %v231, %v1084
    %v1093 = vadd.f32 %v232, %v1089
    %v1094 = vld [vmem:[#allocation8] sm:$0x1]
    %v1095 = vld [vmem:[#allocation10] sm:$0x1]
    %v1096 = vsel %vm244, %v1092, 0.0
    %1097 = vadd.xlane.f32.xlu0 %v1096
    %v1098 = vpop.xlane.xlu0 %1097
    %v1099 = vsel %vm244, %v1093, 0.0
    %1100 = vadd.xlane.f32.xlu0 %v1099
    %v1101 = vpop.xlane.xlu0 %1100
    %v1102 = vrcp.pop 32.0
    %v1103 = vmul.f32 %v1098, %v1102
    %v1104 = vmul.f32 %v1101, %v1102
    %v1105 = vsub.f32 %v1092, %v1103
    %v1106 = vsub.f32 %v1093, %v1104
    %v1107 = vmul.f32 %v1105, %v1105
    %v1108 = vmul.f32 %v1106, %v1106
    %v1109 = vsel %vm244, %v1107, 0.0
    %1110 = vadd.xlane.f32.xlu0 %v1109
    %v1111 = vpop.xlane.xlu0 %1110
    %v1112 = vsel %vm244, %v1108, 0.0
    %1113 = vadd.xlane.f32.xlu0 %v1112
    %v1114 = vpop.xlane.xlu0 %1113
    %v1115 = vmul.f32 %v1111, %v1102
    %v1116 = vmul.f32 %v1114, %v1102
    %v1117 = vadd.f32 %v1115, 1e-12
    %v1118 = vadd.f32 %v1116, 1e-12
    %v1119 = vrsqrt.pop %v1117
    %v1120 = vrsqrt.pop %v1118
    %v1121 = vmul.f32 %v1105, %v1119
    %v1122 = vmul.f32 %v1106, %v1120
    %v1124 = vlaneseq
    %v1125 = vshrl.u32 %v1124, 7
    %v1126 = vsub.s32 0, %v1125
    %v1127 = vrot.slane %v1094, %v1126
    %v1129 = vmul.f32 %v1121, %v1127
    %v1130 = vmul.f32 %v1122, %v1127
    %v1132 = vlaneseq
    %v1133 = vshrl.u32 %v1132, 7
    %v1134 = vsub.s32 0, %v1133
    %v1135 = vrot.slane %v1095, %v1134
    %v1137 = vadd.f32 %v1129, %v1135
    %v1138 = vadd.f32 %v1130, %v1135
    %v1139 = vld [vmem:[%s10] sm:$0xff]
    %v1140 = vld [vmem:[%s10 + $0x8] sm:$0xff]
    %v1141 = vld [vmem:[%s10 + $0x10] sm:$0xff]
    %v1142 = vld [vmem:[%s10 + $0x18] sm:$0xff]
    %v1143 = vld [vmem:[#allocation11] sm:$0x1]
    %v1145 = vlaneseq
    %v1146 = vshrl.u32 %v1145, 7
    %v1147 = vsub.s32 0, %v1146
    %v1148 = vrot.slane %v1143, %v1147
    %v1151 = vsel %vm244, %v1137, 0
    %v1154 = vsel %vm244, %v1138, 0
    %1156 = vmatprep.subr.mxu0 0.0
    %1157 = vmatpush1.msra.mxu0 %v1139
    %1158 = vmatprep.subr.mxu0 0.0
    %1159 = vmatpush1.msra.mxu0 %v1140
    %1160 = vmatprep.subr.mxu0 0.0
    %1161 = vmatpush1.msra.mxu0 %v1141
    %1162 = vmatprep.subr.mxu0 0.0
    %1163 = vmatpush1.msra.mxu0 %v1142
    %1164 = vmatprep.subr.mxu0 0.0
    %1165 = vmatpush1.msra.mxu0 0.0
    %1166 = vmatprep.subr.mxu0 0.0
    %1167 = vmatpush1.msra.mxu0 0.0
    %1168 = vmatprep.subr.mxu0 0.0
    %1169 = vmatpush1.msra.mxu0 0.0
    %1170 = vmatprep.subr.mxu0 0.0
    %1171 = vmatpush1.msra.mxu0 0.0
    %1172 = vmatprep.subr.mxu0 0.0
    %1173 = vmatpush1.msra.mxu0 0.0
    %1174 = vmatprep.subr.mxu0 0.0
    %1175 = vmatpush1.msra.mxu0 0.0
    %1176 = vmatprep.subr.mxu0 0.0
    %1177 = vmatpush1.msra.mxu0 0.0
    %1178 = vmatprep.subr.mxu0 0.0
    %1179 = vmatpush1.msra.mxu0 0.0
    %1180 = vmatprep.subr.mxu0 0.0
    %1181 = vmatpush1.msra.mxu0 0.0
    %1182 = vmatprep.subr.mxu0 0.0
    %1183 = vmatpush1.msra.mxu0 0.0
    %1184 = vmatprep.subr.mxu0 0.0
    %1185 = vmatpush1.msra.mxu0 0.0
    %1186 = vmatprep.subr.mxu0 0.0
    %1187 = vmatpush1.msra.mxu0 0.0
    %1188 = vmatprep.subr.mxu0 0.0
    %1189 = vmatpush1.msra.mxu0 0.0
    %1190 = vmatprep.subr.mxu0 0.0
    %1191 = vmatpush1.msra.mxu0 0.0
    %1192 = vmatprep.subr.mxu0 0.0
    %1193 = vmatpush1.msra.mxu0 0.0
    %1194 = vmatprep.subr.mxu0 0.0
    %1195 = vmatpush1.msra.mxu0 0.0
    %1196 = vmatprep.subr.mxu0 0.0
    %1197 = vmatpush1.msra.mxu0 0.0
    %1198 = vmatprep.subr.mxu0 0.0
    %1199 = vmatpush1.msra.mxu0 0.0
    %1200 = vmatprep.subr.mxu0 0.0
    %1201 = vmatpush1.msra.mxu0 0.0
    %1202 = vmatprep.subr.mxu0 0.0
    %1203 = vmatpush1.msra.mxu0 0.0
    %1204 = vmatprep.subr.mxu0 0.0
    %1205 = vmatpush1.msra.mxu0 0.0
    %1206 = vmatprep.subr.mxu0 0.0
    %1207 = vmatpush1.msra.mxu0 0.0
    %1208 = vmatprep.subr.mxu0 0.0
    %1209 = vmatpush1.msra.mxu0 0.0
    %1210 = vmatprep.subr.mxu0 0.0
    %1211 = vmatpush1.msra.mxu0 0.0
    %1212 = vmatprep.subr.mxu0 0.0
    %1213 = vmatpush1.msra.mxu0 0.0
    %1214 = vmatprep.subr.mxu0 0.0
    %1215 = vmatpush1.msra.mxu0 0.0
    %1216 = vmatprep.subr.mxu0 0.0
    %1217 = vmatpush1.msra.mxu0 0.0
    %1218 = vmatprep.subr.mxu0 0.0
    %1219 = vmatpush1.msra.mxu0 0.0
    %1220 = vmatprep.mubr.f32.mxu0 0.0
    %1221 = vmatmul.mubr.f32.gmra.mrb[0].mxu0 %v1151
    %v1222 = vpop.f32.mrb[0].mxu0
    %v1223 = vadd.f32 %v1148, %v1222
    %v1224 = vpop.f32.mrb[0].mxu0
    %1225 = vmatprep.mubr.f32.mxu0 0.0
    %1226 = vmatmul.mubr.f32.gmra.mrb[0].mxu0 %v1154
    %v1227 = vpop.f32.mrb[0].mxu0
    %v1228 = vadd.f32 %v1148, %v1227
    %v1229 = vpop.f32.mrb[0].mxu0
    %1230 = vdwg.mxu0
    %v1231 = vmul.f32 %v1223, %v1223
    %v1232 = vmul.f32 %v1228, %v1228
    %v1233 = vmul.f32 %v1223, %v1231
    %v1234 = vmul.f32 %v1228, %v1232
    %v1235 = vmul.f32 %v1233, 0.044715
    %v1236 = vmul.f32 %v1234, 0.044715
    %v1237 = vadd.f32 %v1223, %v1235
    %v1238 = vadd.f32 %v1228, %v1236
    %v1239 = vmul.f32 %v1237, 0.7978846
    %v1240 = vmul.f32 %v1238, 0.7978846
    %v1241 = vtanh.pop %v1239
    %v1242 = vtanh.pop %v1240
    %v1243 = vadd.f32 %v1241, 1.0
    %v1244 = vadd.f32 %v1242, 1.0
    %v1245 = vmul.f32 %v1243, 0.5
    %v1246 = vmul.f32 %v1244, 0.5
    %v1247 = vmul.f32 %v1223, %v1245
    %v1248 = vmul.f32 %v1228, %v1246
    %v1249 = vld [vmem:[%s12] sm:$0xff]
    %v1250 = vld [vmem:[%s12 + $0x8] sm:$0xff]
    %v1251 = vld [vmem:[%s12 + $0x10] sm:$0xff]
    %v1252 = vld [vmem:[%s12 + $0x18] sm:$0xff]
    %v1253 = vld [vmem:[%s12 + $0x20] sm:$0xff]
    %v1254 = vld [vmem:[%s12 + $0x28] sm:$0xff]
    %v1255 = vld [vmem:[%s12 + $0x30] sm:$0xff]
    %v1256 = vld [vmem:[%s12 + $0x38] sm:$0xff]
    %v1257 = vld [vmem:[%s13] sm:$0x1]
    %v1259 = vlaneseq
    %v1260 = vshrl.u32 %v1259, 7
    %v1261 = vsub.s32 0, %v1260
    %v1262 = vrot.slane %v1257, %v1261
    %vm1264 = vcmask 523264
    %v1266 = vsel %vm1264, %v1247, 0
    %v1269 = vsel %vm1264, %v1248, 0
    %1271 = vmatprep.subr.mxu0 0.0
    %1272 = vmatpush1.msra.mxu0 %v1249
    %1273 = vmatprep.subr.mxu0 0.0
    %1274 = vmatpush1.msra.mxu0 %v1250
    %1275 = vmatprep.subr.mxu0 0.0
    %1276 = vmatpush1.msra.mxu0 %v1251
    %1277 = vmatprep.subr.mxu0 0.0
    %1278 = vmatpush1.msra.mxu0 %v1252
    %1279 = vmatprep.subr.mxu0 0.0
    %1280 = vmatpush1.msra.mxu0 %v1253
    %1281 = vmatprep.subr.mxu0 0.0
    %1282 = vmatpush1.msra.mxu0 %v1254
    %1283 = vmatprep.subr.mxu0 0.0
    %1284 = vmatpush1.msra.mxu0 %v1255
    %1285 = vmatprep.subr.mxu0 0.0
    %1286 = vmatpush1.msra.mxu0 %v1256
    %1287 = vmatprep.subr.mxu0 0.0
    %1288 = vmatpush1.msra.mxu0 0.0
    %1289 = vmatprep.subr.mxu0 0.0
    %1290 = vmatpush1.msra.mxu0 0.0
    %1291 = vmatprep.subr.mxu0 0.0
    %1292 = vmatpush1.msra.mxu0 0.0
    %1293 = vmatprep.subr.mxu0 0.0
    %1294 = vmatpush1.msra.mxu0 0.0
    %1295 = vmatprep.subr.mxu0 0.0
    %1296 = vmatpush1.msra.mxu0 0.0
    %1297 = vmatprep.subr.mxu0 0.0
    %1298 = vmatpush1.msra.mxu0 0.0
    %1299 = vmatprep.subr.mxu0 0.0
    %1300 = vmatpush1.msra.mxu0 0.0
    %1301 = vmatprep.subr.mxu0 0.0
    %1302 = vmatpush1.msra.mxu0 0.0
    %1303 = vmatprep.subr.mxu0 0.0
    %1304 = vmatpush1.msra.mxu0 0.0
    %1305 = vmatprep.subr.mxu0 0.0
    %1306 = vmatpush1.msra.mxu0 0.0
    %1307 = vmatprep.subr.mxu0 0.0
    %1308 = vmatpush1.msra.mxu0 0.0
    %1309 = vmatprep.subr.mxu0 0.0
    %1310 = vmatpush1.msra.mxu0 0.0
    %1311 = vmatprep.subr.mxu0 0.0
    %1312 = vmatpush1.msra.mxu0 0.0
    %1313 = vmatprep.subr.mxu0 0.0
    %1314 = vmatpush1.msra.mxu0 0.0
    %1315 = vmatprep.subr.mxu0 0.0
    %1316 = vmatpush1.msra.mxu0 0.0
    %1317 = vmatprep.subr.mxu0 0.0
    %1318 = vmatpush1.msra.mxu0 0.0
    %1319 = vmatprep.subr.mxu0 0.0
    %1320 = vmatpush1.msra.mxu0 0.0
    %1321 = vmatprep.subr.mxu0 0.0
    %1322 = vmatpush1.msra.mxu0 0.0
    %1323 = vmatprep.subr.mxu0 0.0
    %1324 = vmatpush1.msra.mxu0 0.0
    %1325 = vmatprep.subr.mxu0 0.0
    %1326 = vmatpush1.msra.mxu0 0.0
    %1327 = vmatprep.subr.mxu0 0.0
    %1328 = vmatpush1.msra.mxu0 0.0
    %1329 = vmatprep.subr.mxu0 0.0
    %1330 = vmatpush1.msra.mxu0 0.0
    %1331 = vmatprep.subr.mxu0 0.0
    %1332 = vmatpush1.msra.mxu0 0.0
    %1333 = vmatprep.subr.mxu0 0.0
    %1334 = vmatpush1.msra.mxu0 0.0
    %1335 = vmatprep.mubr.f32.mxu0 0.0
    %1336 = vmatmul.mubr.f32.gmra.mrb[0].mxu0 %v1266
    %v1337 = vpop.f32.mrb[0].mxu0
    %v1338 = vadd.f32 %v1262, %v1337
    %v1339 = vpop.f32.mrb[0].mxu0
    %1340 = vmatprep.mubr.f32.mxu0 0.0
    %1341 = vmatmul.mubr.f32.gmra.mrb[0].mxu0 %v1269
    %v1342 = vpop.f32.mrb[0].mxu0
    %v1343 = vadd.f32 %v1262, %v1342
    %v1344 = vpop.f32.mrb[0].mxu0
    %1345 = vdwg.mxu0
    %v1346 = vadd.f32 %v1137, %v1338
    %v1347 = vadd.f32 %v1138, %v1343
    %v1348 = vld [vmem:[%s14] sm:$0x1]
    %v1349 = vld [vmem:[%s15] sm:$0x1]
    %v1350 = vsel %vm244, %v1346, 0.0
    %1351 = vadd.xlane.f32.xlu0 %v1350
    %v1352 = vpop.xlane.xlu0 %1351
    %v1353 = vsel %vm244, %v1347, 0.0
    %1354 = vadd.xlane.f32.xlu0 %v1353
    %v1355 = vpop.xlane.xlu0 %1354
    %v1356 = vmul.f32 %v1352, %v1102
    %v1357 = vmul.f32 %v1355, %v1102
    %v1358 = vsub.f32 %v1346, %v1356
    %v1359 = vsub.f32 %v1347, %v1357
    %v1360 = vmul.f32 %v1358, %v1358
    %v1361 = vmul.f32 %v1359, %v1359
    %v1362 = vsel %vm244, %v1360, 0.0
    %1363 = vadd.xlane.f32.xlu0 %v1362
    %v1364 = vpop.xlane.xlu0 %1363
    %v1365 = vsel %vm244, %v1361, 0.0
    %1366 = vadd.xlane.f32.xlu0 %v1365
    %v1367 = vpop.xlane.xlu0 %1366
    %v1368 = vmul.f32 %v1364, %v1102
    %v1369 = vmul.f32 %v1367, %v1102
    %v1370 = vadd.f32 %v1368, 1e-12
    %v1371 = vadd.f32 %v1369, 1e-12
    %v1372 = vrsqrt.pop %v1370
    %v1373 = vrsqrt.pop %v1371
    %v1374 = vmul.f32 %v1358, %v1372
    %v1375 = vmul.f32 %v1359, %v1373
    %v1377 = vlaneseq
    %v1378 = vshrl.u32 %v1377, 7
    %v1379 = vsub.s32 0, %v1378
    %v1380 = vrot.slane %v1348, %v1379
    %v1382 = vmul.f32 %v1374, %v1380
    %v1383 = vmul.f32 %v1375, %v1380
    %v1385 = vlaneseq
    %v1386 = vshrl.u32 %v1385, 7
    %v1387 = vsub.s32 0, %v1386
    %v1388 = vrot.slane %v1349, %v1387
    %v1390 = vadd.f32 %v1382, %v1388
    %v1391 = vadd.f32 %v1383, %v1388
    %s1392 = scalar_lea.vmem %s4, 32
    %v1393 = vld [vmem:[%s1392] sm:$0xff]
    %v1394 = vld [vmem:[%s1392 + $0x8] sm:$0xff]
    %v1395 = vld [vmem:[%s1392 + $0x10] sm:$0xff]
    %v1396 = vld [vmem:[%s1392 + $0x18] sm:$0xff]
    %s1397 = scalar_lea.vmem [#allocation5], 1
    %v1398 = vld [vmem:[%s1397] sm:$0x1]
    %v1400 = vlaneseq
    %v1401 = vshrl.u32 %v1400, 7
    %v1402 = vsub.s32 0, %v1401
    %v1403 = vrot.slane %v1398, %v1402
    %v1406 = vsel %vm244, %v1390, 0
    %v1409 = vsel %vm244, %v1391, 0
    %1411 = vmatprep.subr.mxu0 0.0
    %1412 = vmatpush1.msra.mxu0 %v1393
    %1413 = vmatprep.subr.mxu0 0.0
    %1414 = vmatpush1.msra.mxu0 %v1394
    %1415 = vmatprep.subr.mxu0 0.0
    %1416 = vmatpush1.msra.mxu0 %v1395
    %1417 = vmatprep.subr.mxu0 0.0
    %1418 = vmatpush1.msra.mxu0 %v1396
    %1419 = vmatprep.subr.mxu0 0.0
    %1420 = vmatpush1.msra.mxu0 0.0
    %1421 = vmatprep.subr.mxu0 0.0
    %1422 = vmatpush1.msra.mxu0 0.0
    %1423 = vmatprep.subr.mxu0 0.0
    %1424 = vmatpush1.msra.mxu0 0.0
    %1425 = vmatprep.subr.mxu0 0.0
    %1426 = vmatpush1.msra.mxu0 0.0
    %1427 = vmatprep.subr.mxu0 0.0
    %1428 = vmatpush1.msra.mxu0 0.0
    %1429 = vmatprep.subr.mxu0 0.0
    %1430 = vmatpush1.msra.mxu0 0.0
    %1431 = vmatprep.subr.mxu0 0.0
    %1432 = vmatpush1.msra.mxu0 0.0
    %1433 = vmatprep.subr.mxu0 0.0
    %1434 = vmatpush1.msra.mxu0 0.0
    %1435 = vmatprep.subr.mxu0 0.0
    %1436 = vmatpush1.msra.mxu0 0.0
    %1437 = vmatprep.subr.mxu0 0.0
    %1438 = vmatpush1.msra.mxu0 0.0
    %1439 = vmatprep.subr.mxu0 0.0
    %1440 = vmatpush1.msra.mxu0 0.0
    %1441 = vmatprep.subr.mxu0 0.0
    %1442 = vmatpush1.msra.mxu0 0.0
    %1443 = vmatprep.subr.mxu0 0.0
    %1444 = vmatpush1.msra.mxu0 0.0
    %1445 = vmatprep.subr.mxu0 0.0
    %1446 = vmatpush1.msra.mxu0 0.0
    %1447 = vmatprep.subr.mxu0 0.0
    %1448 = vmatpush1.msra.mxu0 0.0
    %1449 = vmatprep.subr.mxu0 0.0
    %1450 = vmatpush1.msra.mxu0 0.0
    %1451 = vmatprep.subr.mxu0 0.0
    %1452 = vmatpush1.msra.mxu0 0.0
    %1453 = vmatprep.subr.mxu0 0.0
    %1454 = vmatpush1.msra.mxu0 0.0
    %1455 = vmatprep.subr.mxu0 0.0
    %1456 = vmatpush1.msra.mxu0 0.0
    %1457 = vmatprep.subr.mxu0 0.0
    %1458 = vmatpush1.msra.mxu0 0.0
    %1459 = vmatprep.subr.mxu0 0.0
    %1460 = vmatpush1.msra.mxu0 0.0
    %1461 = vmatprep.subr.mxu0 0.0
    %1462 = vmatpush1.msra.mxu0 0.0
    %1463 = vmatprep.subr.mxu0 0.0
    %1464 = vmatpush1.msra.mxu0 0.0
    %1465 = vmatprep.subr.mxu0 0.0
    %1466 = vmatpush1.msra.mxu0 0.0
    %1467 = vmatprep.subr.mxu0 0.0
    %1468 = vmatpush1.msra.mxu0 0.0
    %1469 = vmatprep.subr.mxu0 0.0
    %1470 = vmatpush1.msra.mxu0 0.0
    %1471 = vmatprep.subr.mxu0 0.0
    %1472 = vmatpush1.msra.mxu0 0.0
    %1473 = vmatprep.subr.mxu0 0.0
    %1474 = vmatpush1.msra.mxu0 0.0
    %1475 = vmatprep.mubr.f32.mxu0 0.0
    %1476 = vmatmul.mubr.f32.gmra.mrb[0].mxu0 %v1406
    %v1477 = vpop.f32.mrb[0].mxu0
    %v1478 = vadd.f32 %v1403, %v1477
    %v1479 = vpop.f32.mrb[0].mxu0
    %1480 = vmatprep.mubr.f32.mxu0 0.0
    %1481 = vmatmul.mubr.f32.gmra.mrb[0].mxu0 %v1409
    %v1482 = vpop.f32.mrb[0].mxu0
    %v1483 = vadd.f32 %v1403, %v1482
    %v1484 = vpop.f32.mrb[0].mxu0
    %1485 = vdwg.mxu0
    %1487 = vrot.lane.b32.xlu0 %v1478, 96
    %v1488 = vpop.permute.xlu0 %1487
    %v1489 = vsel %vm329, %v1478, 0
    %v1491 = vsel %vm329, %v1488, 0
    %1493 = vmatprep.subr.mxu0 0.0
    %1494 = vmatpush1.xpose.msra.mxu0 %v1491
    %1495 = vmatprep.subr.mxu0 0.0
    %1496 = vmatpush1.xpose.msra.mxu0 0.0
    %1497 = vmatprep.subr.mxu0 0.0
    %1498 = vmatpush1.xpose.msra.mxu0 0.0
    %1499 = vmatprep.subr.mxu0 0.0
    %1500 = vmatpush1.xpose.msra.mxu0 0.0
    %1501 = vmatprep.subr.mxu0 0.0
    %1502 = vmatpush1.xpose.msra.mxu0 0.0
    %1503 = vmatprep.subr.mxu0 0.0
    %1504 = vmatpush1.xpose.msra.mxu0 0.0
    %1505 = vmatprep.subr.mxu0 0.0
    %1506 = vmatpush1.xpose.msra.mxu0 0.0
    %1507 = vmatprep.subr.mxu0 0.0
    %1508 = vmatpush1.xpose.msra.mxu0 0.0
    %1509 = vmatprep.subr.mxu0 0.0
    %1510 = vmatpush1.xpose.msra.mxu0 0.0
    %1511 = vmatprep.subr.mxu0 0.0
    %1512 = vmatpush1.xpose.msra.mxu0 0.0
    %1513 = vmatprep.subr.mxu0 0.0
    %1514 = vmatpush1.xpose.msra.mxu0 0.0
    %1515 = vmatprep.subr.mxu0 0.0
    %1516 = vmatpush1.xpose.msra.mxu0 0.0
    %1517 = vmatprep.subr.mxu0 0.0
    %1518 = vmatpush1.xpose.msra.mxu0 0.0
    %1519 = vmatprep.subr.mxu0 0.0
    %1520 = vmatpush1.xpose.msra.mxu0 0.0
    %1521 = vmatprep.subr.mxu0 0.0
    %1522 = vmatpush1.xpose.msra.mxu0 0.0
    %1523 = vmatprep.subr.mxu0 0.0
    %1524 = vmatpush1.xpose.msra.mxu0 0.0
    %1525 = vmatprep.subr.mxu0 0.0
    %1526 = vmatpush1.xpose.msra.mxu0 0.0
    %1527 = vmatprep.subr.mxu0 0.0
    %1528 = vmatpush1.xpose.msra.mxu0 0.0
    %1529 = vmatprep.subr.mxu0 0.0
    %1530 = vmatpush1.xpose.msra.mxu0 0.0
    %1531 = vmatprep.subr.mxu0 0.0
    %1532 = vmatpush1.xpose.msra.mxu0 0.0
    %1533 = vmatprep.subr.mxu0 0.0
    %1534 = vmatpush1.xpose.msra.mxu0 0.0
    %1535 = vmatprep.subr.mxu0 0.0
    %1536 = vmatpush1.xpose.msra.mxu0 0.0
    %1537 = vmatprep.subr.mxu0 0.0
    %1538 = vmatpush1.xpose.msra.mxu0 0.0
    %1539 = vmatprep.subr.mxu0 0.0
    %1540 = vmatpush1.xpose.msra.mxu0 0.0
    %1541 = vmatprep.subr.mxu0 0.0
    %1542 = vmatpush1.xpose.msra.mxu0 0.0
    %1543 = vmatprep.subr.mxu0 0.0
    %1544 = vmatpush1.xpose.msra.mxu0 0.0
    %1545 = vmatprep.subr.mxu0 0.0
    %1546 = vmatpush1.xpose.msra.mxu0 0.0
    %1547 = vmatprep.subr.mxu0 0.0
    %1548 = vmatpush1.xpose.msra.mxu0 0.0
    %1549 = vmatprep.subr.mxu0 0.0
    %1550 = vmatpush1.xpose.msra.mxu0 0.0
    %1551 = vmatprep.subr.mxu0 0.0
    %1552 = vmatpush1.xpose.msra.mxu0 0.0
    %1553 = vmatprep.subr.mxu0 0.0
    %1554 = vmatpush1.xpose.msra.mxu0 0.0
    %1555 = vmatprep.subr.mxu0 0.0
    %1556 = vmatpush1.xpose.msra.mxu0 0.0
    %1557 = vmatprep.mubr.f32.mxu0 0.0
    %1558 = vmatmul.mubr.f32.gmra.mrb[0].mxu0 %v1489
    %v1559 = vpop.f32.mrb[0].mxu0
    %v1560 = vadd.f32 0.0, %v1559
    %v1561 = vpop.f32.mrb[0].mxu0
    %1562 = vdwg.mxu0
    %1564 = vrot.lane.b32.xlu0 %v1483, 96
    %v1565 = vpop.permute.xlu0 %1564
    %v1566 = vsel %vm329, %v1483, 0
    %v1568 = vsel %vm329, %v1565, 0
    %1570 = vmatprep.subr.mxu0 0.0
    %1571 = vmatpush1.xpose.msra.mxu0 %v1568
    %1572 = vmatprep.subr.mxu0 0.0
    %1573 = vmatpush1.xpose.msra.mxu0 0.0
    %1574 = vmatprep.subr.mxu0 0.0
    %1575 = vmatpush1.xpose.msra.mxu0 0.0
    %1576 = vmatprep.subr.mxu0 0.0
    %1577 = vmatpush1.xpose.msra.mxu0 0.0
    %1578 = vmatprep.subr.mxu0 0.0
    %1579 = vmatpush1.xpose.msra.mxu0 0.0
    %1580 = vmatprep.subr.mxu0 0.0
    %1581 = vmatpush1.xpose.msra.mxu0 0.0
    %1582 = vmatprep.subr.mxu0 0.0
    %1583 = vmatpush1.xpose.msra.mxu0 0.0
    %1584 = vmatprep.subr.mxu0 0.0
    %1585 = vmatpush1.xpose.msra.mxu0 0.0
    %1586 = vmatprep.subr.mxu0 0.0
    %1587 = vmatpush1.xpose.msra.mxu0 0.0
    %1588 = vmatprep.subr.mxu0 0.0
    %1589 = vmatpush1.xpose.msra.mxu0 0.0
    %1590 = vmatprep.subr.mxu0 0.0
    %1591 = vmatpush1.xpose.msra.mxu0 0.0
    %1592 = vmatprep.subr.mxu0 0.0
    %1593 = vmatpush1.xpose.msra.mxu0 0.0
    %1594 = vmatprep.subr.mxu0 0.0
    %1595 = vmatpush1.xpose.msra.mxu0 0.0
    %1596 = vmatprep.subr.mxu0 0.0
    %1597 = vmatpush1.xpose.msra.mxu0 0.0
    %1598 = vmatprep.subr.mxu0 0.0
    %1599 = vmatpush1.xpose.msra.mxu0 0.0
    %1600 = vmatprep.subr.mxu0 0.0
    %1601 = vmatpush1.xpose.msra.mxu0 0.0
    %1602 = vmatprep.subr.mxu0 0.0
    %1603 = vmatpush1.xpose.msra.mxu0 0.0
    %1604 = vmatprep.subr.mxu0 0.0
    %1605 = vmatpush1.xpose.msra.mxu0 0.0
    %1606 = vmatprep.subr.mxu0 0.0
    %1607 = vmatpush1.xpose.msra.mxu0 0.0
    %1608 = vmatprep.subr.mxu0 0.0
    %1609 = vmatpush1.xpose.msra.mxu0 0.0
    %1610 = vmatprep.subr.mxu0 0.0
    %1611 = vmatpush1.xpose.msra.mxu0 0.0
    %1612 = vmatprep.subr.mxu0 0.0
    %1613 = vmatpush1.xpose.msra.mxu0 0.0
    %1614 = vmatprep.subr.mxu0 0.0
    %1615 = vmatpush1.xpose.msra.mxu0 0.0
    %1616 = vmatprep.subr.mxu0 0.0
    %1617 = vmatpush1.xpose.msra.mxu0 0.0
    %1618 = vmatprep.subr.mxu0 0.0
    %1619 = vmatpush1.xpose.msra.mxu0 0.0
    %1620 = vmatprep.subr.mxu0 0.0
    %1621 = vmatpush1.xpose.msra.mxu0 0.0
    %1622 = vmatprep.subr.mxu0 0.0
    %1623 = vmatpush1.xpose.msra.mxu0 0.0
    %1624 = vmatprep.subr.mxu0 0.0
    %1625 = vmatpush1.xpose.msra.mxu0 0.0
    %1626 = vmatprep.subr.mxu0 0.0
    %1627 = vmatpush1.xpose.msra.mxu0 0.0
    %1628 = vmatprep.subr.mxu0 0.0
    %1629 = vmatpush1.xpose.msra.mxu0 0.0
    %1630 = vmatprep.subr.mxu0 0.0
    %1631 = vmatpush1.xpose.msra.mxu0 0.0
    %1632 = vmatprep.subr.mxu0 0.0
    %1633 = vmatpush1.xpose.msra.mxu0 0.0
    %1634 = vmatprep.mubr.f32.mxu0 0.0
    %1635 = vmatmul.mubr.f32.gmra.mrb[0].mxu0 %v1566
    %v1636 = vpop.f32.mrb[0].mxu0
    %v1637 = vadd.f32 0.0, %v1636
    %v1638 = vpop.f32.mrb[0].mxu0
    %1639 = vdwg.mxu0
    %v1640 = vmul.f32 %v1560, 0.25
    %v1641 = vmul.f32 %v1637, 0.25
    %v1642 = vsel %vm483, %v1640, -inf
    %1643 = vmax.xlane.f32.xlu0 %v1642
    %v1644 = vpop.xlane.xlu0 %1643
    %v1645 = vsel %vm483, %v1641, -inf
    %1646 = vmax.xlane.f32.xlu0 %v1645
    %v1647 = vpop.xlane.xlu0 %1646
    %v1648 = vsub.f32 %v1640, %v1644
    %v1649 = vsub.f32 %v1641, %v1647
    %v1650 = vmul.f32 %v1648, 1.442695
    %v1651 = vpow.pop %v1650
    %v1652 = vmul.f32 %v1649, 1.442695
    %v1653 = vpow.pop %v1652
    %v1654 = vsel %vm483, %v1651, 0.0
    %1655 = vadd.xlane.f32.xlu0 %v1654
    %v1656 = vpop.xlane.xlu0 %1655
    %v1657 = vsel %vm483, %v1653, 0.0
    %1658 = vadd.xlane.f32.xlu0 %v1657
    %v1659 = vpop.xlane.xlu0 %1658
    %v1660 = vrcp.pop %v1656
    %v1661 = vrcp.pop %v1659
    %v1662 = vmul.f32 %v1651, %v1660
    %v1663 = vmul.f32 %v1653, %v1661
    %1664 = vrot.lane.b32.xlu0 %v1478, 64
    %v1665 = vpop.permute.xlu0 %1664
    %v1668 = vsel %vm483, %v1662, 0
    %1670 = vmatprep.subr.mxu0 0.0
    %1671 = vmatpush1.msra.mxu0 %v1665
    %1672 = vmatprep.subr.mxu0 0.0
    %1673 = vmatpush1.msra.mxu0 0.0
    %1674 = vmatprep.subr.mxu0 0.0
    %1675 = vmatpush1.msra.mxu0 0.0
    %1676 = vmatprep.subr.mxu0 0.0
    %1677 = vmatpush1.msra.mxu0 0.0
    %1678 = vmatprep.subr.mxu0 0.0
    %1679 = vmatpush1.msra.mxu0 0.0
    %1680 = vmatprep.subr.mxu0 0.0
    %1681 = vmatpush1.msra.mxu0 0.0
    %1682 = vmatprep.subr.mxu0 0.0
    %1683 = vmatpush1.msra.mxu0 0.0
    %1684 = vmatprep.subr.mxu0 0.0
    %1685 = vmatpush1.msra.mxu0 0.0
    %1686 = vmatprep.subr.mxu0 0.0
    %1687 = vmatpush1.msra.mxu0 0.0
    %1688 = vmatprep.subr.mxu0 0.0
    %1689 = vmatpush1.msra.mxu0 0.0
    %1690 = vmatprep.subr.mxu0 0.0
    %1691 = vmatpush1.msra.mxu0 0.0
    %1692 = vmatprep.subr.mxu0 0.0
    %1693 = vmatpush1.msra.mxu0 0.0
    %1694 = vmatprep.subr.mxu0 0.0
    %1695 = vmatpush1.msra.mxu0 0.0
    %1696 = vmatprep.subr.mxu0 0.0
    %1697 = vmatpush1.msra.mxu0 0.0
    %1698 = vmatprep.subr.mxu0 0.0
    %1699 = vmatpush1.msra.mxu0 0.0
    %1700 = vmatprep.subr.mxu0 0.0
    %1701 = vmatpush1.msra.mxu0 0.0
    %1702 = vmatprep.subr.mxu0 0.0
    %1703 = vmatpush1.msra.mxu0 0.0
    %1704 = vmatprep.subr.mxu0 0.0
    %1705 = vmatpush1.msra.mxu0 0.0
    %1706 = vmatprep.subr.mxu0 0.0
    %1707 = vmatpush1.msra.mxu0 0.0
    %1708 = vmatprep.subr.mxu0 0.0
    %1709 = vmatpush1.msra.mxu0 0.0
    %1710 = vmatprep.subr.mxu0 0.0
    %1711 = vmatpush1.msra.mxu0 0.0
    %1712 = vmatprep.subr.mxu0 0.0
    %1713 = vmatpush1.msra.mxu0 0.0
    %1714 = vmatprep.subr.mxu0 0.0
    %1715 = vmatpush1.msra.mxu0 0.0
    %1716 = vmatprep.subr.mxu0 0.0
    %1717 = vmatpush1.msra.mxu0 0.0
    %1718 = vmatprep.subr.mxu0 0.0
    %1719 = vmatpush1.msra.mxu0 0.0
    %1720 = vmatprep.subr.mxu0 0.0
    %1721 = vmatpush1.msra.mxu0 0.0
    %1722 = vmatprep.subr.mxu0 0.0
    %1723 = vmatpush1.msra.mxu0 0.0
    %1724 = vmatprep.subr.mxu0 0.0
    %1725 = vmatpush1.msra.mxu0 0.0
    %1726 = vmatprep.subr.mxu0 0.0
    %1727 = vmatpush1.msra.mxu0 0.0
    %1728 = vmatprep.subr.mxu0 0.0
    %1729 = vmatpush1.msra.mxu0 0.0
    %1730 = vmatprep.subr.mxu0 0.0
    %1731 = vmatpush1.msra.mxu0 0.0
    %1732 = vmatprep.subr.mxu0 0.0
    %1733 = vmatpush1.msra.mxu0 0.0
    %1734 = vmatprep.mubr.f32.mxu0 0.0
    %1735 = vmatmul.mubr.f32.gmra.mrb[0].mxu0 %v1668
    %v1736 = vpop.f32.mrb[0].mxu0
    %v1737 = vadd.f32 0.0, %v1736
    %v1738 = vpop.f32.mrb[0].mxu0
    %1739 = vdwg.mxu0
    %1740 = vrot.lane.b32.xlu0 %v1483, 64
    %v1741 = vpop.permute.xlu0 %1740
    %v1744 = vsel %vm483, %v1663, 0
    %1746 = vmatprep.subr.mxu0 0.0
    %1747 = vmatpush1.msra.mxu0 %v1741
    %1748 = vmatprep.subr.mxu0 0.0
    %1749 = vmatpush1.msra.mxu0 0.0
    %1750 = vmatprep.subr.mxu0 0.0
    %1751 = vmatpush1.msra.mxu0 0.0
    %1752 = vmatprep.subr.mxu0 0.0
    %1753 = vmatpush1.msra.mxu0 0.0
    %1754 = vmatprep.subr.mxu0 0.0
    %1755 = vmatpush1.msra.mxu0 0.0
    %1756 = vmatprep.subr.mxu0 0.0
    %1757 = vmatpush1.msra.mxu0 0.0
    %1758 = vmatprep.subr.mxu0 0.0
    %1759 = vmatpush1.msra.mxu0 0.0
    %1760 = vmatprep.subr.mxu0 0.0
    %1761 = vmatpush1.msra.mxu0 0.0
    %1762 = vmatprep.subr.mxu0 0.0
    %1763 = vmatpush1.msra.mxu0 0.0
    %1764 = vmatprep.subr.mxu0 0.0
    %1765 = vmatpush1.msra.mxu0 0.0
    %1766 = vmatprep.subr.mxu0 0.0
    %1767 = vmatpush1.msra.mxu0 0.0
    %1768 = vmatprep.subr.mxu0 0.0
    %1769 = vmatpush1.msra.mxu0 0.0
    %1770 = vmatprep.subr.mxu0 0.0
    %1771 = vmatpush1.msra.mxu0 0.0
    %1772 = vmatprep.subr.mxu0 0.0
    %1773 = vmatpush1.msra.mxu0 0.0
    %1774 = vmatprep.subr.mxu0 0.0
    %1775 = vmatpush1.msra.mxu0 0.0
    %1776 = vmatprep.subr.mxu0 0.0
    %1777 = vmatpush1.msra.mxu0 0.0
    %1778 = vmatprep.subr.mxu0 0.0
    %1779 = vmatpush1.msra.mxu0 0.0
    %1780 = vmatprep.subr.mxu0 0.0
    %1781 = vmatpush1.msra.mxu0 0.0
    %1782 = vmatprep.subr.mxu0 0.0
    %1783 = vmatpush1.msra.mxu0 0.0
    %1784 = vmatprep.subr.mxu0 0.0
    %1785 = vmatpush1.msra.mxu0 0.0
    %1786 = vmatprep.subr.mxu0 0.0
    %1787 = vmatpush1.msra.mxu0 0.0
    %1788 = vmatprep.subr.mxu0 0.0
    %1789 = vmatpush1.msra.mxu0 0.0
    %1790 = vmatprep.subr.mxu0 0.0
    %1791 = vmatpush1.msra.mxu0 0.0
    %1792 = vmatprep.subr.mxu0 0.0
    %1793 = vmatpush1.msra.mxu0 0.0
    %1794 = vmatprep.subr.mxu0 0.0
    %1795 = vmatpush1.msra.mxu0 0.0
    %1796 = vmatprep.subr.mxu0 0.0
    %1797 = vmatpush1.msra.mxu0 0.0
    %1798 = vmatprep.subr.mxu0 0.0
    %1799 = vmatpush1.msra.mxu0 0.0
    %1800 = vmatprep.subr.mxu0 0.0
    %1801 = vmatpush1.msra.mxu0 0.0
    %1802 = vmatprep.subr.mxu0 0.0
    %1803 = vmatpush1.msra.mxu0 0.0
    %1804 = vmatprep.subr.mxu0 0.0
    %1805 = vmatpush1.msra.mxu0 0.0
    %1806 = vmatprep.subr.mxu0 0.0
    %1807 = vmatpush1.msra.mxu0 0.0
    %1808 = vmatprep.subr.mxu0 0.0
    %1809 = vmatpush1.msra.mxu0 0.0
    %1810 = vmatprep.mubr.f32.mxu0 0.0
    %1811 = vmatmul.mubr.f32.gmra.mrb[0].mxu0 %v1744
    %v1812 = vpop.f32.mrb[0].mxu0
    %v1813 = vadd.f32 0.0, %v1812
    %v1814 = vpop.f32.mrb[0].mxu0
    %1815 = vdwg.mxu0
    %1816 = vrot.lane.b32.xlu0 %v1478, 112
    %v1817 = vpop.permute.xlu0 %1816
    %1818 = vrot.lane.b32.xlu0 %v1478, 80
    %v1819 = vpop.permute.xlu0 %1818
    %v1820 = vsel %vm329, %v1817, 0
    %v1822 = vsel %vm329, %v1819, 0
    %1824 = vmatprep.subr.mxu0 0.0
    %1825 = vmatpush1.xpose.msra.mxu0 %v1822
    %1826 = vmatprep.subr.mxu0 0.0
    %1827 = vmatpush1.xpose.msra.mxu0 0.0
    %1828 = vmatprep.subr.mxu0 0.0
    %1829 = vmatpush1.xpose.msra.mxu0 0.0
    %1830 = vmatprep.subr.mxu0 0.0
    %1831 = vmatpush1.xpose.msra.mxu0 0.0
    %1832 = vmatprep.subr.mxu0 0.0
    %1833 = vmatpush1.xpose.msra.mxu0 0.0
    %1834 = vmatprep.subr.mxu0 0.0
    %1835 = vmatpush1.xpose.msra.mxu0 0.0
    %1836 = vmatprep.subr.mxu0 0.0
    %1837 = vmatpush1.xpose.msra.mxu0 0.0
    %1838 = vmatprep.subr.mxu0 0.0
    %1839 = vmatpush1.xpose.msra.mxu0 0.0
    %1840 = vmatprep.subr.mxu0 0.0
    %1841 = vmatpush1.xpose.msra.mxu0 0.0
    %1842 = vmatprep.subr.mxu0 0.0
    %1843 = vmatpush1.xpose.msra.mxu0 0.0
    %1844 = vmatprep.subr.mxu0 0.0
    %1845 = vmatpush1.xpose.msra.mxu0 0.0
    %1846 = vmatprep.subr.mxu0 0.0
    %1847 = vmatpush1.xpose.msra.mxu0 0.0
    %1848 = vmatprep.subr.mxu0 0.0
    %1849 = vmatpush1.xpose.msra.mxu0 0.0
    %1850 = vmatprep.subr.mxu0 0.0
    %1851 = vmatpush1.xpose.msra.mxu0 0.0
    %1852 = vmatprep.subr.mxu0 0.0
    %1853 = vmatpush1.xpose.msra.mxu0 0.0
    %1854 = vmatprep.subr.mxu0 0.0
    %1855 = vmatpush1.xpose.msra.mxu0 0.0
    %1856 = vmatprep.subr.mxu0 0.0
    %1857 = vmatpush1.xpose.msra.mxu0 0.0
    %1858 = vmatprep.subr.mxu0 0.0
    %1859 = vmatpush1.xpose.msra.mxu0 0.0
    %1860 = vmatprep.subr.mxu0 0.0
    %1861 = vmatpush1.xpose.msra.mxu0 0.0
    %1862 = vmatprep.subr.mxu0 0.0
    %1863 = vmatpush1.xpose.msra.mxu0 0.0
    %1864 = vmatprep.subr.mxu0 0.0
    %1865 = vmatpush1.xpose.msra.mxu0 0.0
    %1866 = vmatprep.subr.mxu0 0.0
    %1867 = vmatpush1.xpose.msra.mxu0 0.0
    %1868 = vmatprep.subr.mxu0 0.0
    %1869 = vmatpush1.xpose.msra.mxu0 0.0
    %1870 = vmatprep.subr.mxu0 0.0
    %1871 = vmatpush1.xpose.msra.mxu0 0.0
    %1872 = vmatprep.subr.mxu0 0.0
    %1873 = vmatpush1.xpose.msra.mxu0 0.0
    %1874 = vmatprep.subr.mxu0 0.0
    %1875 = vmatpush1.xpose.msra.mxu0 0.0
    %1876 = vmatprep.subr.mxu0 0.0
    %1877 = vmatpush1.xpose.msra.mxu0 0.0
    %1878 = vmatprep.subr.mxu0 0.0
    %1879 = vmatpush1.xpose.msra.mxu0 0.0
    %1880 = vmatprep.subr.mxu0 0.0
    %1881 = vmatpush1.xpose.msra.mxu0 0.0
    %1882 = vmatprep.subr.mxu0 0.0
    %1883 = vmatpush1.xpose.msra.mxu0 0.0
    %1884 = vmatprep.subr.mxu0 0.0
    %1885 = vmatpush1.xpose.msra.mxu0 0.0
    %1886 = vmatprep.subr.mxu0 0.0
    %1887 = vmatpush1.xpose.msra.mxu0 0.0
    %1888 = vmatprep.mubr.f32.mxu0 0.0
    %1889 = vmatmul.mubr.f32.gmra.mrb[0].mxu0 %v1820
    %v1890 = vpop.f32.mrb[0].mxu0
    %v1891 = vadd.f32 0.0, %v1890
    %v1892 = vpop.f32.mrb[0].mxu0
    %1893 = vdwg.mxu0
    %1894 = vrot.lane.b32.xlu0 %v1483, 112
    %v1895 = vpop.permute.xlu0 %1894
    %1896 = vrot.lane.b32.xlu0 %v1483, 80
    %v1897 = vpop.permute.xlu0 %1896
    %v1898 = vsel %vm329, %v1895, 0
    %v1900 = vsel %vm329, %v1897, 0
    %1902 = vmatprep.subr.mxu0 0.0
    %1903 = vmatpush1.xpose.msra.mxu0 %v1900
    %1904 = vmatprep.subr.mxu0 0.0
    %1905 = vmatpush1.xpose.msra.mxu0 0.0
    %1906 = vmatprep.subr.mxu0 0.0
    %1907 = vmatpush1.xpose.msra.mxu0 0.0
    %1908 = vmatprep.subr.mxu0 0.0
    %1909 = vmatpush1.xpose.msra.mxu0 0.0
    %1910 = vmatprep.subr.mxu0 0.0
    %1911 = vmatpush1.xpose.msra.mxu0 0.0
    %1912 = vmatprep.subr.mxu0 0.0
    %1913 = vmatpush1.xpose.msra.mxu0 0.0
    %1914 = vmatprep.subr.mxu0 0.0
    %1915 = vmatpush1.xpose.msra.mxu0 0.0
    %1916 = vmatprep.subr.mxu0 0.0
    %1917 = vmatpush1.xpose.msra.mxu0 0.0
    %1918 = vmatprep.subr.mxu0 0.0
    %1919 = vmatpush1.xpose.msra.mxu0 0.0
    %1920 = vmatprep.subr.mxu0 0.0
    %1921 = vmatpush1.xpose.msra.mxu0 0.0
    %1922 = vmatprep.subr.mxu0 0.0
    %1923 = vmatpush1.xpose.msra.mxu0 0.0
    %1924 = vmatprep.subr.mxu0 0.0
    %1925 = vmatpush1.xpose.msra.mxu0 0.0
    %1926 = vmatprep.subr.mxu0 0.0
    %1927 = vmatpush1.xpose.msra.mxu0 0.0
    %1928 = vmatprep.subr.mxu0 0.0
    %1929 = vmatpush1.xpose.msra.mxu0 0.0
    %1930 = vmatprep.subr.mxu0 0.0
    %1931 = vmatpush1.xpose.msra.mxu0 0.0
    %1932 = vmatprep.subr.mxu0 0.0
    %1933 = vmatpush1.xpose.msra.mxu0 0.0
    %1934 = vmatprep.subr.mxu0 0.0
    %1935 = vmatpush1.xpose.msra.mxu0 0.0
    %1936 = vmatprep.subr.mxu0 0.0
    %1937 = vmatpush1.xpose.msra.mxu0 0.0
    %1938 = vmatprep.subr.mxu0 0.0
    %1939 = vmatpush1.xpose.msra.mxu0 0.0
    %1940 = vmatprep.subr.mxu0 0.0
    %1941 = vmatpush1.xpose.msra.mxu0 0.0
    %1942 = vmatprep.subr.mxu0 0.0
    %1943 = vmatpush1.xpose.msra.mxu0 0.0
    %1944 = vmatprep.subr.mxu0 0.0
    %1945 = vmatpush1.xpose.msra.mxu0 0.0
    %1946 = vmatprep.subr.mxu0 0.0
    %1947 = vmatpush1.xpose.msra.mxu0 0.0
    %1948 = vmatprep.subr.mxu0 0.0
    %1949 = vmatpush1.xpose.msra.mxu0 0.0
    %1950 = vmatprep.subr.mxu0 0.0
    %1951 = vmatpush1.xpose.msra.mxu0 0.0
    %1952 = vmatprep.subr.mxu0 0.0
    %1953 = vmatpush1.xpose.msra.mxu0 0.0
    %1954 = vmatprep.subr.mxu0 0.0
    %1955 = vmatpush1.xpose.msra.mxu0 0.0
    %1956 = vmatprep.subr.mxu0 0.0
    %1957 = vmatpush1.xpose.msra.mxu0 0.0
    %1958 = vmatprep.subr.mxu0 0.0
    %1959 = vmatpush1.xpose.msra.mxu0 0.0
    %1960 = vmatprep.subr.mxu0 0.0
    %1961 = vmatpush1.xpose.msra.mxu0 0.0
    %1962 = vmatprep.subr.mxu0 0.0
    %1963 = vmatpush1.xpose.msra.mxu0 0.0
    %1964 = vmatprep.subr.mxu0 0.0
    %1965 = vmatpush1.xpose.msra.mxu0 0.0
    %1966 = vmatprep.mubr.f32.mxu0 0.0
    %1967 = vmatmul.mubr.f32.gmra.mrb[0].mxu0 %v1898
    %v1968 = vpop.f32.mrb[0].mxu0
    %v1969 = vadd.f32 0.0, %v1968
    %v1970 = vpop.f32.mrb[0].mxu0
    %1971 = vdwg.mxu0
    %v1972 = vmul.f32 %v1891, 0.25
    %v1973 = vmul.f32 %v1969, 0.25
    %v1974 = vsel %vm483, %v1972, -inf
    %1975 = vmax.xlane.f32.xlu0 %v1974
    %v1976 = vpop.xlane.xlu0 %1975
    %v1977 = vsel %vm483, %v1973, -inf
    %1978 = vmax.xlane.f32.xlu0 %v1977
    %v1979 = vpop.xlane.xlu0 %1978
    %v1980 = vsub.f32 %v1972, %v1976
    %v1981 = vsub.f32 %v1973, %v1979
    %v1982 = vmul.f32 %v1980, 1.442695
    %v1983 = vpow.pop %v1982
    %v1984 = vmul.f32 %v1981, 1.442695
    %v1985 = vpow.pop %v1984
    %v1986 = vsel %vm483, %v1983, 0.0
    %1987 = vadd.xlane.f32.xlu0 %v1986
    %v1988 = vpop.xlane.xlu0 %1987
    %v1989 = vsel %vm483, %v1985, 0.0
    %1990 = vadd.xlane.f32.xlu0 %v1989
    %v1991 = vpop.xlane.xlu0 %1990
    %v1992 = vrcp.pop %v1988
    %v1993 = vrcp.pop %v1991
    %v1994 = vmul.f32 %v1983, %v1992
    %v1995 = vmul.f32 %v1985, %v1993
    %1996 = vrot.lane.b32.xlu0 %v1478, 48
    %v1997 = vpop.permute.xlu0 %1996
    %v2000 = vsel %vm483, %v1994, 0
    %2002 = vmatprep.subr.mxu0 0.0
    %2003 = vmatpush1.msra.mxu0 %v1997
    %2004 = vmatprep.subr.mxu0 0.0
    %2005 = vmatpush1.msra.mxu0 0.0
    %2006 = vmatprep.subr.mxu0 0.0
    %2007 = vmatpush1.msra.mxu0 0.0
    %2008 = vmatprep.subr.mxu0 0.0
    %2009 = vmatpush1.msra.mxu0 0.0
    %2010 = vmatprep.subr.mxu0 0.0
    %2011 = vmatpush1.msra.mxu0 0.0
    %2012 = vmatprep.subr.mxu0 0.0
    %2013 = vmatpush1.msra.mxu0 0.0
    %2014 = vmatprep.subr.mxu0 0.0
    %2015 = vmatpush1.msra.mxu0 0.0
    %2016 = vmatprep.subr.mxu0 0.0
    %2017 = vmatpush1.msra.mxu0 0.0
    %2018 = vmatprep.subr.mxu0 0.0
    %2019 = vmatpush1.msra.mxu0 0.0
    %2020 = vmatprep.subr.mxu0 0.0
    %2021 = vmatpush1.msra.mxu0 0.0
    %2022 = vmatprep.subr.mxu0 0.0
    %2023 = vmatpush1.msra.mxu0 0.0
    %2024 = vmatprep.subr.mxu0 0.0
    %2025 = vmatpush1.msra.mxu0 0.0
    %2026 = vmatprep.subr.mxu0 0.0
    %2027 = vmatpush1.msra.mxu0 0.0
    %2028 = vmatprep.subr.mxu0 0.0
    %2029 = vmatpush1.msra.mxu0 0.0
    %2030 = vmatprep.subr.mxu0 0.0
    %2031 = vmatpush1.msra.mxu0 0.0
    %2032 = vmatprep.subr.mxu0 0.0
    %2033 = vmatpush1.msra.mxu0 0.0
    %2034 = vmatprep.subr.mxu0 0.0
    %2035 = vmatpush1.msra.mxu0 0.0
    %2036 = vmatprep.subr.mxu0 0.0
    %2037 = vmatpush1.msra.mxu0 0.0
    %2038 = vmatprep.subr.mxu0 0.0
    %2039 = vmatpush1.msra.mxu0 0.0
    %2040 = vmatprep.subr.mxu0 0.0
    %2041 = vmatpush1.msra.mxu0 0.0
    %2042 = vmatprep.subr.mxu0 0.0
    %2043 = vmatpush1.msra.mxu0 0.0
    %2044 = vmatprep.subr.mxu0 0.0
    %2045 = vmatpush1.msra.mxu0 0.0
    %2046 = vmatprep.subr.mxu0 0.0
    %2047 = vmatpush1.msra.mxu0 0.0
    %2048 = vmatprep.subr.mxu0 0.0
    %2049 = vmatpush1.msra.mxu0 0.0
    %2050 = vmatprep.subr.mxu0 0.0
    %2051 = vmatpush1.msra.mxu0 0.0
    %2052 = vmatprep.subr.mxu0 0.0
    %2053 = vmatpush1.msra.mxu0 0.0
    %2054 = vmatprep.subr.mxu0 0.0
    %2055 = vmatpush1.msra.mxu0 0.0
    %2056 = vmatprep.subr.mxu0 0.0
    %2057 = vmatpush1.msra.mxu0 0.0
    %2058 = vmatprep.subr.mxu0 0.0
    %2059 = vmatpush1.msra.mxu0 0.0
    %2060 = vmatprep.subr.mxu0 0.0
    %2061 = vmatpush1.msra.mxu0 0.0
    %2062 = vmatprep.subr.mxu0 0.0
    %2063 = vmatpush1.msra.mxu0 0.0
    %2064 = vmatprep.subr.mxu0 0.0
    %2065 = vmatpush1.msra.mxu0 0.0
    %2066 = vmatprep.mubr.f32.mxu0 0.0
    %2067 = vmatmul.mubr.f32.gmra.mrb[0].mxu0 %v2000
    %v2068 = vpop.f32.mrb[0].mxu0
    %v2069 = vadd.f32 0.0, %v2068
    %v2070 = vpop.f32.mrb[0].mxu0
    %2071 = vdwg.mxu0
    %2072 = vrot.lane.b32.xlu0 %v1483, 48
    %v2073 = vpop.permute.xlu0 %2072
    %v2076 = vsel %vm483, %v1995, 0
    %2078 = vmatprep.subr.mxu0 0.0
    %2079 = vmatpush1.msra.mxu0 %v2073
    %2080 = vmatprep.subr.mxu0 0.0
    %2081 = vmatpush1.msra.mxu0 0.0
    %2082 = vmatprep.subr.mxu0 0.0
    %2083 = vmatpush1.msra.mxu0 0.0
    %2084 = vmatprep.subr.mxu0 0.0
    %2085 = vmatpush1.msra.mxu0 0.0
    %2086 = vmatprep.subr.mxu0 0.0
    %2087 = vmatpush1.msra.mxu0 0.0
    %2088 = vmatprep.subr.mxu0 0.0
    %2089 = vmatpush1.msra.mxu0 0.0
    %2090 = vmatprep.subr.mxu0 0.0
    %2091 = vmatpush1.msra.mxu0 0.0
    %2092 = vmatprep.subr.mxu0 0.0
    %2093 = vmatpush1.msra.mxu0 0.0
    %2094 = vmatprep.subr.mxu0 0.0
    %2095 = vmatpush1.msra.mxu0 0.0
    %2096 = vmatprep.subr.mxu0 0.0
    %2097 = vmatpush1.msra.mxu0 0.0
    %2098 = vmatprep.subr.mxu0 0.0
    %2099 = vmatpush1.msra.mxu0 0.0
    %2100 = vmatprep.subr.mxu0 0.0
    %2101 = vmatpush1.msra.mxu0 0.0
    %2102 = vmatprep.subr.mxu0 0.0
    %2103 = vmatpush1.msra.mxu0 0.0
    %2104 = vmatprep.subr.mxu0 0.0
    %2105 = vmatpush1.msra.mxu0 0.0
    %2106 = vmatprep.subr.mxu0 0.0
    %2107 = vmatpush1.msra.mxu0 0.0
    %2108 = vmatprep.subr.mxu0 0.0
    %2109 = vmatpush1.msra.mxu0 0.0
    %2110 = vmatprep.subr.mxu0 0.0
    %2111 = vmatpush1.msra.mxu0 0.0
    %2112 = vmatprep.subr.mxu0 0.0
    %2113 = vmatpush1.msra.mxu0 0.0
    %2114 = vmatprep.subr.mxu0 0.0
    %2115 = vmatpush1.msra.mxu0 0.0
    %2116 = vmatprep.subr.mxu0 0.0
    %2117 = vmatpush1.msra.mxu0 0.0
    %2118 = vmatprep.subr.mxu0 0.0
    %2119 = vmatpush1.msra.mxu0 0.0
    %2120 = vmatprep.subr.mxu0 0.0
    %2121 = vmatpush1.msra.mxu0 0.0
    %2122 = vmatprep.subr.mxu0 0.0
    %2123 = vmatpush1.msra.mxu0 0.0
    %2124 = vmatprep.subr.mxu0 0.0
    %2125 = vmatpush1.msra.mxu0 0.0
    %2126 = vmatprep.subr.mxu0 0.0
    %2127 = vmatpush1.msra.mxu0 0.0
    %2128 = vmatprep.subr.mxu0 0.0
    %2129 = vmatpush1.msra.mxu0 0.0
    %2130 = vmatprep.subr.mxu0 0.0
    %2131 = vmatpush1.msra.mxu0 0.0
    %2132 = vmatprep.subr.mxu0 0.0
    %2133 = vmatpush1.msra.mxu0 0.0
    %2134 = vmatprep.subr.mxu0 0.0
    %2135 = vmatpush1.msra.mxu0 0.0
    %2136 = vmatprep.subr.mxu0 0.0
    %2137 = vmatpush1.msra.mxu0 0.0
    %2138 = vmatprep.subr.mxu0 0.0
    %2139 = vmatpush1.msra.mxu0 0.0
    %2140 = vmatprep.subr.mxu0 0.0
    %2141 = vmatpush1.msra.mxu0 0.0
    %2142 = vmatprep.mubr.f32.mxu0 0.0
    %2143 = vmatmul.mubr.f32.gmra.mrb[0].mxu0 %v2076
    %v2144 = vpop.f32.mrb[0].mxu0
    %v2145 = vadd.f32 0.0, %v2144
    %v2146 = vpop.f32.mrb[0].mxu0
    %2147 = vdwg.mxu0
    %2150 = vrot.lane.b32.xlu0 %v2069, 16
    %v2151 = vpop.permute.xlu0 %2150
    %2152 = vrot.lane.b32.xlu0 %v2145, 16
    %v2153 = vpop.permute.xlu0 %2152
    %v2156 = vsel %vm329, %v1737, %v2151
    %v2157 = vsel %vm329, %v1813, %v2153
    %s2158 = scalar_lea.vmem %s6, 32
    %v2159 = vld [vmem:[%s2158] sm:$0xff]
    %v2160 = vld [vmem:[%s2158 + $0x8] sm:$0xff]
    %v2161 = vld [vmem:[%s2158 + $0x10] sm:$0xff]
    %v2162 = vld [vmem:[%s2158 + $0x18] sm:$0xff]
    %s2163 = scalar_lea.vmem [#allocation7], 1
    %v2164 = vld [vmem:[%s2163] sm:$0x1]
    %v2166 = vlaneseq
    %v2167 = vshrl.u32 %v2166, 7
    %v2168 = vsub.s32 0, %v2167
    %v2169 = vrot.slane %v2164, %v2168
    %v2172 = vsel %vm244, %v2156, 0
    %v2175 = vsel %vm244, %v2157, 0
    %2177 = vmatprep.subr.mxu0 0.0
    %2178 = vmatpush1.msra.mxu0 %v2159
    %2179 = vmatprep.subr.mxu0 0.0
    %2180 = vmatpush1.msra.mxu0 %v2160
    %2181 = vmatprep.subr.mxu0 0.0
    %2182 = vmatpush1.msra.mxu0 %v2161
    %2183 = vmatprep.subr.mxu0 0.0
    %2184 = vmatpush1.msra.mxu0 %v2162
    %2185 = vmatprep.subr.mxu0 0.0
    %2186 = vmatpush1.msra.mxu0 0.0
    %2187 = vmatprep.subr.mxu0 0.0
    %2188 = vmatpush1.msra.mxu0 0.0
    %2189 = vmatprep.subr.mxu0 0.0
    %2190 = vmatpush1.msra.mxu0 0.0
    %2191 = vmatprep.subr.mxu0 0.0
    %2192 = vmatpush1.msra.mxu0 0.0
    %2193 = vmatprep.subr.mxu0 0.0
    %2194 = vmatpush1.msra.mxu0 0.0
    %2195 = vmatprep.subr.mxu0 0.0
    %2196 = vmatpush1.msra.mxu0 0.0
    %2197 = vmatprep.subr.mxu0 0.0
    %2198 = vmatpush1.msra.mxu0 0.0
    %2199 = vmatprep.subr.mxu0 0.0
    %2200 = vmatpush1.msra.mxu0 0.0
    %2201 = vmatprep.subr.mxu0 0.0
    %2202 = vmatpush1.msra.mxu0 0.0
    %2203 = vmatprep.subr.mxu0 0.0
    %2204 = vmatpush1.msra.mxu0 0.0
    %2205 = vmatprep.subr.mxu0 0.0
    %2206 = vmatpush1.msra.mxu0 0.0
    %2207 = vmatprep.subr.mxu0 0.0
    %2208 = vmatpush1.msra.mxu0 0.0
    %2209 = vmatprep.subr.mxu0 0.0
    %2210 = vmatpush1.msra.mxu0 0.0
    %2211 = vmatprep.subr.mxu0 0.0
    %2212 = vmatpush1.msra.mxu0 0.0
    %2213 = vmatprep.subr.mxu0 0.0
    %2214 = vmatpush1.msra.mxu0 0.0
    %2215 = vmatprep.subr.mxu0 0.0
    %2216 = vmatpush1.msra.mxu0 0.0
    %2217 = vmatprep.subr.mxu0 0.0
    %2218 = vmatpush1.msra.mxu0 0.0
    %2219 = vmatprep.subr.mxu0 0.0
    %2220 = vmatpush1.msra.mxu0 0.0
    %2221 = vmatprep.subr.mxu0 0.0
    %2222 = vmatpush1.msra.mxu0 0.0
    %2223 = vmatprep.subr.mxu0 0.0
    %2224 = vmatpush1.msra.mxu0 0.0
    %2225 = vmatprep.subr.mxu0 0.0
    %2226 = vmatpush1.msra.mxu0 0.0
    %2227 = vmatprep.subr.mxu0 0.0
    %2228 = vmatpush1.msra.mxu0 0.0
    %2229 = vmatprep.subr.mxu0 0.0
    %2230 = vmatpush1.msra.mxu0 0.0
    %2231 = vmatprep.subr.mxu0 0.0
    %2232 = vmatpush1.msra.mxu0 0.0
    %2233 = vmatprep.subr.mxu0 0.0
    %2234 = vmatpush1.msra.mxu0 0.0
    %2235 = vmatprep.subr.mxu0 0.0
    %2236 = vmatpush1.msra.mxu0 0.0
    %2237 = vmatprep.subr.mxu0 0.0
    %2238 = vmatpush1.msra.mxu0 0.0
    %2239 = vmatprep.subr.mxu0 0.0
    %2240 = vmatpush1.msra.mxu0 0.0
    %2241 = vmatprep.mubr.f32.mxu0 0.0
    %2242 = vmatmul.mubr.f32.gmra.mrb[0].mxu0 %v2172
    %v2243 = vpop.f32.mrb[0].mxu0
    %v2244 = vadd.f32 %v2169, %v2243
    %v2245 = vpop.f32.mrb[0].mxu0
    %2246 = vmatprep.mubr.f32.mxu0 0.0
    %2247 = vmatmul.mubr.f32.gmra.mrb[0].mxu0 %v2175
    %v2248 = vpop.f32.mrb[0].mxu0
    %v2249 = vadd.f32 %v2169, %v2248
    %v2250 = vpop.f32.mrb[0].mxu0
    %2251 = vdwg.mxu0
    %v2252 = vadd.f32 %v1390, %v2244
    %v2253 = vadd.f32 %v1391, %v2249
    %s2254 = scalar_lea.vmem [#allocation8], 1
    %v2255 = vld [vmem:[%s2254] sm:$0x1]
    %s2256 = scalar_lea.vmem [#allocation10], 1
    %v2257 = vld [vmem:[%s2256] sm:$0x1]
    %v2258 = vsel %vm244, %v2252, 0.0
    %2259 = vadd.xlane.f32.xlu0 %v2258
    %v2260 = vpop.xlane.xlu0 %2259
    %v2261 = vsel %vm244, %v2253, 0.0
    %2262 = vadd.xlane.f32.xlu0 %v2261
    %v2263 = vpop.xlane.xlu0 %2262
    %v2264 = vmul.f32 %v2260, %v1102
    %v2265 = vmul.f32 %v2263, %v1102
    %v2266 = vsub.f32 %v2252, %v2264
    %v2267 = vsub.f32 %v2253, %v2265
    %v2268 = vmul.f32 %v2266, %v2266
    %v2269 = vmul.f32 %v2267, %v2267
    %v2270 = vsel %vm244, %v2268, 0.0
    %2271 = vadd.xlane.f32.xlu0 %v2270
    %v2272 = vpop.xlane.xlu0 %2271
    %v2273 = vsel %vm244, %v2269, 0.0
    %2274 = vadd.xlane.f32.xlu0 %v2273
    %v2275 = vpop.xlane.xlu0 %2274
    %v2276 = vmul.f32 %v2272, %v1102
    %v2277 = vmul.f32 %v2275, %v1102
    %v2278 = vadd.f32 %v2276, 1e-12
    %v2279 = vadd.f32 %v2277, 1e-12
    %v2280 = vrsqrt.pop %v2278
    %v2281 = vrsqrt.pop %v2279
    %v2282 = vmul.f32 %v2266, %v2280
    %v2283 = vmul.f32 %v2267, %v2281
    %v2285 = vlaneseq
    %v2286 = vshrl.u32 %v2285, 7
    %v2287 = vsub.s32 0, %v2286
    %v2288 = vrot.slane %v2255, %v2287
    %v2290 = vmul.f32 %v2282, %v2288
    %v2291 = vmul.f32 %v2283, %v2288
    %v2293 = vlaneseq
    %v2294 = vshrl.u32 %v2293, 7
    %v2295 = vsub.s32 0, %v2294
    %v2296 = vrot.slane %v2257, %v2295
    %v2298 = vadd.f32 %v2290, %v2296
    %v2299 = vadd.f32 %v2291, %v2296
    %s2300 = scalar_lea.vmem %s10, 32
    %v2301 = vld [vmem:[%s2300] sm:$0xff]
    %v2302 = vld [vmem:[%s2300 + $0x8] sm:$0xff]
    %v2303 = vld [vmem:[%s2300 + $0x10] sm:$0xff]
    %v2304 = vld [vmem:[%s2300 + $0x18] sm:$0xff]
    %s2305 = scalar_lea.vmem [#allocation11], 1
    %v2306 = vld [vmem:[%s2305] sm:$0x1]
    %v2308 = vlaneseq
    %v2309 = vshrl.u32 %v2308, 7
    %v2310 = vsub.s32 0, %v2309
    %v2311 = vrot.slane %v2306, %v2310
    %v2314 = vsel %vm244, %v2298, 0
    %v2317 = vsel %vm244, %v2299, 0
    %2319 = vmatprep.subr.mxu0 0.0
    %2320 = vmatpush1.msra.mxu0 %v2301
    %2321 = vmatprep.subr.mxu0 0.0
    %2322 = vmatpush1.msra.mxu0 %v2302
    %2323 = vmatprep.subr.mxu0 0.0
    %2324 = vmatpush1.msra.mxu0 %v2303
    %2325 = vmatprep.subr.mxu0 0.0
    %2326 = vmatpush1.msra.mxu0 %v2304
    %2327 = vmatprep.subr.mxu0 0.0
    %2328 = vmatpush1.msra.mxu0 0.0
    %2329 = vmatprep.subr.mxu0 0.0
    %2330 = vmatpush1.msra.mxu0 0.0
    %2331 = vmatprep.subr.mxu0 0.0
    %2332 = vmatpush1.msra.mxu0 0.0
    %2333 = vmatprep.subr.mxu0 0.0
    %2334 = vmatpush1.msra.mxu0 0.0
    %2335 = vmatprep.subr.mxu0 0.0
    %2336 = vmatpush1.msra.mxu0 0.0
    %2337 = vmatprep.subr.mxu0 0.0
    %2338 = vmatpush1.msra.mxu0 0.0
    %2339 = vmatprep.subr.mxu0 0.0
    %2340 = vmatpush1.msra.mxu0 0.0
    %2341 = vmatprep.subr.mxu0 0.0
    %2342 = vmatpush1.msra.mxu0 0.0
    %2343 = vmatprep.subr.mxu0 0.0
    %2344 = vmatpush1.msra.mxu0 0.0
    %2345 = vmatprep.subr.mxu0 0.0
    %2346 = vmatpush1.msra.mxu0 0.0
    %2347 = vmatprep.subr.mxu0 0.0
    %2348 = vmatpush1.msra.mxu0 0.0
    %2349 = vmatprep.subr.mxu0 0.0
    %2350 = vmatpush1.msra.mxu0 0.0
    %2351 = vmatprep.subr.mxu0 0.0
    %2352 = vmatpush1.msra.mxu0 0.0
    %2353 = vmatprep.subr.mxu0 0.0
    %2354 = vmatpush1.msra.mxu0 0.0
    %2355 = vmatprep.subr.mxu0 0.0
    %2356 = vmatpush1.msra.mxu0 0.0
    %2357 = vmatprep.subr.mxu0 0.0
    %2358 = vmatpush1.msra.mxu0 0.0
    %2359 = vmatprep.subr.mxu0 0.0
    %2360 = vmatpush1.msra.mxu0 0.0
    %2361 = vmatprep.subr.mxu0 0.0
    %2362 = vmatpush1.msra.mxu0 0.0
    %2363 = vmatprep.subr.mxu0 0.0
    %2364 = vmatpush1.msra.mxu0 0.0
    %2365 = vmatprep.subr.mxu0 0.0
    %2366 = vmatpush1.msra.mxu0 0.0
    %2367 = vmatprep.subr.mxu0 0.0
    %2368 = vmatpush1.msra.mxu0 0.0
    %2369 = vmatprep.subr.mxu0 0.0
    %2370 = vmatpush1.msra.mxu0 0.0
    %2371 = vmatprep.subr.mxu0 0.0
    %2372 = vmatpush1.msra.mxu0 0.0
    %2373 = vmatprep.subr.mxu0 0.0
    %2374 = vmatpush1.msra.mxu0 0.0
    %2375 = vmatprep.subr.mxu0 0.0
    %2376 = vmatpush1.msra.mxu0 0.0
    %2377 = vmatprep.subr.mxu0 0.0
    %2378 = vmatpush1.msra.mxu0 0.0
    %2379 = vmatprep.subr.mxu0 0.0
    %2380 = vmatpush1.msra.mxu0 0.0
    %2381 = vmatprep.subr.mxu0 0.0
    %2382 = vmatpush1.msra.mxu0 0.0
    %2383 = vmatprep.mubr.f32.mxu0 0.0
    %2384 = vmatmul.mubr.f32.gmra.mrb[0].mxu0 %v2314
    %v2385 = vpop.f32.mrb[0].mxu0
    %v2386 = vadd.f32 %v2311, %v2385
    %v2387 = vpop.f32.mrb[0].mxu0
    %2388 = vmatprep.mubr.f32.mxu0 0.0
    %2389 = vmatmul.mubr.f32.gmra.mrb[0].mxu0 %v2317
    %v2390 = vpop.f32.mrb[0].mxu0
    %v2391 = vadd.f32 %v2311, %v2390
    %v2392 = vpop.f32.mrb[0].mxu0
    %2393 = vdwg.mxu0
    %v2394 = vmul.f32 %v2386, %v2386
    %v2395 = vmul.f32 %v2391, %v2391
    %v2396 = vmul.f32 %v2386, %v2394
    %v2397 = vmul.f32 %v2391, %v2395
    %v2398 = vmul.f32 %v2396, 0.044715
    %v2399 = vmul.f32 %v2397, 0.044715
    %v2400 = vadd.f32 %v2386, %v2398
    %v2401 = vadd.f32 %v2391, %v2399
    %v2402 = vmul.f32 %v2400, 0.7978846
    %v2403 = vmul.f32 %v2401, 0.7978846
    %v2404 = vtanh.pop %v2402
    %v2405 = vtanh.pop %v2403
    %v2406 = vadd.f32 %v2404, 1.0
    %v2407 = vadd.f32 %v2405, 1.0
    %v2408 = vmul.f32 %v2406, 0.5
    %v2409 = vmul.f32 %v2407, 0.5
    %v2410 = vmul.f32 %v2386, %v2408
    %v2411 = vmul.f32 %v2391, %v2409
    %s2412 = scalar_lea.vmem %s12, 64
    %v2413 = vld [vmem:[%s2412] sm:$0xff]
    %v2414 = vld [vmem:[%s2412 + $0x8] sm:$0xff]
    %v2415 = vld [vmem:[%s2412 + $0x10] sm:$0xff]
    %v2416 = vld [vmem:[%s2412 + $0x18] sm:$0xff]
    %v2417 = vld [vmem:[%s2412 + $0x20] sm:$0xff]
    %v2418 = vld [vmem:[%s2412 + $0x28] sm:$0xff]
    %v2419 = vld [vmem:[%s2412 + $0x30] sm:$0xff]
    %v2420 = vld [vmem:[%s2412 + $0x38] sm:$0xff]
    %s2421 = scalar_lea.vmem %s13, 1
    %v2422 = vld [vmem:[%s2421] sm:$0x1]
    %v2424 = vlaneseq
    %v2425 = vshrl.u32 %v2424, 7
    %v2426 = vsub.s32 0, %v2425
    %v2427 = vrot.slane %v2422, %v2426
    %v2430 = vsel %vm1264, %v2410, 0
    %v2433 = vsel %vm1264, %v2411, 0
    %2435 = vmatprep.subr.mxu0 0.0
    %2436 = vmatpush1.msra.mxu0 %v2413
    %2437 = vmatprep.subr.mxu0 0.0
    %2438 = vmatpush1.msra.mxu0 %v2414
    %2439 = vmatprep.subr.mxu0 0.0
    %2440 = vmatpush1.msra.mxu0 %v2415
    %2441 = vmatprep.subr.mxu0 0.0
    %2442 = vmatpush1.msra.mxu0 %v2416
    %2443 = vmatprep.subr.mxu0 0.0
    %2444 = vmatpush1.msra.mxu0 %v2417
    %2445 = vmatprep.subr.mxu0 0.0
    %2446 = vmatpush1.msra.mxu0 %v2418
    %2447 = vmatprep.subr.mxu0 0.0
    %2448 = vmatpush1.msra.mxu0 %v2419
    %2449 = vmatprep.subr.mxu0 0.0
    %2450 = vmatpush1.msra.mxu0 %v2420
    %2451 = vmatprep.subr.mxu0 0.0
    %2452 = vmatpush1.msra.mxu0 0.0
    %2453 = vmatprep.subr.mxu0 0.0
    %2454 = vmatpush1.msra.mxu0 0.0
    %2455 = vmatprep.subr.mxu0 0.0
    %2456 = vmatpush1.msra.mxu0 0.0
    %2457 = vmatprep.subr.mxu0 0.0
    %2458 = vmatpush1.msra.mxu0 0.0
    %2459 = vmatprep.subr.mxu0 0.0
    %2460 = vmatpush1.msra.mxu0 0.0
    %2461 = vmatprep.subr.mxu0 0.0
    %2462 = vmatpush1.msra.mxu0 0.0
    %2463 = vmatprep.subr.mxu0 0.0
    %2464 = vmatpush1.msra.mxu0 0.0
    %2465 = vmatprep.subr.mxu0 0.0
    %2466 = vmatpush1.msra.mxu0 0.0
    %2467 = vmatprep.subr.mxu0 0.0
    %2468 = vmatpush1.msra.mxu0 0.0
    %2469 = vmatprep.subr.mxu0 0.0
    %2470 = vmatpush1.msra.mxu0 0.0
    %2471 = vmatprep.subr.mxu0 0.0
    %2472 = vmatpush1.msra.mxu0 0.0
    %2473 = vmatprep.subr.mxu0 0.0
    %2474 = vmatpush1.msra.mxu0 0.0
    %2475 = vmatprep.subr.mxu0 0.0
    %2476 = vmatpush1.msra.mxu0 0.0
    %2477 = vmatprep.subr.mxu0 0.0
    %2478 = vmatpush1.msra.mxu0 0.0
    %2479 = vmatprep.subr.mxu0 0.0
    %2480 = vmatpush1.msra.mxu0 0.0
    %2481 = vmatprep.subr.mxu0 0.0
    %2482 = vmatpush1.msra.mxu0 0.0
    %2483 = vmatprep.subr.mxu0 0.0
    %2484 = vmatpush1.msra.mxu0 0.0
    %2485 = vmatprep.subr.mxu0 0.0
    %2486 = vmatpush1.msra.mxu0 0.0
    %2487 = vmatprep.subr.mxu0 0.0
    %2488 = vmatpush1.msra.mxu0 0.0
    %2489 = vmatprep.subr.mxu0 0.0
    %2490 = vmatpush1.msra.mxu0 0.0
    %2491 = vmatprep.subr.mxu0 0.0
    %2492 = vmatpush1.msra.mxu0 0.0
    %2493 = vmatprep.subr.mxu0 0.0
    %2494 = vmatpush1.msra.mxu0 0.0
    %2495 = vmatprep.subr.mxu0 0.0
    %2496 = vmatpush1.msra.mxu0 0.0
    %2497 = vmatprep.subr.mxu0 0.0
    %2498 = vmatpush1.msra.mxu0 0.0
    %2499 = vmatprep.mubr.f32.mxu0 0.0
    %2500 = vmatmul.mubr.f32.gmra.mrb[0].mxu0 %v2430
    %v2501 = vpop.f32.mrb[0].mxu0
    %v2502 = vadd.f32 %v2427, %v2501
    %v2503 = vpop.f32.mrb[0].mxu0
    %2504 = vmatprep.mubr.f32.mxu0 0.0
    %2505 = vmatmul.mubr.f32.gmra.mrb[0].mxu0 %v2433
    %v2506 = vpop.f32.mrb[0].mxu0
    %v2507 = vadd.f32 %v2427, %v2506
    %v2508 = vpop.f32.mrb[0].mxu0
    %2509 = vdwg.mxu0
    %v2510 = vadd.f32 %v2298, %v2502
    %v2511 = vadd.f32 %v2299, %v2507
    %s2512 = scalar_lea.vmem %s14, 1
    %v2513 = vld [vmem:[%s2512] sm:$0x1]
    %s2514 = scalar_lea.vmem %s15, 1
    %v2515 = vld [vmem:[%s2514] sm:$0x1]
    %v2516 = vsel %vm244, %v2510, 0.0
    %2517 = vadd.xlane.f32.xlu0 %v2516
    %v2518 = vpop.xlane.xlu0 %2517
    %v2519 = vsel %vm244, %v2511, 0.0
    %2520 = vadd.xlane.f32.xlu0 %v2519
    %v2521 = vpop.xlane.xlu0 %2520
    %v2522 = vmul.f32 %v2518, %v1102
    %v2523 = vmul.f32 %v2521, %v1102
    %v2524 = vsub.f32 %v2510, %v2522
    %v2525 = vsub.f32 %v2511, %v2523
    %v2526 = vmul.f32 %v2524, %v2524
    %v2527 = vmul.f32 %v2525, %v2525
    %v2528 = vsel %vm244, %v2526, 0.0
    %2529 = vadd.xlane.f32.xlu0 %v2528
    %v2530 = vpop.xlane.xlu0 %2529
    %v2531 = vsel %vm244, %v2527, 0.0
    %2532 = vadd.xlane.f32.xlu0 %v2531
    %v2533 = vpop.xlane.xlu0 %2532
    %v2534 = vmul.f32 %v2530, %v1102
    %v2535 = vmul.f32 %v2533, %v1102
    %v2536 = vadd.f32 %v2534, 1e-12
    %v2537 = vadd.f32 %v2535, 1e-12
    %v2538 = vrsqrt.pop %v2536
    %v2539 = vrsqrt.pop %v2537
    %v2540 = vmul.f32 %v2524, %v2538
    %v2541 = vmul.f32 %v2525, %v2539
    %v2543 = vlaneseq
    %v2544 = vshrl.u32 %v2543, 7
    %v2545 = vsub.s32 0, %v2544
    %v2546 = vrot.slane %v2513, %v2545
    %v2548 = vmul.f32 %v2540, %v2546
    %v2549 = vmul.f32 %v2541, %v2546
    %v2551 = vlaneseq
    %v2552 = vshrl.u32 %v2551, 7
    %v2553 = vsub.s32 0, %v2552
    %v2554 = vrot.slane %v2515, %v2553
    %v2556 = vadd.f32 %v2548, %v2554
    %v2557 = vadd.f32 %v2549, %v2554
    %2558 = vst.msk [vmem:[#allocation13] sm:$0xff] %vm244, %v2556
    %2559 = vst.msk [vmem:[#allocation13 + $0x8] sm:$0xff] %vm244, %v2557
    // Predicated region
    $region90: #{tpu_custom_call.1} parent=1 // pred_check
      _
    $region91: #{tpu_custom_call.1} parent=1 // pred_check_branch
      %2561 = sbr.rel (0) target = $region93
    $region92: #{tpu_custom_call.1} parent=1 // pred_region
      %s2563 = ssub.s32 256, 256
      %2564 = vsyncadd [#allocation4], %s2563
      %s2565 = sshll.u32 [#allocation13], 4
      %s2566 = int_to_ptr.vmem [resolvable:$true] %s2565
      %2571 = dma.vmem_to_hbm [thread:$0]  %s2566, 256, %s16, [#allocation4], 128, 128, 8
    $region93: #{tpu_custom_call.1} parent=1 // pred_fallthru
      _
    // Predicated region
    $region94: #{tpu_custom_call.1} parent=1 // pred_check
      _
    $region95: #{tpu_custom_call.1} parent=1 // pred_check_branch
      %2573 = sbr.rel (0) target = $region97
    $region96: #{tpu_custom_call.1} parent=1 // pred_region
      %2574 = dma.done [#allocation4], 256
    $region97: #{tpu_custom_call.1} parent=1 // pred_fallthru
      _
    %2575 = vsyncpa [#allocation3], 1
    %2576 = vsyncpa [#allocation6], 1
    %2577 = vsyncpa [#allocation9], 1
    %2578 = vsyncpa [#allocation12], 1
    %2579 = vsyncpa [#allocation4], 1

</llo_original>
